<compile_context>
chip_gen: v6e
topology: v6e:2x2x1
jax: 0.10.0
libtpu: 0.0.40
codegen_flags: <defaults>
</compile_context>

<pallas_src>
import jax
import jax.numpy as jnp
import numpy as np
from jax.experimental import pallas as pl
from jax.experimental.pallas import tpu as pltpu

IN_DIM = 370              # logical concat width
K_PAD = 384               # lane-aligned padded input width (3 * 128)
H1, H2, H3 = 512, 1024, 512
OUT_DIM = 2               # logical output width
OUT_PAD = 128             # lane-dense padded output width


def mlp_kernel(x_ref, w1_ref, b1_ref, w2_ref, b2_ref,
               w3_ref, b3_ref, w4_ref, b4_ref, o_ref):
    # Whole 4-layer MLP for one batch tile: bf16 weight streaming, f32 MXU
    # accumulation, f32 bias+ReLU on the VPU, bf16 re-cast between layers.
    h = jnp.dot(x_ref[...], w1_ref[...], preferred_element_type=jnp.float32)
    h = jnp.maximum(h + b1_ref[...], 0.0).astype(jnp.bfloat16)

    h = jnp.dot(h, w2_ref[...], preferred_element_type=jnp.float32)
    h = jnp.maximum(h + b2_ref[...], 0.0).astype(jnp.bfloat16)

    h = jnp.dot(h, w3_ref[...], preferred_element_type=jnp.float32)
    h = jnp.maximum(h + b3_ref[...], 0.0).astype(jnp.bfloat16)

    o_ref[...] = jnp.dot(h, w4_ref[...],
                         preferred_element_type=jnp.float32) + b4_ref[...]


def make_params(key):
    """Deterministic PyTorch-style (uniform +-1/sqrt(fan_in)) init, f32 master."""
    dims = [(IN_DIM, H1), (H1, H2), (H2, H3), (H3, OUT_DIM)]
    params = []
    for (fan_in, fan_out) in dims:
        key, kw, kb = jax.random.split(key, 3)
        bound = 1.0 / np.sqrt(fan_in)
        w = jax.random.uniform(kw, (fan_in, fan_out), jnp.float32, -bound, bound)
        b = jax.random.uniform(kb, (1, fan_out), jnp.float32, -bound, bound)
        params.extend([w, b])
    return params


def prepare_kernel_params(params):
    """One-time conversion: bf16 weights, zero-padded K (w1) and N (w4/b4)."""
    w1, b1, w2, b2, w3, b3, w4, b4 = params

    w1p = jnp.zeros((K_PAD, H1), jnp.bfloat16).at[:IN_DIM].set(
        w1.astype(jnp.bfloat16))
    w4p = jnp.zeros((H3, OUT_PAD), jnp.bfloat16).at[:, :OUT_DIM].set(
        w4.astype(jnp.bfloat16))
    b4p = jnp.zeros((1, OUT_PAD), jnp.float32).at[:, :OUT_DIM].set(b4)

    return [
        w1p, b1,
        w2.astype(jnp.bfloat16), b2,
        w3.astype(jnp.bfloat16), b3,
        w4p, b4p,
    ]


def neural_network_forward(vector1, vector2, kparams):
    """Equivalent of NeuralNetwork.forward((vector1, vector2))."""
    b = vector1.shape[0]
    d1 = vector1.shape[1]
    d2 = vector2.shape[1]

    # Batch tile: small batches collapse to a single padded tile (sublane
    # multiple of 8); large batches are processed in 256-row tiles with the
    # weights resident in VMEM across tiles.
    if b <= 256:
        bt = max(8, ((b + 7) // 8) * 8)
    else:
        bt = 256
    bp = ((b + bt - 1) // bt) * bt

    # Fuse concat + batch-pad + K-pad into a single (bp, 384) bf16 buffer.
    xp = jnp.zeros((bp, K_PAD), jnp.bfloat16)
    xp = xp.at[:b, :d1].set(vector1.astype(jnp.bfloat16))
    xp = xp.at[:b, d1:d1 + d2].set(vector2.astype(jnp.bfloat16))

    weight_elems = K_PAD * H1 + H1 * H2 + H2 * H3 + H3 * OUT_PAD
    bias_elems = H1 + H2 + H3 + OUT_PAD
    cost = pl.CostEstimate(
        flops=2 * bp * weight_elems,
        transcendentals=0,
        bytes_accessed=(2 * weight_elems          # bf16 weights (resident)
                        + 4 * bias_elems          # f32 biases
                        + 2 * bp * K_PAD          # bf16 input
                        + 4 * bp * OUT_PAD),      # f32 output
    )

    # Weight/bias blocks use a constant index_map -> fetched once, kept resident
    # across batch-tile grid steps.
    in_specs = [pl.BlockSpec((bt, K_PAD), lambda i: (i, 0))]
    in_specs += [pl.BlockSpec(p.shape, lambda i: (0, 0)) for p in kparams]

    out = pl.pallas_call(
        mlp_kernel,
        out_shape=jax.ShapeDtypeStruct((bp, OUT_PAD), jnp.float32),
        grid=(bp // bt,),
        in_specs=in_specs,
        out_specs=pl.BlockSpec((bt, OUT_PAD), lambda i: (i, 0)),
        compiler_params=pltpu.CompilerParams(
            dimension_semantics=("parallel",)),
        cost_estimate=cost,
    )(xp, *kparams)

    return out[:b, :OUT_DIM]


def reference_forward(vector1, vector2, params):
    """Pure-JAX reference using the same bf16 weight / f32 accumulate recipe."""
    w1, b1, w2, b2, w3, b3, w4, b4 = params
    h = jnp.concatenate([vector1, vector2], axis=1).astype(jnp.bfloat16)
    for (w, bias) in ((w1, b1), (w2, b2), (w3, b3)):
        h = jnp.dot(h, w.astype(jnp.bfloat16),
                    preferred_element_type=jnp.float32)
        h = jnp.maximum(h + bias, 0.0).astype(jnp.bfloat16)
    return jnp.dot(h, w4.astype(jnp.bfloat16),
                   preferred_element_type=jnp.float32) + b4


if __name__ == "__main__":
    key = jax.random.PRNGKey(0)
    kp, k1, k2 = jax.random.split(key, 3)

    params = make_params(kp)                 # f32 master weights
    kparams = prepare_kernel_params(params)  # bf16 / padded, cast once

    # Two input vectors whose concat along dim=1 gives 370 features.
    batch = 2
    vector1 = jax.random.normal(k1, (batch, 185), jnp.float32)
    vector2 = jax.random.normal(k2, (batch, IN_DIM - 185), jnp.float32)

    logits = neural_network_forward(vector1, vector2, kparams)
    jax.block_until_ready(logits)

    ref = reference_forward(vector1, vector2, params)
    np.testing.assert_allclose(np.asarray(logits), np.asarray(ref),
                               rtol=1e-2, atol=1e-2)

    assert logits.shape == (batch, OUT_DIM)
    print("KERNEL_OK")
</pallas_src>

<mosaic_0001>
module attributes {stable_mosaic.version = 11 : i64} {
  func.func @mlp_kernel(%arg0: i32, %arg1: memref<8x384xbf16, #tpu.memory_space<vmem>>, %arg2: memref<384x512xbf16, #tpu.memory_space<vmem>>, %arg3: memref<1x512xf32, #tpu.memory_space<vmem>>, %arg4: memref<512x1024xbf16, #tpu.memory_space<vmem>>, %arg5: memref<1x1024xf32, #tpu.memory_space<vmem>>, %arg6: memref<1024x512xbf16, #tpu.memory_space<vmem>>, %arg7: memref<1x512xf32, #tpu.memory_space<vmem>>, %arg8: memref<512x128xbf16, #tpu.memory_space<vmem>>, %arg9: memref<1x128xf32, #tpu.memory_space<vmem>>, %arg10: memref<8x128xf32, #tpu.memory_space<vmem>>) attributes {dimension_semantics = [#tpu.dimension_semantics<parallel>], iteration_bounds = array<i64: 1>, scalar_prefetch = 0 : i64, scratch_operands = 0 : i64, tpu.core_type = #tpu.core_type<tc>, window_params = [{transform_indices = @transform_0, window_bounds = array<i64: 8, 384>}, {pipeline_mode = #tpu.pipeline_mode<synchronous>, transform_indices = @transform_1, window_bounds = array<i64: 384, 512>}, {pipeline_mode = #tpu.pipeline_mode<synchronous>, transform_indices = @transform_2, window_bounds = array<i64: 1, 512>}, {pipeline_mode = #tpu.pipeline_mode<synchronous>, transform_indices = @transform_3, window_bounds = array<i64: 512, 1024>}, {pipeline_mode = #tpu.pipeline_mode<synchronous>, transform_indices = @transform_4, window_bounds = array<i64: 1, 1024>}, {pipeline_mode = #tpu.pipeline_mode<synchronous>, transform_indices = @transform_5, window_bounds = array<i64: 1024, 512>}, {pipeline_mode = #tpu.pipeline_mode<synchronous>, transform_indices = @transform_6, window_bounds = array<i64: 1, 512>}, {pipeline_mode = #tpu.pipeline_mode<synchronous>, transform_indices = @transform_7, window_bounds = array<i64: 512, 128>}, {pipeline_mode = #tpu.pipeline_mode<synchronous>, transform_indices = @transform_8, window_bounds = array<i64: 1, 128>}, {transform_indices = @transform_9, window_bounds = array<i64: 8, 128>}]} {
    %c0 = arith.constant 0 : index
    %c0_0 = arith.constant 0 : index
    %0 = vector.load %arg1[%c0, %c0_0] : memref<8x384xbf16, #tpu.memory_space<vmem>>, vector<8x384xbf16>
    %c0_1 = arith.constant 0 : index
    %c0_2 = arith.constant 0 : index
    %1 = vector.load %arg2[%c0_1, %c0_2] : memref<384x512xbf16, #tpu.memory_space<vmem>>, vector<384x512xbf16>
    %cst = arith.constant dense<0.000000e+00> : vector<8x512xf32>
    %2 = tpu.matmul %0, %1, %cst {dimension_numbers = #tpu.dot_dimension_numbers<[1], [0], [0], [1], [0, 0, 1, 1], [], []>} : vector<8x384xbf16>, vector<384x512xbf16>, vector<8x512xf32> -> vector<8x512xf32>
    %c0_3 = arith.constant 0 : index
    %c0_4 = arith.constant 0 : index
    %3 = vector.load %arg3[%c0_3, %c0_4] : memref<1x512xf32, #tpu.memory_space<vmem>>, vector<1x512xf32>
    %4 = vector.broadcast %3 : vector<1x512xf32> to vector<8x512xf32>
    %5 = arith.addf %2, %4 : vector<8x512xf32>
    %cst_5 = arith.constant 0.000000e+00 : f32
    %6 = vector.broadcast %cst_5 : f32 to vector<8x512xf32>
    %7 = arith.maximumf %5, %6 : vector<8x512xf32>
    %8 = arith.truncf %7 : vector<8x512xf32> to vector<8x512xbf16>
    %c0_6 = arith.constant 0 : index
    %c0_7 = arith.constant 0 : index
    %9 = vector.load %arg4[%c0_6, %c0_7] : memref<512x1024xbf16, #tpu.memory_space<vmem>>, vector<512x1024xbf16>
    %cst_8 = arith.constant dense<0.000000e+00> : vector<8x1024xf32>
    %10 = tpu.matmul %8, %9, %cst_8 {dimension_numbers = #tpu.dot_dimension_numbers<[1], [0], [0], [1], [0, 0, 1, 1], [], []>} : vector<8x512xbf16>, vector<512x1024xbf16>, vector<8x1024xf32> -> vector<8x1024xf32>
    %c0_9 = arith.constant 0 : index
    %c0_10 = arith.constant 0 : index
    %11 = vector.load %arg5[%c0_9, %c0_10] : memref<1x1024xf32, #tpu.memory_space<vmem>>, vector<1x1024xf32>
    %12 = vector.broadcast %11 : vector<1x1024xf32> to vector<8x1024xf32>
    %13 = arith.addf %10, %12 : vector<8x1024xf32>
    %cst_11 = arith.constant 0.000000e+00 : f32
    %14 = vector.broadcast %cst_11 : f32 to vector<8x1024xf32>
    %15 = arith.maximumf %13, %14 : vector<8x1024xf32>
    %16 = arith.truncf %15 : vector<8x1024xf32> to vector<8x1024xbf16>
    %c0_12 = arith.constant 0 : index
    %c0_13 = arith.constant 0 : index
    %17 = vector.load %arg6[%c0_12, %c0_13] : memref<1024x512xbf16, #tpu.memory_space<vmem>>, vector<1024x512xbf16>
    %cst_14 = arith.constant dense<0.000000e+00> : vector<8x512xf32>
    %18 = tpu.matmul %16, %17, %cst_14 {dimension_numbers = #tpu.dot_dimension_numbers<[1], [0], [0], [1], [0, 0, 1, 1], [], []>} : vector<8x1024xbf16>, vector<1024x512xbf16>, vector<8x512xf32> -> vector<8x512xf32>
    %c0_15 = arith.constant 0 : index
    %c0_16 = arith.constant 0 : index
    %19 = vector.load %arg7[%c0_15, %c0_16] : memref<1x512xf32, #tpu.memory_space<vmem>>, vector<1x512xf32>
    %20 = vector.broadcast %19 : vector<1x512xf32> to vector<8x512xf32>
    %21 = arith.addf %18, %20 : vector<8x512xf32>
    %cst_17 = arith.constant 0.000000e+00 : f32
    %22 = vector.broadcast %cst_17 : f32 to vector<8x512xf32>
    %23 = arith.maximumf %21, %22 : vector<8x512xf32>
    %24 = arith.truncf %23 : vector<8x512xf32> to vector<8x512xbf16>
    %c0_18 = arith.constant 0 : index
    %c0_19 = arith.constant 0 : index
    %25 = vector.load %arg8[%c0_18, %c0_19] : memref<512x128xbf16, #tpu.memory_space<vmem>>, vector<512x128xbf16>
    %cst_20 = arith.constant dense<0.000000e+00> : vector<8x128xf32>
    %26 = tpu.matmul %24, %25, %cst_20 {dimension_numbers = #tpu.dot_dimension_numbers<[1], [0], [0], [1], [0, 0, 1, 1], [], []>} : vector<8x512xbf16>, vector<512x128xbf16>, vector<8x128xf32> -> vector<8x128xf32>
    %c0_21 = arith.constant 0 : index
    %c0_22 = arith.constant 0 : index
    %27 = vector.load %arg9[%c0_21, %c0_22] : memref<1x128xf32, #tpu.memory_space<vmem>>, vector<1x128xf32>
    %28 = vector.broadcast %27 : vector<1x128xf32> to vector<8x128xf32>
    %29 = arith.addf %26, %28 : vector<8x128xf32>
    %c0_23 = arith.constant 0 : index
    %c0_24 = arith.constant 0 : index
    %30 = vector.load %arg10[%c0_23, %c0_24] : memref<8x128xf32, #tpu.memory_space<vmem>>, vector<8x128xf32>
    tpu.vector_store %arg10[%c0_23, %c0_24], %29 {strides = array<i32>} : memref<8x128xf32, #tpu.memory_space<vmem>>, vector<8x128xf32>,
    return
  }
  func.func @transform_0(%arg0: i32) -> (i32, i32) {
    %c0_i32 = arith.constant 0 : i32
    %c0_i32_0 = arith.constant 0 : i32
    return %arg0, %c0_i32 : i32, i32
  }
  func.func @transform_1(%arg0: i32) -> (i32, i32) {
    %c0_i32 = arith.constant 0 : i32
    %c0_i32_0 = arith.constant 0 : i32
    %c0_i32_1 = arith.constant 0 : i32
    return %c0_i32, %c0_i32_0 : i32, i32
  }
  func.func @transform_2(%arg0: i32) -> (i32, i32) {
    %c0_i32 = arith.constant 0 : i32
    %c0_i32_0 = arith.constant 0 : i32
    %c0_i32_1 = arith.constant 0 : i32
    return %c0_i32, %c0_i32_0 : i32, i32
  }
  func.func @transform_3(%arg0: i32) -> (i32, i32) {
    %c0_i32 = arith.constant 0 : i32
    %c0_i32_0 = arith.constant 0 : i32
    %c0_i32_1 = arith.constant 0 : i32
    return %c0_i32, %c0_i32_0 : i32, i32
  }
  func.func @transform_4(%arg0: i32) -> (i32, i32) {
    %c0_i32 = arith.constant 0 : i32
    %c0_i32_0 = arith.constant 0 : i32
    %c0_i32_1 = arith.constant 0 : i32
    return %c0_i32, %c0_i32_0 : i32, i32
  }
  func.func @transform_5(%arg0: i32) -> (i32, i32) {
    %c0_i32 = arith.constant 0 : i32
    %c0_i32_0 = arith.constant 0 : i32
    %c0_i32_1 = arith.constant 0 : i32
    return %c0_i32, %c0_i32_0 : i32, i32
  }
  func.func @transform_6(%arg0: i32) -> (i32, i32) {
    %c0_i32 = arith.constant 0 : i32
    %c0_i32_0 = arith.constant 0 : i32
    %c0_i32_1 = arith.constant 0 : i32
    return %c0_i32, %c0_i32_0 : i32, i32
  }
  func.func @transform_7(%arg0: i32) -> (i32, i32) {
    %c0_i32 = arith.constant 0 : i32
    %c0_i32_0 = arith.constant 0 : i32
    %c0_i32_1 = arith.constant 0 : i32
    return %c0_i32, %c0_i32_0 : i32, i32
  }
  func.func @transform_8(%arg0: i32) -> (i32, i32) {
    %c0_i32 = arith.constant 0 : i32
    %c0_i32_0 = arith.constant 0 : i32
    %c0_i32_1 = arith.constant 0 : i32
    return %c0_i32, %c0_i32_0 : i32, i32
  }
  func.func @transform_9(%arg0: i32) -> (i32, i32) {
    %c0_i32 = arith.constant 0 : i32
    %c0_i32_0 = arith.constant 0 : i32
    return %arg0, %c0_i32 : i32, i32
  }
}

</mosaic_0001>

<llo_original>
// kernel: tpu_custom_call.1
$region0: #{tpu_custom_call.1}
  #allocation0 [shape = 'u32[]', space=smem, size = 0x4, offset = 0x4, fixed_abs, tag = 'smem constant byte address 0x4 - core index']
  #allocation1 [shape = 'u32[144,128]{1,0:T(1,128)}', space=vmem, size = 0x12000, scoped, tag = 'internal scratch']
  %s0 = inlined_call_operand.hbm [shape: bf16[8,384], index: 0, kind: input, shape index: {}]
  %s1 = inlined_call_operand.hbm [shape: bf16[384,512], index: 1, kind: input, shape index: {}]
  %s2 = inlined_call_operand.hbm [shape: f32[1,512], index: 2, kind: input, shape index: {}]
  %s3 = inlined_call_operand.hbm [shape: bf16[512,1024], index: 3, kind: input, shape index: {}]
  %s4 = inlined_call_operand.hbm [shape: f32[1,1024], index: 4, kind: input, shape index: {}]
  %s5 = inlined_call_operand.hbm [shape: bf16[1024,512], index: 5, kind: input, shape index: {}]
  %s6 = inlined_call_operand.vmem [shape: f32[1,512], index: 6, kind: input, shape index: {}]
  %s7 = inlined_call_operand.hbm [shape: bf16[512,128], index: 7, kind: input, shape index: {}]
  %s8 = inlined_call_operand.vmem [shape: f32[1,128], index: 8, kind: input, shape index: {}]
  %s9 = inlined_call_operand.hbm [shape: f32[8,128], index: 9, kind: output, shape index: {}]
  %s10 = sld [smem:[#allocation0]]
  $region74: #{tpu_custom_call.1} parent=0
    _
  %s12 = ssub.s32 1, %s10
  %s13 = scalar_select 0, %s12, %s10
  $region1: #{tpu_custom_call.1} parent=0
    #allocation2 [shape = 'u8[6144]{0}', space=vmem, size = 0x1800, scoped, tag = 'input window, operand 0, single buffered']
    #allocation3 [shape = 's32[1]{0}', space=sflag, size = 0x4, scoped, tag = 'scoped memory for tpu_custom_call.1']
    #allocation4 [shape = 's32[1]{0}', space=sflag, size = 0x4, scoped, tag = 'scoped memory for tpu_custom_call.1']
    #allocation5 [shape = 'u8[393216]{0}', space=vmem, size = 0x60000, scoped, tag = 'input window, operand 1, single buffered']
    #allocation6 [shape = 's32[1]{0}', space=sflag, size = 0x4, scoped, tag = 'scoped memory for tpu_custom_call.1']
    #allocation7 [shape = 'u8[2048]{0}', space=vmem, size = 0x800, scoped, tag = 'input window, operand 2, single buffered']
    #allocation8 [shape = 'u8[1048576]{0}', space=vmem, size = 0x100000, scoped, tag = 'input window, operand 3, single buffered']
    #allocation9 [shape = 's32[1]{0}', space=sflag, size = 0x4, scoped, tag = 'scoped memory for tpu_custom_call.1']
    #allocation10 [shape = 'u8[4096]{0}', space=vmem, size = 0x1000, scoped, tag = 'input window, operand 4, single buffered']
    #allocation11 [shape = 'u8[1048576]{0}', space=vmem, size = 0x100000, scoped, tag = 'input window, operand 5, single buffered']
    #allocation12 [shape = 's32[1]{0}', space=sflag, size = 0x4, scoped, tag = 'scoped memory for tpu_custom_call.1']
    #allocation13 [shape = 'u8[131072]{0}', space=vmem, size = 0x20000, scoped, tag = 'input window, operand 7, single buffered']
    #allocation14 [shape = 'u8[4096]{0}', space=vmem, size = 0x1000, scoped, tag = 'output window, operand 0, single buffered']
    %14 = vsyncpa [#allocation3], 0
    %15 = vsyncpa [#allocation6], 0
    %16 = vsyncpa [#allocation9], 0
    %17 = vsyncpa [#allocation12], 0
    %18 = vsyncpa [#allocation4], 0
    // Predicated region
    $region2: #{tpu_custom_call.1} parent=1 // pred_check
      _
    $region3: #{tpu_custom_call.1} parent=1 // pred_check_branch
      %20 = sbr.rel (0) target = $region5
    $region4: #{tpu_custom_call.1} parent=1 // pred_region
      %s22 = ssub.s32 192, 192
      %23 = vsyncadd [#allocation3], %s22
      %s25 = sshll.u32 [#allocation2], 4
      %s26 = int_to_ptr.vmem [resolvable:$true] %s25
      %28 = dma.hbm_to_vmem [thread:$0]  %s0, 192, %s26, [#allocation3]
    $region5: #{tpu_custom_call.1} parent=1 // pred_fallthru
      _
    // Predicated region
    $region6: #{tpu_custom_call.1} parent=1 // pred_check
      _
    $region7: #{tpu_custom_call.1} parent=1 // pred_check_branch
      %30 = sbr.rel (0) target = $region9
    $region8: #{tpu_custom_call.1} parent=1 // pred_region
      %s32 = ssub.s32 12288, 12288
      %33 = vsyncadd [#allocation6], %s32
      %s34 = sshll.u32 [#allocation5], 4
      %s35 = int_to_ptr.vmem [resolvable:$true] %s34
      %40 = dma.hbm_to_vmem [thread:$0]  %s1, 12288, %s35, [#allocation6], 256, 256, 16
    $region9: #{tpu_custom_call.1} parent=1 // pred_fallthru
      _
    // Predicated region
    $region10: #{tpu_custom_call.1} parent=1 // pred_check
      _
    $region11: #{tpu_custom_call.1} parent=1 // pred_check_branch
      %42 = sbr.rel (0) target = $region13
    $region12: #{tpu_custom_call.1} parent=1 // pred_region
      %s44 = ssub.s32 64, 64
      %45 = vsyncadd [#allocation6], %s44
      %s47 = sshll.u32 [#allocation7], 4
      %s48 = int_to_ptr.vmem [resolvable:$true] %s47
      %50 = dma.hbm_to_vmem [thread:$0]  %s2, 64, %s48, [#allocation6]
    $region13: #{tpu_custom_call.1} parent=1 // pred_fallthru
      _
    // Predicated region
    $region14: #{tpu_custom_call.1} parent=1 // pred_check
      _
    $region15: #{tpu_custom_call.1} parent=1 // pred_check_branch
      %52 = sbr.rel (0) target = $region17
    $region16: #{tpu_custom_call.1} parent=1 // pred_region
      %s54 = ssub.s32 32768, 32768
      %55 = vsyncadd [#allocation9], %s54
      %s56 = sshll.u32 [#allocation8], 4
      %s57 = int_to_ptr.vmem [resolvable:$true] %s56
      %62 = dma.hbm_to_vmem [thread:$0]  %s3, 32768, %s57, [#allocation9], 512, 512, 32
    $region17: #{tpu_custom_call.1} parent=1 // pred_fallthru
      _
    // Predicated region
    $region18: #{tpu_custom_call.1} parent=1 // pred_check
      _
    $region19: #{tpu_custom_call.1} parent=1 // pred_check_branch
      %64 = sbr.rel (0) target = $region21
    $region20: #{tpu_custom_call.1} parent=1 // pred_region
      %s66 = ssub.s32 128, 128
      %67 = vsyncadd [#allocation9], %s66
      %s69 = sshll.u32 [#allocation10], 4
      %s70 = int_to_ptr.vmem [resolvable:$true] %s69
      %72 = dma.hbm_to_vmem [thread:$0]  %s4, 128, %s70, [#allocation9]
    $region21: #{tpu_custom_call.1} parent=1 // pred_fallthru
      _
    // Predicated region
    $region22: #{tpu_custom_call.1} parent=1 // pred_check
      _
    $region23: #{tpu_custom_call.1} parent=1 // pred_check_branch
      %74 = sbr.rel (0) target = $region25
    $region24: #{tpu_custom_call.1} parent=1 // pred_region
      %s76 = ssub.s32 32768, 32768
      %77 = vsyncadd [#allocation12], %s76
      %s78 = sshll.u32 [#allocation11], 4
      %s79 = int_to_ptr.vmem [resolvable:$true] %s78
      %84 = dma.hbm_to_vmem [thread:$0]  %s5, 32768, %s79, [#allocation12], 256, 256, 16
    $region25: #{tpu_custom_call.1} parent=1 // pred_fallthru
      _
    // Predicated region
    $region26: #{tpu_custom_call.1} parent=1 // pred_check
      _
    $region27: #{tpu_custom_call.1} parent=1 // pred_check_branch
      %86 = sbr.rel (0) target = $region29
    $region28: #{tpu_custom_call.1} parent=1 // pred_region
      _
    $region29: #{tpu_custom_call.1} parent=1 // pred_fallthru
      _
    // Predicated region
    $region30: #{tpu_custom_call.1} parent=1 // pred_check
      _
    $region31: #{tpu_custom_call.1} parent=1 // pred_check_branch
      %88 = sbr.rel (0) target = $region33
    $region32: #{tpu_custom_call.1} parent=1 // pred_region
      %s90 = ssub.s32 4096, 4096
      %91 = vsyncadd [#allocation12], %s90
      %s92 = sshll.u32 [#allocation13], 4
      %s93 = int_to_ptr.vmem [resolvable:$true] %s92
      %98 = dma.hbm_to_vmem [thread:$0]  %s7, 4096, %s93, [#allocation12], 64, 64, 4
    $region33: #{tpu_custom_call.1} parent=1 // pred_fallthru
      _
    // Predicated region
    $region34: #{tpu_custom_call.1} parent=1 // pred_check
      _
    $region35: #{tpu_custom_call.1} parent=1 // pred_check_branch
      %100 = sbr.rel (0) target = $region37
    $region36: #{tpu_custom_call.1} parent=1 // pred_region
      _
    $region37: #{tpu_custom_call.1} parent=1 // pred_fallthru
      _
    // Predicated region
    $region38: #{tpu_custom_call.1} parent=1 // pred_check
      _
    $region39: #{tpu_custom_call.1} parent=1 // pred_check_branch
      %102 = sbr.rel (0) target = $region41
    $region40: #{tpu_custom_call.1} parent=1 // pred_region
      %103 = dma.done [#allocation3], 192
    $region41: #{tpu_custom_call.1} parent=1 // pred_fallthru
      _
    // Predicated region
    $region42: #{tpu_custom_call.1} parent=1 // pred_check
      _
    $region43: #{tpu_custom_call.1} parent=1 // pred_check_branch
      %105 = sbr.rel (0) target = $region45
    $region44: #{tpu_custom_call.1} parent=1 // pred_region
      %106 = dma.done [#allocation6], 12288
    $region45: #{tpu_custom_call.1} parent=1 // pred_fallthru
      _
    // Predicated region
    $region46: #{tpu_custom_call.1} parent=1 // pred_check
      _
    $region47: #{tpu_custom_call.1} parent=1 // pred_check_branch
      %108 = sbr.rel (0) target = $region49
    $region48: #{tpu_custom_call.1} parent=1 // pred_region
      %109 = dma.done [#allocation6], 64
    $region49: #{tpu_custom_call.1} parent=1 // pred_fallthru
      _
    // Predicated region
    $region50: #{tpu_custom_call.1} parent=1 // pred_check
      _
    $region51: #{tpu_custom_call.1} parent=1 // pred_check_branch
      %111 = sbr.rel (0) target = $region53
    $region52: #{tpu_custom_call.1} parent=1 // pred_region
      %112 = dma.done [#allocation9], 32768
    $region53: #{tpu_custom_call.1} parent=1 // pred_fallthru
      _
    // Predicated region
    $region54: #{tpu_custom_call.1} parent=1 // pred_check
      _
    $region55: #{tpu_custom_call.1} parent=1 // pred_check_branch
      %114 = sbr.rel (0) target = $region57
    $region56: #{tpu_custom_call.1} parent=1 // pred_region
      %115 = dma.done [#allocation9], 128
    $region57: #{tpu_custom_call.1} parent=1 // pred_fallthru
      _
    // Predicated region
    $region58: #{tpu_custom_call.1} parent=1 // pred_check
      _
    $region59: #{tpu_custom_call.1} parent=1 // pred_check_branch
      %117 = sbr.rel (0) target = $region61
    $region60: #{tpu_custom_call.1} parent=1 // pred_region
      %118 = dma.done [#allocation12], 32768
    $region61: #{tpu_custom_call.1} parent=1 // pred_fallthru
      _
    // Predicated region
    $region62: #{tpu_custom_call.1} parent=1 // pred_check
      _
    $region63: #{tpu_custom_call.1} parent=1 // pred_check_branch
      %120 = sbr.rel (0) target = $region65
    $region64: #{tpu_custom_call.1} parent=1 // pred_region
      %121 = dma.done [#allocation12], 4096
    $region65: #{tpu_custom_call.1} parent=1 // pred_fallthru
      _
    %v123 = vld [vmem:[#allocation2] sm:$0xff]
    %v124 = vld [vmem:[#allocation2 + $0x8] sm:$0xf]
    %v125 = vld [vmem:[#allocation5] sm:$0xff]
    %v126 = vld [vmem:[#allocation5 + $0x8] sm:$0xff]
    %v127 = vld [vmem:[#allocation5 + $0x10] sm:$0xff]
    %v128 = vld [vmem:[#allocation5 + $0x18] sm:$0xff]
    %v129 = vld [vmem:[#allocation5 + $0x20] sm:$0xff]
    %v130 = vld [vmem:[#allocation5 + $0x28] sm:$0xff]
    %v131 = vld [vmem:[#allocation5 + $0x30] sm:$0xff]
    %v132 = vld [vmem:[#allocation5 + $0x38] sm:$0xff]
    %v133 = vld [vmem:[#allocation5 + $0x40] sm:$0xff]
    %v134 = vld [vmem:[#allocation5 + $0x48] sm:$0xff]
    %v135 = vld [vmem:[#allocation5 + $0x50] sm:$0xff]
    %v136 = vld [vmem:[#allocation5 + $0x58] sm:$0xff]
    %v137 = vld [vmem:[#allocation5 + $0x60] sm:$0xff]
    %v138 = vld [vmem:[#allocation5 + $0x68] sm:$0xff]
    %v139 = vld [vmem:[#allocation5 + $0x70] sm:$0xff]
    %v140 = vld [vmem:[#allocation5 + $0x78] sm:$0xff]
    %v141 = vld [vmem:[#allocation5 + $0x80] sm:$0xff]
    %v142 = vld [vmem:[#allocation5 + $0x88] sm:$0xff]
    %v143 = vld [vmem:[#allocation5 + $0x90] sm:$0xff]
    %v144 = vld [vmem:[#allocation5 + $0x98] sm:$0xff]
    %v145 = vld [vmem:[#allocation5 + $0xa0] sm:$0xff]
    %v146 = vld [vmem:[#allocation5 + $0xa8] sm:$0xff]
    %v147 = vld [vmem:[#allocation5 + $0xb0] sm:$0xff]
    %v148 = vld [vmem:[#allocation5 + $0xb8] sm:$0xff]
    %v149 = vld [vmem:[#allocation5 + $0xc0] sm:$0xff]
    %v150 = vld [vmem:[#allocation5 + $0xc8] sm:$0xff]
    %v151 = vld [vmem:[#allocation5 + $0xd0] sm:$0xff]
    %v152 = vld [vmem:[#allocation5 + $0xd8] sm:$0xff]
    %v153 = vld [vmem:[#allocation5 + $0xe0] sm:$0xff]
    %v154 = vld [vmem:[#allocation5 + $0xe8] sm:$0xff]
    %v155 = vld [vmem:[#allocation5 + $0xf0] sm:$0xff]
    %v156 = vld [vmem:[#allocation5 + $0xf8] sm:$0xff]
    %v157 = vld [vmem:[#allocation5 + $0x100] sm:$0xff]
    %v158 = vld [vmem:[#allocation5 + $0x108] sm:$0xff]
    %v159 = vld [vmem:[#allocation5 + $0x110] sm:$0xff]
    %v160 = vld [vmem:[#allocation5 + $0x118] sm:$0xff]
    %v161 = vld [vmem:[#allocation5 + $0x120] sm:$0xff]
    %v162 = vld [vmem:[#allocation5 + $0x128] sm:$0xff]
    %v163 = vld [vmem:[#allocation5 + $0x130] sm:$0xff]
    %v164 = vld [vmem:[#allocation5 + $0x138] sm:$0xff]
    %v165 = vld [vmem:[#allocation5 + $0x140] sm:$0xff]
    %v166 = vld [vmem:[#allocation5 + $0x148] sm:$0xff]
    %v167 = vld [vmem:[#allocation5 + $0x150] sm:$0xff]
    %v168 = vld [vmem:[#allocation5 + $0x158] sm:$0xff]
    %v169 = vld [vmem:[#allocation5 + $0x160] sm:$0xff]
    %v170 = vld [vmem:[#allocation5 + $0x168] sm:$0xff]
    %v171 = vld [vmem:[#allocation5 + $0x170] sm:$0xff]
    %v172 = vld [vmem:[#allocation5 + $0x178] sm:$0xff]
    %v173 = vld [vmem:[#allocation5 + $0x180] sm:$0xff]
    %v174 = vld [vmem:[#allocation5 + $0x188] sm:$0xff]
    %v175 = vld [vmem:[#allocation5 + $0x190] sm:$0xff]
    %v176 = vld [vmem:[#allocation5 + $0x198] sm:$0xff]
    %v177 = vld [vmem:[#allocation5 + $0x1a0] sm:$0xff]
    %v178 = vld [vmem:[#allocation5 + $0x1a8] sm:$0xff]
    %v179 = vld [vmem:[#allocation5 + $0x1b0] sm:$0xff]
    %v180 = vld [vmem:[#allocation5 + $0x1b8] sm:$0xff]
    %v181 = vld [vmem:[#allocation5 + $0x1c0] sm:$0xff]
    %v182 = vld [vmem:[#allocation5 + $0x1c8] sm:$0xff]
    %v183 = vld [vmem:[#allocation5 + $0x1d0] sm:$0xff]
    %v184 = vld [vmem:[#allocation5 + $0x1d8] sm:$0xff]
    %v185 = vld [vmem:[#allocation5 + $0x1e0] sm:$0xff]
    %v186 = vld [vmem:[#allocation5 + $0x1e8] sm:$0xff]
    %v187 = vld [vmem:[#allocation5 + $0x1f0] sm:$0xff]
    %v188 = vld [vmem:[#allocation5 + $0x1f8] sm:$0xff]
    %v189 = vld [vmem:[#allocation5 + $0x200] sm:$0xff]
    %v190 = vld [vmem:[#allocation5 + $0x208] sm:$0xff]
    %v191 = vld [vmem:[#allocation5 + $0x210] sm:$0xff]
    %v192 = vld [vmem:[#allocation5 + $0x218] sm:$0xff]
    %v193 = vld [vmem:[#allocation5 + $0x220] sm:$0xff]
    %v194 = vld [vmem:[#allocation5 + $0x228] sm:$0xff]
    %v195 = vld [vmem:[#allocation5 + $0x230] sm:$0xff]
    %v196 = vld [vmem:[#allocation5 + $0x238] sm:$0xff]
    %v197 = vld [vmem:[#allocation5 + $0x240] sm:$0xff]
    %v198 = vld [vmem:[#allocation5 + $0x248] sm:$0xff]
    %v199 = vld [vmem:[#allocation5 + $0x250] sm:$0xff]
    %v200 = vld [vmem:[#allocation5 + $0x258] sm:$0xff]
    %v201 = vld [vmem:[#allocation5 + $0x260] sm:$0xff]
    %v202 = vld [vmem:[#allocation5 + $0x268] sm:$0xff]
    %v203 = vld [vmem:[#allocation5 + $0x270] sm:$0xff]
    %v204 = vld [vmem:[#allocation5 + $0x278] sm:$0xff]
    %v205 = vld [vmem:[#allocation5 + $0x280] sm:$0xff]
    %v206 = vld [vmem:[#allocation5 + $0x288] sm:$0xff]
    %v207 = vld [vmem:[#allocation5 + $0x290] sm:$0xff]
    %v208 = vld [vmem:[#allocation5 + $0x298] sm:$0xff]
    %v209 = vld [vmem:[#allocation5 + $0x2a0] sm:$0xff]
    %v210 = vld [vmem:[#allocation5 + $0x2a8] sm:$0xff]
    %v211 = vld [vmem:[#allocation5 + $0x2b0] sm:$0xff]
    %v212 = vld [vmem:[#allocation5 + $0x2b8] sm:$0xff]
    %v213 = vld [vmem:[#allocation5 + $0x2c0] sm:$0xff]
    %v214 = vld [vmem:[#allocation5 + $0x2c8] sm:$0xff]
    %v215 = vld [vmem:[#allocation5 + $0x2d0] sm:$0xff]
    %v216 = vld [vmem:[#allocation5 + $0x2d8] sm:$0xff]
    %v217 = vld [vmem:[#allocation5 + $0x2e0] sm:$0xff]
    %v218 = vld [vmem:[#allocation5 + $0x2e8] sm:$0xff]
    %v219 = vld [vmem:[#allocation5 + $0x2f0] sm:$0xff]
    %v220 = vld [vmem:[#allocation5 + $0x2f8] sm:$0xff]
    %v221 = vld [vmem:[#allocation7] sm:$0xf]
    %v223 = vlaneseq
    %v224 = vshrl.u32 %v223, 7
    %v225 = vsub.s32 0, %v224
    %v226 = vrot.slane %v221, %v225
    %v227 = vlaneseq
    %v228 = vshrl.u32 %v227, 7
    %v229 = vsub.s32 1, %v228
    %v230 = vrot.slane %v221, %v229
    %v231 = vlaneseq
    %v232 = vshrl.u32 %v231, 7
    %v233 = vsub.s32 2, %v232
    %v234 = vrot.slane %v221, %v233
    %v235 = vlaneseq
    %v236 = vshrl.u32 %v235, 7
    %v237 = vsub.s32 3, %v236
    %v238 = vrot.slane %v221, %v237
    %v245 = vunpack.c.l.b16 %v123
    %v246 = vunpack.c.h.b16 %v123
    %v247 = vunpack.c.l.b16 %v124
    %v248 = vpack.c.b16 %v245, %v245
    %v249 = vpack.c.b16 %v246, %v246
    %v250 = vpack.c.b16 %v247, %v247
    %v350 = vunpack.c.l.b16 %v125
    %v351 = vunpack.c.h.b16 %v125
    %v352 = vunpack.c.l.b16 %v126
    %v353 = vunpack.c.h.b16 %v126
    %v354 = vunpack.c.l.b16 %v127
    %v355 = vunpack.c.h.b16 %v127
    %v356 = vunpack.c.l.b16 %v128
    %v357 = vunpack.c.h.b16 %v128
    %v358 = vunpack.c.l.b16 %v129
    %v359 = vunpack.c.h.b16 %v129
    %v360 = vunpack.c.l.b16 %v130
    %v361 = vunpack.c.h.b16 %v130
    %v362 = vunpack.c.l.b16 %v131
    %v363 = vunpack.c.h.b16 %v131
    %v364 = vunpack.c.l.b16 %v132
    %v365 = vunpack.c.h.b16 %v132
    %v366 = vunpack.c.l.b16 %v133
    %v367 = vunpack.c.h.b16 %v133
    %v368 = vunpack.c.l.b16 %v134
    %v369 = vunpack.c.h.b16 %v134
    %v370 = vunpack.c.l.b16 %v135
    %v371 = vunpack.c.h.b16 %v135
    %v372 = vunpack.c.l.b16 %v136
    %v373 = vunpack.c.h.b16 %v136
    %v374 = vunpack.c.l.b16 %v137
    %v375 = vunpack.c.h.b16 %v137
    %v376 = vunpack.c.l.b16 %v138
    %v377 = vunpack.c.h.b16 %v138
    %v378 = vunpack.c.l.b16 %v139
    %v379 = vunpack.c.h.b16 %v139
    %v380 = vunpack.c.l.b16 %v140
    %v381 = vunpack.c.h.b16 %v140
    %v382 = vunpack.c.l.b16 %v141
    %v383 = vunpack.c.h.b16 %v141
    %v384 = vunpack.c.l.b16 %v142
    %v385 = vunpack.c.h.b16 %v142
    %v386 = vunpack.c.l.b16 %v143
    %v387 = vunpack.c.h.b16 %v143
    %v388 = vunpack.c.l.b16 %v144
    %v389 = vunpack.c.h.b16 %v144
    %v390 = vunpack.c.l.b16 %v145
    %v391 = vunpack.c.h.b16 %v145
    %v392 = vunpack.c.l.b16 %v146
    %v393 = vunpack.c.h.b16 %v146
    %v394 = vunpack.c.l.b16 %v147
    %v395 = vunpack.c.h.b16 %v147
    %v396 = vunpack.c.l.b16 %v148
    %v397 = vunpack.c.h.b16 %v148
    %v398 = vunpack.c.l.b16 %v149
    %v399 = vunpack.c.h.b16 %v149
    %v400 = vunpack.c.l.b16 %v150
    %v401 = vunpack.c.h.b16 %v150
    %v402 = vunpack.c.l.b16 %v151
    %v403 = vunpack.c.h.b16 %v151
    %v404 = vunpack.c.l.b16 %v152
    %v405 = vunpack.c.h.b16 %v152
    %v406 = vunpack.c.l.b16 %v153
    %v407 = vunpack.c.h.b16 %v153
    %v408 = vunpack.c.l.b16 %v154
    %v409 = vunpack.c.h.b16 %v154
    %v410 = vunpack.c.l.b16 %v155
    %v411 = vunpack.c.h.b16 %v155
    %v412 = vunpack.c.l.b16 %v156
    %v413 = vunpack.c.h.b16 %v156
    %v414 = vunpack.c.l.b16 %v157
    %v415 = vunpack.c.h.b16 %v157
    %v416 = vunpack.c.l.b16 %v158
    %v417 = vunpack.c.h.b16 %v158
    %v418 = vunpack.c.l.b16 %v159
    %v419 = vunpack.c.h.b16 %v159
    %v420 = vunpack.c.l.b16 %v160
    %v421 = vunpack.c.h.b16 %v160
    %v422 = vunpack.c.l.b16 %v161
    %v423 = vunpack.c.h.b16 %v161
    %v424 = vunpack.c.l.b16 %v162
    %v425 = vunpack.c.h.b16 %v162
    %v426 = vunpack.c.l.b16 %v163
    %v427 = vunpack.c.h.b16 %v163
    %v428 = vunpack.c.l.b16 %v164
    %v429 = vunpack.c.h.b16 %v164
    %v430 = vunpack.c.l.b16 %v165
    %v431 = vunpack.c.h.b16 %v165
    %v432 = vunpack.c.l.b16 %v166
    %v433 = vunpack.c.h.b16 %v166
    %v434 = vunpack.c.l.b16 %v167
    %v435 = vunpack.c.h.b16 %v167
    %v436 = vunpack.c.l.b16 %v168
    %v437 = vunpack.c.h.b16 %v168
    %v438 = vunpack.c.l.b16 %v169
    %v439 = vunpack.c.h.b16 %v169
    %v440 = vunpack.c.l.b16 %v170
    %v441 = vunpack.c.h.b16 %v170
    %v442 = vunpack.c.l.b16 %v171
    %v443 = vunpack.c.h.b16 %v171
    %v444 = vunpack.c.l.b16 %v172
    %v445 = vunpack.c.h.b16 %v172
    %v446 = vunpack.c.l.b16 %v173
    %v447 = vunpack.c.h.b16 %v173
    %v448 = vunpack.c.l.b16 %v174
    %v449 = vunpack.c.h.b16 %v174
    %v450 = vunpack.c.l.b16 %v175
    %v451 = vunpack.c.h.b16 %v175
    %v452 = vunpack.c.l.b16 %v176
    %v453 = vunpack.c.h.b16 %v176
    %v454 = vunpack.c.l.b16 %v177
    %v455 = vunpack.c.h.b16 %v177
    %v456 = vunpack.c.l.b16 %v178
    %v457 = vunpack.c.h.b16 %v178
    %v458 = vunpack.c.l.b16 %v179
    %v459 = vunpack.c.h.b16 %v179
    %v460 = vunpack.c.l.b16 %v180
    %v461 = vunpack.c.h.b16 %v180
    %v462 = vunpack.c.l.b16 %v181
    %v463 = vunpack.c.h.b16 %v181
    %v464 = vunpack.c.l.b16 %v182
    %v465 = vunpack.c.h.b16 %v182
    %v466 = vunpack.c.l.b16 %v183
    %v467 = vunpack.c.h.b16 %v183
    %v468 = vunpack.c.l.b16 %v184
    %v469 = vunpack.c.h.b16 %v184
    %v470 = vunpack.c.l.b16 %v185
    %v471 = vunpack.c.h.b16 %v185
    %v472 = vunpack.c.l.b16 %v186
    %v473 = vunpack.c.h.b16 %v186
    %v474 = vunpack.c.l.b16 %v187
    %v475 = vunpack.c.h.b16 %v187
    %v476 = vunpack.c.l.b16 %v188
    %v477 = vunpack.c.h.b16 %v188
    %v478 = vunpack.c.l.b16 %v189
    %v479 = vunpack.c.h.b16 %v189
    %v480 = vunpack.c.l.b16 %v190
    %v481 = vunpack.c.h.b16 %v190
    %v482 = vunpack.c.l.b16 %v191
    %v483 = vunpack.c.h.b16 %v191
    %v484 = vunpack.c.l.b16 %v192
    %v485 = vunpack.c.h.b16 %v192
    %v486 = vunpack.c.l.b16 %v193
    %v487 = vunpack.c.h.b16 %v193
    %v488 = vunpack.c.l.b16 %v194
    %v489 = vunpack.c.h.b16 %v194
    %v490 = vunpack.c.l.b16 %v195
    %v491 = vunpack.c.h.b16 %v195
    %v492 = vunpack.c.l.b16 %v196
    %v493 = vunpack.c.h.b16 %v196
    %v494 = vunpack.c.l.b16 %v197
    %v495 = vunpack.c.h.b16 %v197
    %v496 = vunpack.c.l.b16 %v198
    %v497 = vunpack.c.h.b16 %v198
    %v498 = vunpack.c.l.b16 %v199
    %v499 = vunpack.c.h.b16 %v199
    %v500 = vunpack.c.l.b16 %v200
    %v501 = vunpack.c.h.b16 %v200
    %v502 = vunpack.c.l.b16 %v201
    %v503 = vunpack.c.h.b16 %v201
    %v504 = vunpack.c.l.b16 %v202
    %v505 = vunpack.c.h.b16 %v202
    %v506 = vunpack.c.l.b16 %v203
    %v507 = vunpack.c.h.b16 %v203
    %v508 = vunpack.c.l.b16 %v204
    %v509 = vunpack.c.h.b16 %v204
    %v510 = vunpack.c.l.b16 %v205
    %v511 = vunpack.c.h.b16 %v205
    %v512 = vunpack.c.l.b16 %v206
    %v513 = vunpack.c.h.b16 %v206
    %v514 = vunpack.c.l.b16 %v207
    %v515 = vunpack.c.h.b16 %v207
    %v516 = vunpack.c.l.b16 %v208
    %v517 = vunpack.c.h.b16 %v208
    %v518 = vunpack.c.l.b16 %v209
    %v519 = vunpack.c.h.b16 %v209
    %v520 = vunpack.c.l.b16 %v210
    %v521 = vunpack.c.h.b16 %v210
    %v522 = vunpack.c.l.b16 %v211
    %v523 = vunpack.c.h.b16 %v211
    %v524 = vunpack.c.l.b16 %v212
    %v525 = vunpack.c.h.b16 %v212
    %v526 = vunpack.c.l.b16 %v213
    %v527 = vunpack.c.h.b16 %v213
    %v528 = vunpack.c.l.b16 %v214
    %v529 = vunpack.c.h.b16 %v214
    %v530 = vunpack.c.l.b16 %v215
    %v531 = vunpack.c.h.b16 %v215
    %v532 = vunpack.c.l.b16 %v216
    %v533 = vunpack.c.h.b16 %v216
    %v534 = vunpack.c.l.b16 %v217
    %v535 = vunpack.c.h.b16 %v217
    %v536 = vunpack.c.l.b16 %v218
    %v537 = vunpack.c.h.b16 %v218
    %v538 = vunpack.c.l.b16 %v219
    %v539 = vunpack.c.h.b16 %v219
    %v540 = vunpack.c.l.b16 %v220
    %v541 = vunpack.c.h.b16 %v220
    %v542 = vpack.c.b16 %v354, %v350
    %v543 = vpack.c.b16 %v355, %v351
    %v544 = vpack.c.b16 %v356, %v352
    %v545 = vpack.c.b16 %v357, %v353
    %v546 = vpack.c.b16 %v362, %v358
    %v547 = vpack.c.b16 %v363, %v359
    %v548 = vpack.c.b16 %v364, %v360
    %v549 = vpack.c.b16 %v365, %v361
    %v550 = vpack.c.b16 %v370, %v366
    %v551 = vpack.c.b16 %v371, %v367
    %v552 = vpack.c.b16 %v372, %v368
    %v553 = vpack.c.b16 %v373, %v369
    %v554 = vpack.c.b16 %v378, %v374
    %v555 = vpack.c.b16 %v379, %v375
    %v556 = vpack.c.b16 %v380, %v376
    %v557 = vpack.c.b16 %v381, %v377
    %v558 = vpack.c.b16 %v386, %v382
    %v559 = vpack.c.b16 %v387, %v383
    %v560 = vpack.c.b16 %v388, %v384
    %v561 = vpack.c.b16 %v389, %v385
    %v562 = vpack.c.b16 %v394, %v390
    %v563 = vpack.c.b16 %v395, %v391
    %v564 = vpack.c.b16 %v396, %v392
    %v565 = vpack.c.b16 %v397, %v393
    %v566 = vpack.c.b16 %v402, %v398
    %v567 = vpack.c.b16 %v403, %v399
    %v568 = vpack.c.b16 %v404, %v400
    %v569 = vpack.c.b16 %v405, %v401
    %v570 = vpack.c.b16 %v410, %v406
    %v571 = vpack.c.b16 %v411, %v407
    %v572 = vpack.c.b16 %v412, %v408
    %v573 = vpack.c.b16 %v413, %v409
    %v574 = vpack.c.b16 %v418, %v414
    %v575 = vpack.c.b16 %v419, %v415
    %v576 = vpack.c.b16 %v420, %v416
    %v577 = vpack.c.b16 %v421, %v417
    %v578 = vpack.c.b16 %v426, %v422
    %v579 = vpack.c.b16 %v427, %v423
    %v580 = vpack.c.b16 %v428, %v424
    %v581 = vpack.c.b16 %v429, %v425
    %v582 = vpack.c.b16 %v434, %v430
    %v583 = vpack.c.b16 %v435, %v431
    %v584 = vpack.c.b16 %v436, %v432
    %v585 = vpack.c.b16 %v437, %v433
    %v586 = vpack.c.b16 %v442, %v438
    %v587 = vpack.c.b16 %v443, %v439
    %v588 = vpack.c.b16 %v444, %v440
    %v589 = vpack.c.b16 %v445, %v441
    %v590 = vpack.c.b16 %v450, %v446
    %v591 = vpack.c.b16 %v451, %v447
    %v592 = vpack.c.b16 %v452, %v448
    %v593 = vpack.c.b16 %v453, %v449
    %v594 = vpack.c.b16 %v458, %v454
    %v595 = vpack.c.b16 %v459, %v455
    %v596 = vpack.c.b16 %v460, %v456
    %v597 = vpack.c.b16 %v461, %v457
    %v598 = vpack.c.b16 %v466, %v462
    %v599 = vpack.c.b16 %v467, %v463
    %v600 = vpack.c.b16 %v468, %v464
    %v601 = vpack.c.b16 %v469, %v465
    %v602 = vpack.c.b16 %v474, %v470
    %v603 = vpack.c.b16 %v475, %v471
    %v604 = vpack.c.b16 %v476, %v472
    %v605 = vpack.c.b16 %v477, %v473
    %v606 = vpack.c.b16 %v482, %v478
    %v607 = vpack.c.b16 %v483, %v479
    %v608 = vpack.c.b16 %v484, %v480
    %v609 = vpack.c.b16 %v485, %v481
    %v610 = vpack.c.b16 %v490, %v486
    %v611 = vpack.c.b16 %v491, %v487
    %v612 = vpack.c.b16 %v492, %v488
    %v613 = vpack.c.b16 %v493, %v489
    %v614 = vpack.c.b16 %v498, %v494
    %v615 = vpack.c.b16 %v499, %v495
    %v616 = vpack.c.b16 %v500, %v496
    %v617 = vpack.c.b16 %v501, %v497
    %v618 = vpack.c.b16 %v506, %v502
    %v619 = vpack.c.b16 %v507, %v503
    %v620 = vpack.c.b16 %v508, %v504
    %v621 = vpack.c.b16 %v509, %v505
    %v622 = vpack.c.b16 %v514, %v510
    %v623 = vpack.c.b16 %v515, %v511
    %v624 = vpack.c.b16 %v516, %v512
    %v625 = vpack.c.b16 %v517, %v513
    %v626 = vpack.c.b16 %v522, %v518
    %v627 = vpack.c.b16 %v523, %v519
    %v628 = vpack.c.b16 %v524, %v520
    %v629 = vpack.c.b16 %v525, %v521
    %v630 = vpack.c.b16 %v530, %v526
    %v631 = vpack.c.b16 %v531, %v527
    %v632 = vpack.c.b16 %v532, %v528
    %v633 = vpack.c.b16 %v533, %v529
    %v634 = vpack.c.b16 %v538, %v534
    %v635 = vpack.c.b16 %v539, %v535
    %v636 = vpack.c.b16 %v540, %v536
    %v637 = vpack.c.b16 %v541, %v537
    %734 = vmatprep.subr.bf16.mxu0 %v571
    %735 = vmatpush1.bf16.msra.mxu0 %v570
    %736 = vmatprep.subr.bf16.mxu0 %v567
    %737 = vmatpush1.bf16.msra.mxu0 %v566
    %738 = vmatprep.subr.bf16.mxu0 %v563
    %739 = vmatpush1.bf16.msra.mxu0 %v562
    %740 = vmatprep.subr.bf16.mxu0 %v559
    %741 = vmatpush1.bf16.msra.mxu0 %v558
    %742 = vmatprep.subr.bf16.mxu0 %v555
    %743 = vmatpush1.bf16.msra.mxu0 %v554
    %744 = vmatprep.subr.bf16.mxu0 %v551
    %745 = vmatpush1.bf16.msra.mxu0 %v550
    %746 = vmatprep.subr.bf16.mxu0 %v547
    %747 = vmatpush1.bf16.msra.mxu0 %v546
    %748 = vmatprep.subr.bf16.mxu0 %v543
    %749 = vmatpush1.bf16.msra.mxu0 %v542
    %750 = vmatprep.subr.bf16.mxu0 %v603
    %751 = vmatpush2.bf16.msra.mxu0 %v602
    %752 = vmatprep.subr.bf16.mxu0 %v599
    %753 = vmatpush2.bf16.msra.mxu0 %v598
    %754 = vmatprep.subr.bf16.mxu0 %v595
    %755 = vmatpush2.bf16.msra.mxu0 %v594
    %756 = vmatprep.subr.bf16.mxu0 %v591
    %757 = vmatpush2.bf16.msra.mxu0 %v590
    %758 = vmatprep.subr.bf16.mxu0 %v587
    %759 = vmatpush2.bf16.msra.mxu0 %v586
    %760 = vmatprep.subr.bf16.mxu0 %v583
    %761 = vmatpush2.bf16.msra.mxu0 %v582
    %762 = vmatprep.subr.bf16.mxu0 %v579
    %763 = vmatpush2.bf16.msra.mxu0 %v578
    %764 = vmatprep.subr.bf16.mxu0 %v575
    %765 = vmatpush2.bf16.msra.mxu0 %v574
    %766 = vmatprep.mubr.bf16.mxu0 %v249
    %767 = vmatmul.mubr.bf16.gmra.mxu0 %v248
    %v768 = vpop.f32.mrf.mxu0
    %v769 = vadd.f32 %v226, %v768
    %v770 = vpop.f32.mrf.mxu0
    %v771 = vadd.f32 %v230, %v770
    %v772 = vpop.f32.mrf.mxu0
    %v773 = vpop.f32.mrf.mxu0
    %774 = vdwg.mxu0
    %775 = vmatprep.subr.bf16.mxu0 %v635
    %776 = vmatpush1.bf16.msra.mxu0 %v634
    %777 = vmatprep.subr.bf16.mxu0 %v631
    %778 = vmatpush1.bf16.msra.mxu0 %v630
    %779 = vmatprep.subr.bf16.mxu0 %v627
    %780 = vmatpush1.bf16.msra.mxu0 %v626
    %781 = vmatprep.subr.bf16.mxu0 %v623
    %782 = vmatpush1.bf16.msra.mxu0 %v622
    %783 = vmatprep.subr.bf16.mxu0 %v619
    %784 = vmatpush1.bf16.msra.mxu0 %v618
    %785 = vmatprep.subr.bf16.mxu0 %v615
    %786 = vmatpush1.bf16.msra.mxu0 %v614
    %787 = vmatprep.subr.bf16.mxu0 %v611
    %788 = vmatpush1.bf16.msra.mxu0 %v610
    %789 = vmatprep.subr.bf16.mxu0 %v607
    %790 = vmatpush1.bf16.msra.mxu0 %v606
    %791 = vmatprep.subr.bf16.mxu0 0
    %792 = vmatpush2.bf16.msra.mxu0 0
    %793 = vmatprep.subr.bf16.mxu0 0
    %794 = vmatpush2.bf16.msra.mxu0 0
    %795 = vmatprep.subr.bf16.mxu0 0
    %796 = vmatpush2.bf16.msra.mxu0 0
    %797 = vmatprep.subr.bf16.mxu0 0
    %798 = vmatpush2.bf16.msra.mxu0 0
    %799 = vmatprep.subr.bf16.mxu0 0
    %800 = vmatpush2.bf16.msra.mxu0 0
    %801 = vmatprep.subr.bf16.mxu0 0
    %802 = vmatpush2.bf16.msra.mxu0 0
    %803 = vmatprep.subr.bf16.mxu0 0
    %804 = vmatpush2.bf16.msra.mxu0 0
    %805 = vmatprep.subr.bf16.mxu0 0
    %806 = vmatpush2.bf16.msra.mxu0 0
    %807 = vmatprep.mubr.bf16.mxu0 0
    %808 = vmatmul.mubr.bf16.gmra.mxu0 %v250
    %v809 = vpop.f32.mrf.mxu0
    %v810 = vadd.f32 %v769, %v809
    %v811 = vpop.f32.mrf.mxu0
    %v812 = vadd.f32 %v771, %v811
    %v813 = vpop.f32.mrf.mxu0
    %v814 = vpop.f32.mrf.mxu0
    %815 = vdwg.mxu0
    %816 = vmatprep.subr.bf16.mxu0 %v573
    %817 = vmatpush1.bf16.msra.mxu0 %v572
    %818 = vmatprep.subr.bf16.mxu0 %v569
    %819 = vmatpush1.bf16.msra.mxu0 %v568
    %820 = vmatprep.subr.bf16.mxu0 %v565
    %821 = vmatpush1.bf16.msra.mxu0 %v564
    %822 = vmatprep.subr.bf16.mxu0 %v561
    %823 = vmatpush1.bf16.msra.mxu0 %v560
    %824 = vmatprep.subr.bf16.mxu0 %v557
    %825 = vmatpush1.bf16.msra.mxu0 %v556
    %826 = vmatprep.subr.bf16.mxu0 %v553
    %827 = vmatpush1.bf16.msra.mxu0 %v552
    %828 = vmatprep.subr.bf16.mxu0 %v549
    %829 = vmatpush1.bf16.msra.mxu0 %v548
    %830 = vmatprep.subr.bf16.mxu0 %v545
    %831 = vmatpush1.bf16.msra.mxu0 %v544
    %832 = vmatprep.subr.bf16.mxu0 %v605
    %833 = vmatpush2.bf16.msra.mxu0 %v604
    %834 = vmatprep.subr.bf16.mxu0 %v601
    %835 = vmatpush2.bf16.msra.mxu0 %v600
    %836 = vmatprep.subr.bf16.mxu0 %v597
    %837 = vmatpush2.bf16.msra.mxu0 %v596
    %838 = vmatprep.subr.bf16.mxu0 %v593
    %839 = vmatpush2.bf16.msra.mxu0 %v592
    %840 = vmatprep.subr.bf16.mxu0 %v589
    %841 = vmatpush2.bf16.msra.mxu0 %v588
    %842 = vmatprep.subr.bf16.mxu0 %v585
    %843 = vmatpush2.bf16.msra.mxu0 %v584
    %844 = vmatprep.subr.bf16.mxu0 %v581
    %845 = vmatpush2.bf16.msra.mxu0 %v580
    %846 = vmatprep.subr.bf16.mxu0 %v577
    %847 = vmatpush2.bf16.msra.mxu0 %v576
    %848 = vmatprep.mubr.bf16.mxu0 %v249
    %849 = vmatmul.mubr.bf16.gmra.mxu0 %v248
    %v850 = vpop.f32.mrf.mxu0
    %v851 = vadd.f32 %v234, %v850
    %v852 = vpop.f32.mrf.mxu0
    %v853 = vadd.f32 %v238, %v852
    %v854 = vpop.f32.mrf.mxu0
    %v855 = vpop.f32.mrf.mxu0
    %856 = vdwg.mxu0
    %857 = vmatprep.subr.bf16.mxu0 %v637
    %858 = vmatpush1.bf16.msra.mxu0 %v636
    %859 = vmatprep.subr.bf16.mxu0 %v633
    %860 = vmatpush1.bf16.msra.mxu0 %v632
    %861 = vmatprep.subr.bf16.mxu0 %v629
    %862 = vmatpush1.bf16.msra.mxu0 %v628
    %863 = vmatprep.subr.bf16.mxu0 %v625
    %864 = vmatpush1.bf16.msra.mxu0 %v624
    %865 = vmatprep.subr.bf16.mxu0 %v621
    %866 = vmatpush1.bf16.msra.mxu0 %v620
    %867 = vmatprep.subr.bf16.mxu0 %v617
    %868 = vmatpush1.bf16.msra.mxu0 %v616
    %869 = vmatprep.subr.bf16.mxu0 %v613
    %870 = vmatpush1.bf16.msra.mxu0 %v612
    %871 = vmatprep.subr.bf16.mxu0 %v609
    %872 = vmatpush1.bf16.msra.mxu0 %v608
    %873 = vmatprep.subr.bf16.mxu0 0
    %874 = vmatpush2.bf16.msra.mxu0 0
    %875 = vmatprep.subr.bf16.mxu0 0
    %876 = vmatpush2.bf16.msra.mxu0 0
    %877 = vmatprep.subr.bf16.mxu0 0
    %878 = vmatpush2.bf16.msra.mxu0 0
    %879 = vmatprep.subr.bf16.mxu0 0
    %880 = vmatpush2.bf16.msra.mxu0 0
    %881 = vmatprep.subr.bf16.mxu0 0
    %882 = vmatpush2.bf16.msra.mxu0 0
    %883 = vmatprep.subr.bf16.mxu0 0
    %884 = vmatpush2.bf16.msra.mxu0 0
    %885 = vmatprep.subr.bf16.mxu0 0
    %886 = vmatpush2.bf16.msra.mxu0 0
    %887 = vmatprep.subr.bf16.mxu0 0
    %888 = vmatpush2.bf16.msra.mxu0 0
    %889 = vmatprep.mubr.bf16.mxu0 0
    %890 = vmatmul.mubr.bf16.gmra.mxu0 %v250
    %v891 = vpop.f32.mrf.mxu0
    %v892 = vadd.f32 %v851, %v891
    %v893 = vpop.f32.mrf.mxu0
    %v894 = vadd.f32 %v853, %v893
    %v895 = vpop.f32.mrf.mxu0
    %v896 = vpop.f32.mrf.mxu0
    %897 = vdwg.mxu0
    %v898 = vmax.f32 %v810, 0.0
    %v899 = vmax.f32 %v812, 0.0
    %v900 = vmax.f32 %v892, 0.0
    %v901 = vmax.f32 %v894, 0.0
    %v902 = vpack.c.bf16 %v898, %v898
    %v903 = vpack.c.bf16 %v899, %v899
    %v904 = vpack.c.bf16 %v900, %v900
    %v905 = vpack.c.bf16 %v901, %v901
    %v906 = vld [vmem:[#allocation8] sm:$0xff]
    %v907 = vld [vmem:[#allocation8 + $0x8] sm:$0xff]
    %v908 = vld [vmem:[#allocation8 + $0x10] sm:$0xff]
    %v909 = vld [vmem:[#allocation8 + $0x18] sm:$0xff]
    %v910 = vld [vmem:[#allocation8 + $0x20] sm:$0xff]
    %v911 = vld [vmem:[#allocation8 + $0x28] sm:$0xff]
    %v912 = vld [vmem:[#allocation8 + $0x30] sm:$0xff]
    %v913 = vld [vmem:[#allocation8 + $0x38] sm:$0xff]
    %v914 = vld [vmem:[#allocation8 + $0x40] sm:$0xff]
    %v915 = vld [vmem:[#allocation8 + $0x48] sm:$0xff]
    %v916 = vld [vmem:[#allocation8 + $0x50] sm:$0xff]
    %v917 = vld [vmem:[#allocation8 + $0x58] sm:$0xff]
    %v918 = vld [vmem:[#allocation8 + $0x60] sm:$0xff]
    %v919 = vld [vmem:[#allocation8 + $0x68] sm:$0xff]
    %v920 = vld [vmem:[#allocation8 + $0x70] sm:$0xff]
    %v921 = vld [vmem:[#allocation8 + $0x78] sm:$0xff]
    %v922 = vld [vmem:[#allocation8 + $0x80] sm:$0xff]
    %v923 = vld [vmem:[#allocation8 + $0x88] sm:$0xff]
    %v924 = vld [vmem:[#allocation8 + $0x90] sm:$0xff]
    %v925 = vld [vmem:[#allocation8 + $0x98] sm:$0xff]
    %v926 = vld [vmem:[#allocation8 + $0xa0] sm:$0xff]
    %v927 = vld [vmem:[#allocation8 + $0xa8] sm:$0xff]
    %v928 = vld [vmem:[#allocation8 + $0xb0] sm:$0xff]
    %v929 = vld [vmem:[#allocation8 + $0xb8] sm:$0xff]
    %v930 = vld [vmem:[#allocation8 + $0xc0] sm:$0xff]
    %v931 = vld [vmem:[#allocation8 + $0xc8] sm:$0xff]
    %v932 = vld [vmem:[#allocation8 + $0xd0] sm:$0xff]
    %v933 = vld [vmem:[#allocation8 + $0xd8] sm:$0xff]
    %v934 = vld [vmem:[#allocation8 + $0xe0] sm:$0xff]
    %v935 = vld [vmem:[#allocation8 + $0xe8] sm:$0xff]
    %v936 = vld [vmem:[#allocation8 + $0xf0] sm:$0xff]
    %v937 = vld [vmem:[#allocation8 + $0xf8] sm:$0xff]
    %v938 = vld [vmem:[#allocation8 + $0x100] sm:$0xff]
    %v939 = vld [vmem:[#allocation8 + $0x108] sm:$0xff]
    %v940 = vld [vmem:[#allocation8 + $0x110] sm:$0xff]
    %v941 = vld [vmem:[#allocation8 + $0x118] sm:$0xff]
    %v942 = vld [vmem:[#allocation8 + $0x120] sm:$0xff]
    %v943 = vld [vmem:[#allocation8 + $0x128] sm:$0xff]
    %v944 = vld [vmem:[#allocation8 + $0x130] sm:$0xff]
    %v945 = vld [vmem:[#allocation8 + $0x138] sm:$0xff]
    %v946 = vld [vmem:[#allocation8 + $0x140] sm:$0xff]
    %v947 = vld [vmem:[#allocation8 + $0x148] sm:$0xff]
    %v948 = vld [vmem:[#allocation8 + $0x150] sm:$0xff]
    %v949 = vld [vmem:[#allocation8 + $0x158] sm:$0xff]
    %v950 = vld [vmem:[#allocation8 + $0x160] sm:$0xff]
    %v951 = vld [vmem:[#allocation8 + $0x168] sm:$0xff]
    %v952 = vld [vmem:[#allocation8 + $0x170] sm:$0xff]
    %v953 = vld [vmem:[#allocation8 + $0x178] sm:$0xff]
    %v954 = vld [vmem:[#allocation8 + $0x180] sm:$0xff]
    %v955 = vld [vmem:[#allocation8 + $0x188] sm:$0xff]
    %v956 = vld [vmem:[#allocation8 + $0x190] sm:$0xff]
    %v957 = vld [vmem:[#allocation8 + $0x198] sm:$0xff]
    %v958 = vld [vmem:[#allocation8 + $0x1a0] sm:$0xff]
    %v959 = vld [vmem:[#allocation8 + $0x1a8] sm:$0xff]
    %v960 = vld [vmem:[#allocation8 + $0x1b0] sm:$0xff]
    %v961 = vld [vmem:[#allocation8 + $0x1b8] sm:$0xff]
    %v962 = vld [vmem:[#allocation8 + $0x1c0] sm:$0xff]
    %v963 = vld [vmem:[#allocation8 + $0x1c8] sm:$0xff]
    %v964 = vld [vmem:[#allocation8 + $0x1d0] sm:$0xff]
    %v965 = vld [vmem:[#allocation8 + $0x1d8] sm:$0xff]
    %v966 = vld [vmem:[#allocation8 + $0x1e0] sm:$0xff]
    %v967 = vld [vmem:[#allocation8 + $0x1e8] sm:$0xff]
    %v968 = vld [vmem:[#allocation8 + $0x1f0] sm:$0xff]
    %v969 = vld [vmem:[#allocation8 + $0x1f8] sm:$0xff]
    %v970 = vld [vmem:[#allocation8 + $0x200] sm:$0xff]
    %v971 = vld [vmem:[#allocation8 + $0x208] sm:$0xff]
    %v972 = vld [vmem:[#allocation8 + $0x210] sm:$0xff]
    %v973 = vld [vmem:[#allocation8 + $0x218] sm:$0xff]
    %v974 = vld [vmem:[#allocation8 + $0x220] sm:$0xff]
    %v975 = vld [vmem:[#allocation8 + $0x228] sm:$0xff]
    %v976 = vld [vmem:[#allocation8 + $0x230] sm:$0xff]
    %v977 = vld [vmem:[#allocation8 + $0x238] sm:$0xff]
    %v978 = vld [vmem:[#allocation8 + $0x240] sm:$0xff]
    %v979 = vld [vmem:[#allocation8 + $0x248] sm:$0xff]
    %v980 = vld [vmem:[#allocation8 + $0x250] sm:$0xff]
    %v981 = vld [vmem:[#allocation8 + $0x258] sm:$0xff]
    %v982 = vld [vmem:[#allocation8 + $0x260] sm:$0xff]
    %v983 = vld [vmem:[#allocation8 + $0x268] sm:$0xff]
    %v984 = vld [vmem:[#allocation8 + $0x270] sm:$0xff]
    %v985 = vld [vmem:[#allocation8 + $0x278] sm:$0xff]
    %v986 = vld [vmem:[#allocation8 + $0x280] sm:$0xff]
    %v987 = vld [vmem:[#allocation8 + $0x288] sm:$0xff]
    %v988 = vld [vmem:[#allocation8 + $0x290] sm:$0xff]
    %v989 = vld [vmem:[#allocation8 + $0x298] sm:$0xff]
    %v990 = vld [vmem:[#allocation8 + $0x2a0] sm:$0xff]
    %v991 = vld [vmem:[#allocation8 + $0x2a8] sm:$0xff]
    %v992 = vld [vmem:[#allocation8 + $0x2b0] sm:$0xff]
    %v993 = vld [vmem:[#allocation8 + $0x2b8] sm:$0xff]
    %v994 = vld [vmem:[#allocation8 + $0x2c0] sm:$0xff]
    %v995 = vld [vmem:[#allocation8 + $0x2c8] sm:$0xff]
    %v996 = vld [vmem:[#allocation8 + $0x2d0] sm:$0xff]
    %v997 = vld [vmem:[#allocation8 + $0x2d8] sm:$0xff]
    %v998 = vld [vmem:[#allocation8 + $0x2e0] sm:$0xff]
    %v999 = vld [vmem:[#allocation8 + $0x2e8] sm:$0xff]
    %v1000 = vld [vmem:[#allocation8 + $0x2f0] sm:$0xff]
    %v1001 = vld [vmem:[#allocation8 + $0x2f8] sm:$0xff]
    %v1002 = vld [vmem:[#allocation8 + $0x300] sm:$0xff]
    %v1003 = vld [vmem:[#allocation8 + $0x308] sm:$0xff]
    %v1004 = vld [vmem:[#allocation8 + $0x310] sm:$0xff]
    %v1005 = vld [vmem:[#allocation8 + $0x318] sm:$0xff]
    %v1006 = vld [vmem:[#allocation8 + $0x320] sm:$0xff]
    %v1007 = vld [vmem:[#allocation8 + $0x328] sm:$0xff]
    %v1008 = vld [vmem:[#allocation8 + $0x330] sm:$0xff]
    %v1009 = vld [vmem:[#allocation8 + $0x338] sm:$0xff]
    %v1010 = vld [vmem:[#allocation8 + $0x340] sm:$0xff]
    %v1011 = vld [vmem:[#allocation8 + $0x348] sm:$0xff]
    %v1012 = vld [vmem:[#allocation8 + $0x350] sm:$0xff]
    %v1013 = vld [vmem:[#allocation8 + $0x358] sm:$0xff]
    %v1014 = vld [vmem:[#allocation8 + $0x360] sm:$0xff]
    %v1015 = vld [vmem:[#allocation8 + $0x368] sm:$0xff]
    %v1016 = vld [vmem:[#allocation8 + $0x370] sm:$0xff]
    %v1017 = vld [vmem:[#allocation8 + $0x378] sm:$0xff]
    %v1018 = vld [vmem:[#allocation8 + $0x380] sm:$0xff]
    %v1019 = vld [vmem:[#allocation8 + $0x388] sm:$0xff]
    %v1020 = vld [vmem:[#allocation8 + $0x390] sm:$0xff]
    %v1021 = vld [vmem:[#allocation8 + $0x398] sm:$0xff]
    %v1022 = vld [vmem:[#allocation8 + $0x3a0] sm:$0xff]
    %v1023 = vld [vmem:[#allocation8 + $0x3a8] sm:$0xff]
    %v1024 = vld [vmem:[#allocation8 + $0x3b0] sm:$0xff]
    %v1025 = vld [vmem:[#allocation8 + $0x3b8] sm:$0xff]
    %v1026 = vld [vmem:[#allocation8 + $0x3c0] sm:$0xff]
    %v1027 = vld [vmem:[#allocation8 + $0x3c8] sm:$0xff]
    %v1028 = vld [vmem:[#allocation8 + $0x3d0] sm:$0xff]
    %v1029 = vld [vmem:[#allocation8 + $0x3d8] sm:$0xff]
    %v1030 = vld [vmem:[#allocation8 + $0x3e0] sm:$0xff]
    %v1031 = vld [vmem:[#allocation8 + $0x3e8] sm:$0xff]
    %v1032 = vld [vmem:[#allocation8 + $0x3f0] sm:$0xff]
    %v1033 = vld [vmem:[#allocation8 + $0x3f8] sm:$0xff]
    %v1034 = vld [vmem:[#allocation8 + $0x400] sm:$0xff]
    %v1035 = vld [vmem:[#allocation8 + $0x408] sm:$0xff]
    %v1036 = vld [vmem:[#allocation8 + $0x410] sm:$0xff]
    %v1037 = vld [vmem:[#allocation8 + $0x418] sm:$0xff]
    %v1038 = vld [vmem:[#allocation8 + $0x420] sm:$0xff]
    %v1039 = vld [vmem:[#allocation8 + $0x428] sm:$0xff]
    %v1040 = vld [vmem:[#allocation8 + $0x430] sm:$0xff]
    %v1041 = vld [vmem:[#allocation8 + $0x438] sm:$0xff]
    %v1042 = vld [vmem:[#allocation8 + $0x440] sm:$0xff]
    %v1043 = vld [vmem:[#allocation8 + $0x448] sm:$0xff]
    %v1044 = vld [vmem:[#allocation8 + $0x450] sm:$0xff]
    %v1045 = vld [vmem:[#allocation8 + $0x458] sm:$0xff]
    %v1046 = vld [vmem:[#allocation8 + $0x460] sm:$0xff]
    %v1047 = vld [vmem:[#allocation8 + $0x468] sm:$0xff]
    %v1048 = vld [vmem:[#allocation8 + $0x470] sm:$0xff]
    %v1049 = vld [vmem:[#allocation8 + $0x478] sm:$0xff]
    %v1050 = vld [vmem:[#allocation8 + $0x480] sm:$0xff]
    %v1051 = vld [vmem:[#allocation8 + $0x488] sm:$0xff]
    %v1052 = vld [vmem:[#allocation8 + $0x490] sm:$0xff]
    %v1053 = vld [vmem:[#allocation8 + $0x498] sm:$0xff]
    %v1054 = vld [vmem:[#allocation8 + $0x4a0] sm:$0xff]
    %v1055 = vld [vmem:[#allocation8 + $0x4a8] sm:$0xff]
    %v1056 = vld [vmem:[#allocation8 + $0x4b0] sm:$0xff]
    %v1057 = vld [vmem:[#allocation8 + $0x4b8] sm:$0xff]
    %v1058 = vld [vmem:[#allocation8 + $0x4c0] sm:$0xff]
    %v1059 = vld [vmem:[#allocation8 + $0x4c8] sm:$0xff]
    %v1060 = vld [vmem:[#allocation8 + $0x4d0] sm:$0xff]
    %v1061 = vld [vmem:[#allocation8 + $0x4d8] sm:$0xff]
    %v1062 = vld [vmem:[#allocation8 + $0x4e0] sm:$0xff]
    %v1063 = vld [vmem:[#allocation8 + $0x4e8] sm:$0xff]
    %v1064 = vld [vmem:[#allocation8 + $0x4f0] sm:$0xff]
    %v1065 = vld [vmem:[#allocation8 + $0x4f8] sm:$0xff]
    %v1066 = vld [vmem:[#allocation8 + $0x500] sm:$0xff]
    %v1067 = vld [vmem:[#allocation8 + $0x508] sm:$0xff]
    %v1068 = vld [vmem:[#allocation8 + $0x510] sm:$0xff]
    %v1069 = vld [vmem:[#allocation8 + $0x518] sm:$0xff]
    %v1070 = vld [vmem:[#allocation8 + $0x520] sm:$0xff]
    %v1071 = vld [vmem:[#allocation8 + $0x528] sm:$0xff]
    %v1072 = vld [vmem:[#allocation8 + $0x530] sm:$0xff]
    %v1073 = vld [vmem:[#allocation8 + $0x538] sm:$0xff]
    %v1074 = vld [vmem:[#allocation8 + $0x540] sm:$0xff]
    %v1075 = vld [vmem:[#allocation8 + $0x548] sm:$0xff]
    %v1076 = vld [vmem:[#allocation8 + $0x550] sm:$0xff]
    %v1077 = vld [vmem:[#allocation8 + $0x558] sm:$0xff]
    %v1078 = vld [vmem:[#allocation8 + $0x560] sm:$0xff]
    %v1079 = vld [vmem:[#allocation8 + $0x568] sm:$0xff]
    %v1080 = vld [vmem:[#allocation8 + $0x570] sm:$0xff]
    %v1081 = vld [vmem:[#allocation8 + $0x578] sm:$0xff]
    %v1082 = vld [vmem:[#allocation8 + $0x580] sm:$0xff]
    %v1083 = vld [vmem:[#allocation8 + $0x588] sm:$0xff]
    %v1084 = vld [vmem:[#allocation8 + $0x590] sm:$0xff]
    %v1085 = vld [vmem:[#allocation8 + $0x598] sm:$0xff]
    %v1086 = vld [vmem:[#allocation8 + $0x5a0] sm:$0xff]
    %v1087 = vld [vmem:[#allocation8 + $0x5a8] sm:$0xff]
    %v1088 = vld [vmem:[#allocation8 + $0x5b0] sm:$0xff]
    %v1089 = vld [vmem:[#allocation8 + $0x5b8] sm:$0xff]
    %v1090 = vld [vmem:[#allocation8 + $0x5c0] sm:$0xff]
    %v1091 = vld [vmem:[#allocation8 + $0x5c8] sm:$0xff]
    %v1092 = vld [vmem:[#allocation8 + $0x5d0] sm:$0xff]
    %v1093 = vld [vmem:[#allocation8 + $0x5d8] sm:$0xff]
    %v1094 = vld [vmem:[#allocation8 + $0x5e0] sm:$0xff]
    %v1095 = vld [vmem:[#allocation8 + $0x5e8] sm:$0xff]
    %v1096 = vld [vmem:[#allocation8 + $0x5f0] sm:$0xff]
    %v1097 = vld [vmem:[#allocation8 + $0x5f8] sm:$0xff]
    %v1098 = vld [vmem:[#allocation8 + $0x600] sm:$0xff]
    %v1099 = vld [vmem:[#allocation8 + $0x608] sm:$0xff]
    %v1100 = vld [vmem:[#allocation8 + $0x610] sm:$0xff]
    %v1101 = vld [vmem:[#allocation8 + $0x618] sm:$0xff]
    %v1102 = vld [vmem:[#allocation8 + $0x620] sm:$0xff]
    %v1103 = vld [vmem:[#allocation8 + $0x628] sm:$0xff]
    %v1104 = vld [vmem:[#allocation8 + $0x630] sm:$0xff]
    %v1105 = vld [vmem:[#allocation8 + $0x638] sm:$0xff]
    %v1106 = vld [vmem:[#allocation8 + $0x640] sm:$0xff]
    %v1107 = vld [vmem:[#allocation8 + $0x648] sm:$0xff]
    %v1108 = vld [vmem:[#allocation8 + $0x650] sm:$0xff]
    %v1109 = vld [vmem:[#allocation8 + $0x658] sm:$0xff]
    %v1110 = vld [vmem:[#allocation8 + $0x660] sm:$0xff]
    %v1111 = vld [vmem:[#allocation8 + $0x668] sm:$0xff]
    %v1112 = vld [vmem:[#allocation8 + $0x670] sm:$0xff]
    %v1113 = vld [vmem:[#allocation8 + $0x678] sm:$0xff]
    %v1114 = vld [vmem:[#allocation8 + $0x680] sm:$0xff]
    %v1115 = vld [vmem:[#allocation8 + $0x688] sm:$0xff]
    %v1116 = vld [vmem:[#allocation8 + $0x690] sm:$0xff]
    %v1117 = vld [vmem:[#allocation8 + $0x698] sm:$0xff]
    %v1118 = vld [vmem:[#allocation8 + $0x6a0] sm:$0xff]
    %v1119 = vld [vmem:[#allocation8 + $0x6a8] sm:$0xff]
    %v1120 = vld [vmem:[#allocation8 + $0x6b0] sm:$0xff]
    %v1121 = vld [vmem:[#allocation8 + $0x6b8] sm:$0xff]
    %v1122 = vld [vmem:[#allocation8 + $0x6c0] sm:$0xff]
    %v1123 = vld [vmem:[#allocation8 + $0x6c8] sm:$0xff]
    %v1124 = vld [vmem:[#allocation8 + $0x6d0] sm:$0xff]
    %v1125 = vld [vmem:[#allocation8 + $0x6d8] sm:$0xff]
    %v1126 = vld [vmem:[#allocation8 + $0x6e0] sm:$0xff]
    %v1127 = vld [vmem:[#allocation8 + $0x6e8] sm:$0xff]
    %v1128 = vld [vmem:[#allocation8 + $0x6f0] sm:$0xff]
    %v1129 = vld [vmem:[#allocation8 + $0x6f8] sm:$0xff]
    %v1130 = vld [vmem:[#allocation8 + $0x700] sm:$0xff]
    %v1131 = vld [vmem:[#allocation8 + $0x708] sm:$0xff]
    %v1132 = vld [vmem:[#allocation8 + $0x710] sm:$0xff]
    %v1133 = vld [vmem:[#allocation8 + $0x718] sm:$0xff]
    %v1134 = vld [vmem:[#allocation8 + $0x720] sm:$0xff]
    %v1135 = vld [vmem:[#allocation8 + $0x728] sm:$0xff]
    %v1136 = vld [vmem:[#allocation8 + $0x730] sm:$0xff]
    %v1137 = vld [vmem:[#allocation8 + $0x738] sm:$0xff]
    %v1138 = vld [vmem:[#allocation8 + $0x740] sm:$0xff]
    %v1139 = vld [vmem:[#allocation8 + $0x748] sm:$0xff]
    %v1140 = vld [vmem:[#allocation8 + $0x750] sm:$0xff]
    %v1141 = vld [vmem:[#allocation8 + $0x758] sm:$0xff]
    %v1142 = vld [vmem:[#allocation8 + $0x760] sm:$0xff]
    %v1143 = vld [vmem:[#allocation8 + $0x768] sm:$0xff]
    %v1144 = vld [vmem:[#allocation8 + $0x770] sm:$0xff]
    %v1145 = vld [vmem:[#allocation8 + $0x778] sm:$0xff]
    %v1146 = vld [vmem:[#allocation8 + $0x780] sm:$0xff]
    %v1147 = vld [vmem:[#allocation8 + $0x788] sm:$0xff]
    %v1148 = vld [vmem:[#allocation8 + $0x790] sm:$0xff]
    %v1149 = vld [vmem:[#allocation8 + $0x798] sm:$0xff]
    %v1150 = vld [vmem:[#allocation8 + $0x7a0] sm:$0xff]
    %v1151 = vld [vmem:[#allocation8 + $0x7a8] sm:$0xff]
    %v1152 = vld [vmem:[#allocation8 + $0x7b0] sm:$0xff]
    %v1153 = vld [vmem:[#allocation8 + $0x7b8] sm:$0xff]
    %v1154 = vld [vmem:[#allocation8 + $0x7c0] sm:$0xff]
    %v1155 = vld [vmem:[#allocation8 + $0x7c8] sm:$0xff]
    %v1156 = vld [vmem:[#allocation8 + $0x7d0] sm:$0xff]
    %v1157 = vld [vmem:[#allocation8 + $0x7d8] sm:$0xff]
    %v1158 = vld [vmem:[#allocation8 + $0x7e0] sm:$0xff]
    %v1159 = vld [vmem:[#allocation8 + $0x7e8] sm:$0xff]
    %v1160 = vld [vmem:[#allocation8 + $0x7f0] sm:$0xff]
    %v1161 = vld [vmem:[#allocation8 + $0x7f8] sm:$0xff]
    %v1162 = vld [vmem:[#allocation10] sm:$0xff]
    %v1164 = vlaneseq
    %v1165 = vshrl.u32 %v1164, 7
    %v1166 = vsub.s32 0, %v1165
    %v1167 = vrot.slane %v1162, %v1166
    %v1168 = vlaneseq
    %v1169 = vshrl.u32 %v1168, 7
    %v1170 = vsub.s32 1, %v1169
    %v1171 = vrot.slane %v1162, %v1170
    %v1172 = vlaneseq
    %v1173 = vshrl.u32 %v1172, 7
    %v1174 = vsub.s32 2, %v1173
    %v1175 = vrot.slane %v1162, %v1174
    %v1176 = vlaneseq
    %v1177 = vshrl.u32 %v1176, 7
    %v1178 = vsub.s32 3, %v1177
    %v1179 = vrot.slane %v1162, %v1178
    %v1180 = vlaneseq
    %v1181 = vshrl.u32 %v1180, 7
    %v1182 = vsub.s32 4, %v1181
    %v1183 = vrot.slane %v1162, %v1182
    %v1184 = vlaneseq
    %v1185 = vshrl.u32 %v1184, 7
    %v1186 = vsub.s32 5, %v1185
    %v1187 = vrot.slane %v1162, %v1186
    %v1188 = vlaneseq
    %v1189 = vshrl.u32 %v1188, 7
    %v1190 = vsub.s32 6, %v1189
    %v1191 = vrot.slane %v1162, %v1190
    %v1192 = vlaneseq
    %v1193 = vshrl.u32 %v1192, 7
    %v1194 = vsub.s32 7, %v1193
    %v1195 = vrot.slane %v1162, %v1194
    %v1460 = vunpack.c.l.b16 %v906
    %v1461 = vunpack.c.h.b16 %v906
    %v1462 = vunpack.c.l.b16 %v907
    %v1463 = vunpack.c.h.b16 %v907
    %v1464 = vunpack.c.l.b16 %v908
    %v1465 = vunpack.c.h.b16 %v908
    %v1466 = vunpack.c.l.b16 %v909
    %v1467 = vunpack.c.h.b16 %v909
    %v1468 = vunpack.c.l.b16 %v910
    %v1469 = vunpack.c.h.b16 %v910
    %v1470 = vunpack.c.l.b16 %v911
    %v1471 = vunpack.c.h.b16 %v911
    %v1472 = vunpack.c.l.b16 %v912
    %v1473 = vunpack.c.h.b16 %v912
    %v1474 = vunpack.c.l.b16 %v913
    %v1475 = vunpack.c.h.b16 %v913
    %v1476 = vunpack.c.l.b16 %v914
    %v1477 = vunpack.c.h.b16 %v914
    %v1478 = vunpack.c.l.b16 %v915
    %v1479 = vunpack.c.h.b16 %v915
    %v1480 = vunpack.c.l.b16 %v916
    %v1481 = vunpack.c.h.b16 %v916
    %v1482 = vunpack.c.l.b16 %v917
    %v1483 = vunpack.c.h.b16 %v917
    %v1484 = vunpack.c.l.b16 %v918
    %v1485 = vunpack.c.h.b16 %v918
    %v1486 = vunpack.c.l.b16 %v919
    %v1487 = vunpack.c.h.b16 %v919
    %v1488 = vunpack.c.l.b16 %v920
    %v1489 = vunpack.c.h.b16 %v920
    %v1490 = vunpack.c.l.b16 %v921
    %v1491 = vunpack.c.h.b16 %v921
    %v1492 = vunpack.c.l.b16 %v922
    %v1493 = vunpack.c.h.b16 %v922
    %v1494 = vunpack.c.l.b16 %v923
    %v1495 = vunpack.c.h.b16 %v923
    %v1496 = vunpack.c.l.b16 %v924
    %v1497 = vunpack.c.h.b16 %v924
    %v1498 = vunpack.c.l.b16 %v925
    %v1499 = vunpack.c.h.b16 %v925
    %v1500 = vunpack.c.l.b16 %v926
    %v1501 = vunpack.c.h.b16 %v926
    %v1502 = vunpack.c.l.b16 %v927
    %v1503 = vunpack.c.h.b16 %v927
    %v1504 = vunpack.c.l.b16 %v928
    %v1505 = vunpack.c.h.b16 %v928
    %v1506 = vunpack.c.l.b16 %v929
    %v1507 = vunpack.c.h.b16 %v929
    %v1508 = vunpack.c.l.b16 %v930
    %v1509 = vunpack.c.h.b16 %v930
    %v1510 = vunpack.c.l.b16 %v931
    %v1511 = vunpack.c.h.b16 %v931
    %v1512 = vunpack.c.l.b16 %v932
    %v1513 = vunpack.c.h.b16 %v932
    %v1514 = vunpack.c.l.b16 %v933
    %v1515 = vunpack.c.h.b16 %v933
    %v1516 = vunpack.c.l.b16 %v934
    %v1517 = vunpack.c.h.b16 %v934
    %v1518 = vunpack.c.l.b16 %v935
    %v1519 = vunpack.c.h.b16 %v935
    %v1520 = vunpack.c.l.b16 %v936
    %v1521 = vunpack.c.h.b16 %v936
    %v1522 = vunpack.c.l.b16 %v937
    %v1523 = vunpack.c.h.b16 %v937
    %v1524 = vunpack.c.l.b16 %v938
    %v1525 = vunpack.c.h.b16 %v938
    %v1526 = vunpack.c.l.b16 %v939
    %v1527 = vunpack.c.h.b16 %v939
    %v1528 = vunpack.c.l.b16 %v940
    %v1529 = vunpack.c.h.b16 %v940
    %v1530 = vunpack.c.l.b16 %v941
    %v1531 = vunpack.c.h.b16 %v941
    %v1532 = vunpack.c.l.b16 %v942
    %v1533 = vunpack.c.h.b16 %v942
    %v1534 = vunpack.c.l.b16 %v943
    %v1535 = vunpack.c.h.b16 %v943
    %v1536 = vunpack.c.l.b16 %v944
    %v1537 = vunpack.c.h.b16 %v944
    %v1538 = vunpack.c.l.b16 %v945
    %v1539 = vunpack.c.h.b16 %v945
    %v1540 = vunpack.c.l.b16 %v946
    %v1541 = vunpack.c.h.b16 %v946
    %v1542 = vunpack.c.l.b16 %v947
    %v1543 = vunpack.c.h.b16 %v947
    %v1544 = vunpack.c.l.b16 %v948
    %v1545 = vunpack.c.h.b16 %v948
    %v1546 = vunpack.c.l.b16 %v949
    %v1547 = vunpack.c.h.b16 %v949
    %v1548 = vunpack.c.l.b16 %v950
    %v1549 = vunpack.c.h.b16 %v950
    %v1550 = vunpack.c.l.b16 %v951
    %v1551 = vunpack.c.h.b16 %v951
    %v1552 = vunpack.c.l.b16 %v952
    %v1553 = vunpack.c.h.b16 %v952
    %v1554 = vunpack.c.l.b16 %v953
    %v1555 = vunpack.c.h.b16 %v953
    %v1556 = vunpack.c.l.b16 %v954
    %v1557 = vunpack.c.h.b16 %v954
    %v1558 = vunpack.c.l.b16 %v955
    %v1559 = vunpack.c.h.b16 %v955
    %v1560 = vunpack.c.l.b16 %v956
    %v1561 = vunpack.c.h.b16 %v956
    %v1562 = vunpack.c.l.b16 %v957
    %v1563 = vunpack.c.h.b16 %v957
    %v1564 = vunpack.c.l.b16 %v958
    %v1565 = vunpack.c.h.b16 %v958
    %v1566 = vunpack.c.l.b16 %v959
    %v1567 = vunpack.c.h.b16 %v959
    %v1568 = vunpack.c.l.b16 %v960
    %v1569 = vunpack.c.h.b16 %v960
    %v1570 = vunpack.c.l.b16 %v961
    %v1571 = vunpack.c.h.b16 %v961
    %v1572 = vunpack.c.l.b16 %v962
    %v1573 = vunpack.c.h.b16 %v962
    %v1574 = vunpack.c.l.b16 %v963
    %v1575 = vunpack.c.h.b16 %v963
    %v1576 = vunpack.c.l.b16 %v964
    %v1577 = vunpack.c.h.b16 %v964
    %v1578 = vunpack.c.l.b16 %v965
    %v1579 = vunpack.c.h.b16 %v965
    %v1580 = vunpack.c.l.b16 %v966
    %v1581 = vunpack.c.h.b16 %v966
    %v1582 = vunpack.c.l.b16 %v967
    %v1583 = vunpack.c.h.b16 %v967
    %v1584 = vunpack.c.l.b16 %v968
    %v1585 = vunpack.c.h.b16 %v968
    %v1586 = vunpack.c.l.b16 %v969
    %v1587 = vunpack.c.h.b16 %v969
    %v1588 = vunpack.c.l.b16 %v970
    %v1589 = vunpack.c.h.b16 %v970
    %v1590 = vunpack.c.l.b16 %v971
    %v1591 = vunpack.c.h.b16 %v971
    %v1592 = vunpack.c.l.b16 %v972
    %v1593 = vunpack.c.h.b16 %v972
    %v1594 = vunpack.c.l.b16 %v973
    %v1595 = vunpack.c.h.b16 %v973
    %v1596 = vunpack.c.l.b16 %v974
    %v1597 = vunpack.c.h.b16 %v974
    %v1598 = vunpack.c.l.b16 %v975
    %v1599 = vunpack.c.h.b16 %v975
    %v1600 = vunpack.c.l.b16 %v976
    %v1601 = vunpack.c.h.b16 %v976
    %v1602 = vunpack.c.l.b16 %v977
    %v1603 = vunpack.c.h.b16 %v977
    %v1604 = vunpack.c.l.b16 %v978
    %v1605 = vunpack.c.h.b16 %v978
    %v1606 = vunpack.c.l.b16 %v979
    %v1607 = vunpack.c.h.b16 %v979
    %v1608 = vunpack.c.l.b16 %v980
    %v1609 = vunpack.c.h.b16 %v980
    %v1610 = vunpack.c.l.b16 %v981
    %v1611 = vunpack.c.h.b16 %v981
    %v1612 = vunpack.c.l.b16 %v982
    %v1613 = vunpack.c.h.b16 %v982
    %v1614 = vunpack.c.l.b16 %v983
    %v1615 = vunpack.c.h.b16 %v983
    %v1616 = vunpack.c.l.b16 %v984
    %v1617 = vunpack.c.h.b16 %v984
    %v1618 = vunpack.c.l.b16 %v985
    %v1619 = vunpack.c.h.b16 %v985
    %v1620 = vunpack.c.l.b16 %v986
    %v1621 = vunpack.c.h.b16 %v986
    %v1622 = vunpack.c.l.b16 %v987
    %v1623 = vunpack.c.h.b16 %v987
    %v1624 = vunpack.c.l.b16 %v988
    %v1625 = vunpack.c.h.b16 %v988
    %v1626 = vunpack.c.l.b16 %v989
    %v1627 = vunpack.c.h.b16 %v989
    %v1628 = vunpack.c.l.b16 %v990
    %v1629 = vunpack.c.h.b16 %v990
    %v1630 = vunpack.c.l.b16 %v991
    %v1631 = vunpack.c.h.b16 %v991
    %v1632 = vunpack.c.l.b16 %v992
    %v1633 = vunpack.c.h.b16 %v992
    %v1634 = vunpack.c.l.b16 %v993
    %v1635 = vunpack.c.h.b16 %v993
    %v1636 = vunpack.c.l.b16 %v994
    %v1637 = vunpack.c.h.b16 %v994
    %v1638 = vunpack.c.l.b16 %v995
    %v1639 = vunpack.c.h.b16 %v995
    %v1640 = vunpack.c.l.b16 %v996
    %v1641 = vunpack.c.h.b16 %v996
    %v1642 = vunpack.c.l.b16 %v997
    %v1643 = vunpack.c.h.b16 %v997
    %v1644 = vunpack.c.l.b16 %v998
    %v1645 = vunpack.c.h.b16 %v998
    %v1646 = vunpack.c.l.b16 %v999
    %v1647 = vunpack.c.h.b16 %v999
    %v1648 = vunpack.c.l.b16 %v1000
    %v1649 = vunpack.c.h.b16 %v1000
    %v1650 = vunpack.c.l.b16 %v1001
    %v1651 = vunpack.c.h.b16 %v1001
    %v1652 = vunpack.c.l.b16 %v1002
    %v1653 = vunpack.c.h.b16 %v1002
    %v1654 = vunpack.c.l.b16 %v1003
    %v1655 = vunpack.c.h.b16 %v1003
    %v1656 = vunpack.c.l.b16 %v1004
    %v1657 = vunpack.c.h.b16 %v1004
    %v1658 = vunpack.c.l.b16 %v1005
    %v1659 = vunpack.c.h.b16 %v1005
    %v1660 = vunpack.c.l.b16 %v1006
    %v1661 = vunpack.c.h.b16 %v1006
    %v1662 = vunpack.c.l.b16 %v1007
    %v1663 = vunpack.c.h.b16 %v1007
    %v1664 = vunpack.c.l.b16 %v1008
    %v1665 = vunpack.c.h.b16 %v1008
    %v1666 = vunpack.c.l.b16 %v1009
    %v1667 = vunpack.c.h.b16 %v1009
    %v1668 = vunpack.c.l.b16 %v1010
    %v1669 = vunpack.c.h.b16 %v1010
    %v1670 = vunpack.c.l.b16 %v1011
    %v1671 = vunpack.c.h.b16 %v1011
    %v1672 = vunpack.c.l.b16 %v1012
    %v1673 = vunpack.c.h.b16 %v1012
    %v1674 = vunpack.c.l.b16 %v1013
    %v1675 = vunpack.c.h.b16 %v1013
    %v1676 = vunpack.c.l.b16 %v1014
    %v1677 = vunpack.c.h.b16 %v1014
    %v1678 = vunpack.c.l.b16 %v1015
    %v1679 = vunpack.c.h.b16 %v1015
    %v1680 = vunpack.c.l.b16 %v1016
    %v1681 = vunpack.c.h.b16 %v1016
    %v1682 = vunpack.c.l.b16 %v1017
    %v1683 = vunpack.c.h.b16 %v1017
    %v1684 = vunpack.c.l.b16 %v1018
    %v1685 = vunpack.c.h.b16 %v1018
    %v1686 = vunpack.c.l.b16 %v1019
    %v1687 = vunpack.c.h.b16 %v1019
    %v1688 = vunpack.c.l.b16 %v1020
    %v1689 = vunpack.c.h.b16 %v1020
    %v1690 = vunpack.c.l.b16 %v1021
    %v1691 = vunpack.c.h.b16 %v1021
    %v1692 = vunpack.c.l.b16 %v1022
    %v1693 = vunpack.c.h.b16 %v1022
    %v1694 = vunpack.c.l.b16 %v1023
    %v1695 = vunpack.c.h.b16 %v1023
    %v1696 = vunpack.c.l.b16 %v1024
    %v1697 = vunpack.c.h.b16 %v1024
    %v1698 = vunpack.c.l.b16 %v1025
    %v1699 = vunpack.c.h.b16 %v1025
    %v1700 = vunpack.c.l.b16 %v1026
    %v1701 = vunpack.c.h.b16 %v1026
    %v1702 = vunpack.c.l.b16 %v1027
    %v1703 = vunpack.c.h.b16 %v1027
    %v1704 = vunpack.c.l.b16 %v1028
    %v1705 = vunpack.c.h.b16 %v1028
    %v1706 = vunpack.c.l.b16 %v1029
    %v1707 = vunpack.c.h.b16 %v1029
    %v1708 = vunpack.c.l.b16 %v1030
    %v1709 = vunpack.c.h.b16 %v1030
    %v1710 = vunpack.c.l.b16 %v1031
    %v1711 = vunpack.c.h.b16 %v1031
    %v1712 = vunpack.c.l.b16 %v1032
    %v1713 = vunpack.c.h.b16 %v1032
    %v1714 = vunpack.c.l.b16 %v1033
    %v1715 = vunpack.c.h.b16 %v1033
    %v1716 = vunpack.c.l.b16 %v1034
    %v1717 = vunpack.c.h.b16 %v1034
    %v1718 = vunpack.c.l.b16 %v1035
    %v1719 = vunpack.c.h.b16 %v1035
    %v1720 = vunpack.c.l.b16 %v1036
    %v1721 = vunpack.c.h.b16 %v1036
    %v1722 = vunpack.c.l.b16 %v1037
    %v1723 = vunpack.c.h.b16 %v1037
    %v1724 = vunpack.c.l.b16 %v1038
    %v1725 = vunpack.c.h.b16 %v1038
    %v1726 = vunpack.c.l.b16 %v1039
    %v1727 = vunpack.c.h.b16 %v1039
    %v1728 = vunpack.c.l.b16 %v1040
    %v1729 = vunpack.c.h.b16 %v1040
    %v1730 = vunpack.c.l.b16 %v1041
    %v1731 = vunpack.c.h.b16 %v1041
    %v1732 = vunpack.c.l.b16 %v1042
    %v1733 = vunpack.c.h.b16 %v1042
    %v1734 = vunpack.c.l.b16 %v1043
    %v1735 = vunpack.c.h.b16 %v1043
    %v1736 = vunpack.c.l.b16 %v1044
    %v1737 = vunpack.c.h.b16 %v1044
    %v1738 = vunpack.c.l.b16 %v1045
    %v1739 = vunpack.c.h.b16 %v1045
    %v1740 = vunpack.c.l.b16 %v1046
    %v1741 = vunpack.c.h.b16 %v1046
    %v1742 = vunpack.c.l.b16 %v1047
    %v1743 = vunpack.c.h.b16 %v1047
    %v1744 = vunpack.c.l.b16 %v1048
    %v1745 = vunpack.c.h.b16 %v1048
    %v1746 = vunpack.c.l.b16 %v1049
    %v1747 = vunpack.c.h.b16 %v1049
    %v1748 = vunpack.c.l.b16 %v1050
    %v1749 = vunpack.c.h.b16 %v1050
    %v1750 = vunpack.c.l.b16 %v1051
    %v1751 = vunpack.c.h.b16 %v1051
    %v1752 = vunpack.c.l.b16 %v1052
    %v1753 = vunpack.c.h.b16 %v1052
    %v1754 = vunpack.c.l.b16 %v1053
    %v1755 = vunpack.c.h.b16 %v1053
    %v1756 = vunpack.c.l.b16 %v1054
    %v1757 = vunpack.c.h.b16 %v1054
    %v1758 = vunpack.c.l.b16 %v1055
    %v1759 = vunpack.c.h.b16 %v1055
    %v1760 = vunpack.c.l.b16 %v1056
    %v1761 = vunpack.c.h.b16 %v1056
    %v1762 = vunpack.c.l.b16 %v1057
    %v1763 = vunpack.c.h.b16 %v1057
    %v1764 = vunpack.c.l.b16 %v1058
    %v1765 = vunpack.c.h.b16 %v1058
    %v1766 = vunpack.c.l.b16 %v1059
    %v1767 = vunpack.c.h.b16 %v1059
    %v1768 = vunpack.c.l.b16 %v1060
    %v1769 = vunpack.c.h.b16 %v1060
    %v1770 = vunpack.c.l.b16 %v1061
    %v1771 = vunpack.c.h.b16 %v1061
    %v1772 = vunpack.c.l.b16 %v1062
    %v1773 = vunpack.c.h.b16 %v1062
    %v1774 = vunpack.c.l.b16 %v1063
    %v1775 = vunpack.c.h.b16 %v1063
    %v1776 = vunpack.c.l.b16 %v1064
    %v1777 = vunpack.c.h.b16 %v1064
    %v1778 = vunpack.c.l.b16 %v1065
    %v1779 = vunpack.c.h.b16 %v1065
    %v1780 = vunpack.c.l.b16 %v1066
    %v1781 = vunpack.c.h.b16 %v1066
    %v1782 = vunpack.c.l.b16 %v1067
    %v1783 = vunpack.c.h.b16 %v1067
    %v1784 = vunpack.c.l.b16 %v1068
    %v1785 = vunpack.c.h.b16 %v1068
    %v1786 = vunpack.c.l.b16 %v1069
    %v1787 = vunpack.c.h.b16 %v1069
    %v1788 = vunpack.c.l.b16 %v1070
    %v1789 = vunpack.c.h.b16 %v1070
    %v1790 = vunpack.c.l.b16 %v1071
    %v1791 = vunpack.c.h.b16 %v1071
    %v1792 = vunpack.c.l.b16 %v1072
    %v1793 = vunpack.c.h.b16 %v1072
    %v1794 = vunpack.c.l.b16 %v1073
    %v1795 = vunpack.c.h.b16 %v1073
    %v1796 = vunpack.c.l.b16 %v1074
    %v1797 = vunpack.c.h.b16 %v1074
    %v1798 = vunpack.c.l.b16 %v1075
    %v1799 = vunpack.c.h.b16 %v1075
    %v1800 = vunpack.c.l.b16 %v1076
    %v1801 = vunpack.c.h.b16 %v1076
    %v1802 = vunpack.c.l.b16 %v1077
    %v1803 = vunpack.c.h.b16 %v1077
    %v1804 = vunpack.c.l.b16 %v1078
    %v1805 = vunpack.c.h.b16 %v1078
    %v1806 = vunpack.c.l.b16 %v1079
    %v1807 = vunpack.c.h.b16 %v1079
    %v1808 = vunpack.c.l.b16 %v1080
    %v1809 = vunpack.c.h.b16 %v1080
    %v1810 = vunpack.c.l.b16 %v1081
    %v1811 = vunpack.c.h.b16 %v1081
    %v1812 = vunpack.c.l.b16 %v1082
    %v1813 = vunpack.c.h.b16 %v1082
    %v1814 = vunpack.c.l.b16 %v1083
    %v1815 = vunpack.c.h.b16 %v1083
    %v1816 = vunpack.c.l.b16 %v1084
    %v1817 = vunpack.c.h.b16 %v1084
    %v1818 = vunpack.c.l.b16 %v1085
    %v1819 = vunpack.c.h.b16 %v1085
    %v1820 = vunpack.c.l.b16 %v1086
    %v1821 = vunpack.c.h.b16 %v1086
    %v1822 = vunpack.c.l.b16 %v1087
    %v1823 = vunpack.c.h.b16 %v1087
    %v1824 = vunpack.c.l.b16 %v1088
    %v1825 = vunpack.c.h.b16 %v1088
    %v1826 = vunpack.c.l.b16 %v1089
    %v1827 = vunpack.c.h.b16 %v1089
    %v1828 = vunpack.c.l.b16 %v1090
    %v1829 = vunpack.c.h.b16 %v1090
    %v1830 = vunpack.c.l.b16 %v1091
    %v1831 = vunpack.c.h.b16 %v1091
    %v1832 = vunpack.c.l.b16 %v1092
    %v1833 = vunpack.c.h.b16 %v1092
    %v1834 = vunpack.c.l.b16 %v1093
    %v1835 = vunpack.c.h.b16 %v1093
    %v1836 = vunpack.c.l.b16 %v1094
    %v1837 = vunpack.c.h.b16 %v1094
    %v1838 = vunpack.c.l.b16 %v1095
    %v1839 = vunpack.c.h.b16 %v1095
    %v1840 = vunpack.c.l.b16 %v1096
    %v1841 = vunpack.c.h.b16 %v1096
    %v1842 = vunpack.c.l.b16 %v1097
    %v1843 = vunpack.c.h.b16 %v1097
    %v1844 = vunpack.c.l.b16 %v1098
    %v1845 = vunpack.c.h.b16 %v1098
    %v1846 = vunpack.c.l.b16 %v1099
    %v1847 = vunpack.c.h.b16 %v1099
    %v1848 = vunpack.c.l.b16 %v1100
    %v1849 = vunpack.c.h.b16 %v1100
    %v1850 = vunpack.c.l.b16 %v1101
    %v1851 = vunpack.c.h.b16 %v1101
    %v1852 = vunpack.c.l.b16 %v1102
    %v1853 = vunpack.c.h.b16 %v1102
    %v1854 = vunpack.c.l.b16 %v1103
    %v1855 = vunpack.c.h.b16 %v1103
    %v1856 = vunpack.c.l.b16 %v1104
    %v1857 = vunpack.c.h.b16 %v1104
    %v1858 = vunpack.c.l.b16 %v1105
    %v1859 = vunpack.c.h.b16 %v1105
    %v1860 = vunpack.c.l.b16 %v1106
    %v1861 = vunpack.c.h.b16 %v1106
    %v1862 = vunpack.c.l.b16 %v1107
    %v1863 = vunpack.c.h.b16 %v1107
    %v1864 = vunpack.c.l.b16 %v1108
    %v1865 = vunpack.c.h.b16 %v1108
    %v1866 = vunpack.c.l.b16 %v1109
    %v1867 = vunpack.c.h.b16 %v1109
    %v1868 = vunpack.c.l.b16 %v1110
    %v1869 = vunpack.c.h.b16 %v1110
    %v1870 = vunpack.c.l.b16 %v1111
    %v1871 = vunpack.c.h.b16 %v1111
    %v1872 = vunpack.c.l.b16 %v1112
    %v1873 = vunpack.c.h.b16 %v1112
    %v1874 = vunpack.c.l.b16 %v1113
    %v1875 = vunpack.c.h.b16 %v1113
    %v1876 = vunpack.c.l.b16 %v1114
    %v1877 = vunpack.c.h.b16 %v1114
    %v1878 = vunpack.c.l.b16 %v1115
    %v1879 = vunpack.c.h.b16 %v1115
    %v1880 = vunpack.c.l.b16 %v1116
    %v1881 = vunpack.c.h.b16 %v1116
    %v1882 = vunpack.c.l.b16 %v1117
    %v1883 = vunpack.c.h.b16 %v1117
    %v1884 = vunpack.c.l.b16 %v1118
    %v1885 = vunpack.c.h.b16 %v1118
    %v1886 = vunpack.c.l.b16 %v1119
    %v1887 = vunpack.c.h.b16 %v1119
    %v1888 = vunpack.c.l.b16 %v1120
    %v1889 = vunpack.c.h.b16 %v1120
    %v1890 = vunpack.c.l.b16 %v1121
    %v1891 = vunpack.c.h.b16 %v1121
    %v1892 = vunpack.c.l.b16 %v1122
    %v1893 = vunpack.c.h.b16 %v1122
    %v1894 = vunpack.c.l.b16 %v1123
    %v1895 = vunpack.c.h.b16 %v1123
    %v1896 = vunpack.c.l.b16 %v1124
    %v1897 = vunpack.c.h.b16 %v1124
    %v1898 = vunpack.c.l.b16 %v1125
    %v1899 = vunpack.c.h.b16 %v1125
    %v1900 = vunpack.c.l.b16 %v1126
    %v1901 = vunpack.c.h.b16 %v1126
    %v1902 = vunpack.c.l.b16 %v1127
    %v1903 = vunpack.c.h.b16 %v1127
    %v1904 = vunpack.c.l.b16 %v1128
    %v1905 = vunpack.c.h.b16 %v1128
    %v1906 = vunpack.c.l.b16 %v1129
    %v1907 = vunpack.c.h.b16 %v1129
    %v1908 = vunpack.c.l.b16 %v1130
    %v1909 = vunpack.c.h.b16 %v1130
    %v1910 = vunpack.c.l.b16 %v1131
    %v1911 = vunpack.c.h.b16 %v1131
    %v1912 = vunpack.c.l.b16 %v1132
    %v1913 = vunpack.c.h.b16 %v1132
    %v1914 = vunpack.c.l.b16 %v1133
    %v1915 = vunpack.c.h.b16 %v1133
    %v1916 = vunpack.c.l.b16 %v1134
    %v1917 = vunpack.c.h.b16 %v1134
    %v1918 = vunpack.c.l.b16 %v1135
    %v1919 = vunpack.c.h.b16 %v1135
    %v1920 = vunpack.c.l.b16 %v1136
    %v1921 = vunpack.c.h.b16 %v1136
    %v1922 = vunpack.c.l.b16 %v1137
    %v1923 = vunpack.c.h.b16 %v1137
    %v1924 = vunpack.c.l.b16 %v1138
    %v1925 = vunpack.c.h.b16 %v1138
    %v1926 = vunpack.c.l.b16 %v1139
    %v1927 = vunpack.c.h.b16 %v1139
    %v1928 = vunpack.c.l.b16 %v1140
    %v1929 = vunpack.c.h.b16 %v1140
    %v1930 = vunpack.c.l.b16 %v1141
    %v1931 = vunpack.c.h.b16 %v1141
    %v1932 = vunpack.c.l.b16 %v1142
    %v1933 = vunpack.c.h.b16 %v1142
    %v1934 = vunpack.c.l.b16 %v1143
    %v1935 = vunpack.c.h.b16 %v1143
    %v1936 = vunpack.c.l.b16 %v1144
    %v1937 = vunpack.c.h.b16 %v1144
    %v1938 = vunpack.c.l.b16 %v1145
    %v1939 = vunpack.c.h.b16 %v1145
    %v1940 = vunpack.c.l.b16 %v1146
    %v1941 = vunpack.c.h.b16 %v1146
    %v1942 = vunpack.c.l.b16 %v1147
    %v1943 = vunpack.c.h.b16 %v1147
    %v1944 = vunpack.c.l.b16 %v1148
    %v1945 = vunpack.c.h.b16 %v1148
    %v1946 = vunpack.c.l.b16 %v1149
    %v1947 = vunpack.c.h.b16 %v1149
    %v1948 = vunpack.c.l.b16 %v1150
    %v1949 = vunpack.c.h.b16 %v1150
    %v1950 = vunpack.c.l.b16 %v1151
    %v1951 = vunpack.c.h.b16 %v1151
    %v1952 = vunpack.c.l.b16 %v1152
    %v1953 = vunpack.c.h.b16 %v1152
    %v1954 = vunpack.c.l.b16 %v1153
    %v1955 = vunpack.c.h.b16 %v1153
    %v1956 = vunpack.c.l.b16 %v1154
    %v1957 = vunpack.c.h.b16 %v1154
    %v1958 = vunpack.c.l.b16 %v1155
    %v1959 = vunpack.c.h.b16 %v1155
    %v1960 = vunpack.c.l.b16 %v1156
    %v1961 = vunpack.c.h.b16 %v1156
    %v1962 = vunpack.c.l.b16 %v1157
    %v1963 = vunpack.c.h.b16 %v1157
    %v1964 = vunpack.c.l.b16 %v1158
    %v1965 = vunpack.c.h.b16 %v1158
    %v1966 = vunpack.c.l.b16 %v1159
    %v1967 = vunpack.c.h.b16 %v1159
    %v1968 = vunpack.c.l.b16 %v1160
    %v1969 = vunpack.c.h.b16 %v1160
    %v1970 = vunpack.c.l.b16 %v1161
    %v1971 = vunpack.c.h.b16 %v1161
    %v1972 = vpack.c.b16 %v1468, %v1460
    %v1973 = vpack.c.b16 %v1469, %v1461
    %v1974 = vpack.c.b16 %v1470, %v1462
    %v1975 = vpack.c.b16 %v1471, %v1463
    %v1976 = vpack.c.b16 %v1472, %v1464
    %v1977 = vpack.c.b16 %v1473, %v1465
    %v1978 = vpack.c.b16 %v1474, %v1466
    %v1979 = vpack.c.b16 %v1475, %v1467
    %v1980 = vpack.c.b16 %v1484, %v1476
    %v1981 = vpack.c.b16 %v1485, %v1477
    %v1982 = vpack.c.b16 %v1486, %v1478
    %v1983 = vpack.c.b16 %v1487, %v1479
    %v1984 = vpack.c.b16 %v1488, %v1480
    %v1985 = vpack.c.b16 %v1489, %v1481
    %v1986 = vpack.c.b16 %v1490, %v1482
    %v1987 = vpack.c.b16 %v1491, %v1483
    %v1988 = vpack.c.b16 %v1500, %v1492
    %v1989 = vpack.c.b16 %v1501, %v1493
    %v1990 = vpack.c.b16 %v1502, %v1494
    %v1991 = vpack.c.b16 %v1503, %v1495
    %v1992 = vpack.c.b16 %v1504, %v1496
    %v1993 = vpack.c.b16 %v1505, %v1497
    %v1994 = vpack.c.b16 %v1506, %v1498
    %v1995 = vpack.c.b16 %v1507, %v1499
    %v1996 = vpack.c.b16 %v1516, %v1508
    %v1997 = vpack.c.b16 %v1517, %v1509
    %v1998 = vpack.c.b16 %v1518, %v1510
    %v1999 = vpack.c.b16 %v1519, %v1511
    %v2000 = vpack.c.b16 %v1520, %v1512
    %v2001 = vpack.c.b16 %v1521, %v1513
    %v2002 = vpack.c.b16 %v1522, %v1514
    %v2003 = vpack.c.b16 %v1523, %v1515
    %v2004 = vpack.c.b16 %v1532, %v1524
    %v2005 = vpack.c.b16 %v1533, %v1525
    %v2006 = vpack.c.b16 %v1534, %v1526
    %v2007 = vpack.c.b16 %v1535, %v1527
    %v2008 = vpack.c.b16 %v1536, %v1528
    %v2009 = vpack.c.b16 %v1537, %v1529
    %v2010 = vpack.c.b16 %v1538, %v1530
    %v2011 = vpack.c.b16 %v1539, %v1531
    %v2012 = vpack.c.b16 %v1548, %v1540
    %v2013 = vpack.c.b16 %v1549, %v1541
    %v2014 = vpack.c.b16 %v1550, %v1542
    %v2015 = vpack.c.b16 %v1551, %v1543
    %v2016 = vpack.c.b16 %v1552, %v1544
    %v2017 = vpack.c.b16 %v1553, %v1545
    %v2018 = vpack.c.b16 %v1554, %v1546
    %v2019 = vpack.c.b16 %v1555, %v1547
    %v2020 = vpack.c.b16 %v1564, %v1556
    %v2021 = vpack.c.b16 %v1565, %v1557
    %v2022 = vpack.c.b16 %v1566, %v1558
    %v2023 = vpack.c.b16 %v1567, %v1559
    %v2024 = vpack.c.b16 %v1568, %v1560
    %v2025 = vpack.c.b16 %v1569, %v1561
    %v2026 = vpack.c.b16 %v1570, %v1562
    %v2027 = vpack.c.b16 %v1571, %v1563
    %v2028 = vpack.c.b16 %v1580, %v1572
    %v2029 = vpack.c.b16 %v1581, %v1573
    %v2030 = vpack.c.b16 %v1582, %v1574
    %v2031 = vpack.c.b16 %v1583, %v1575
    %v2032 = vpack.c.b16 %v1584, %v1576
    %v2033 = vpack.c.b16 %v1585, %v1577
    %v2034 = vpack.c.b16 %v1586, %v1578
    %v2035 = vpack.c.b16 %v1587, %v1579
    %v2036 = vpack.c.b16 %v1596, %v1588
    %v2037 = vpack.c.b16 %v1597, %v1589
    %v2038 = vpack.c.b16 %v1598, %v1590
    %v2039 = vpack.c.b16 %v1599, %v1591
    %v2040 = vpack.c.b16 %v1600, %v1592
    %v2041 = vpack.c.b16 %v1601, %v1593
    %v2042 = vpack.c.b16 %v1602, %v1594
    %v2043 = vpack.c.b16 %v1603, %v1595
    %v2044 = vpack.c.b16 %v1612, %v1604
    %v2045 = vpack.c.b16 %v1613, %v1605
    %v2046 = vpack.c.b16 %v1614, %v1606
    %v2047 = vpack.c.b16 %v1615, %v1607
    %v2048 = vpack.c.b16 %v1616, %v1608
    %v2049 = vpack.c.b16 %v1617, %v1609
    %v2050 = vpack.c.b16 %v1618, %v1610
    %v2051 = vpack.c.b16 %v1619, %v1611
    %v2052 = vpack.c.b16 %v1628, %v1620
    %v2053 = vpack.c.b16 %v1629, %v1621
    %v2054 = vpack.c.b16 %v1630, %v1622
    %v2055 = vpack.c.b16 %v1631, %v1623
    %v2056 = vpack.c.b16 %v1632, %v1624
    %v2057 = vpack.c.b16 %v1633, %v1625
    %v2058 = vpack.c.b16 %v1634, %v1626
    %v2059 = vpack.c.b16 %v1635, %v1627
    %v2060 = vpack.c.b16 %v1644, %v1636
    %v2061 = vpack.c.b16 %v1645, %v1637
    %v2062 = vpack.c.b16 %v1646, %v1638
    %v2063 = vpack.c.b16 %v1647, %v1639
    %v2064 = vpack.c.b16 %v1648, %v1640
    %v2065 = vpack.c.b16 %v1649, %v1641
    %v2066 = vpack.c.b16 %v1650, %v1642
    %v2067 = vpack.c.b16 %v1651, %v1643
    %v2068 = vpack.c.b16 %v1660, %v1652
    %v2069 = vpack.c.b16 %v1661, %v1653
    %v2070 = vpack.c.b16 %v1662, %v1654
    %v2071 = vpack.c.b16 %v1663, %v1655
    %v2072 = vpack.c.b16 %v1664, %v1656
    %v2073 = vpack.c.b16 %v1665, %v1657
    %v2074 = vpack.c.b16 %v1666, %v1658
    %v2075 = vpack.c.b16 %v1667, %v1659
    %v2076 = vpack.c.b16 %v1676, %v1668
    %v2077 = vpack.c.b16 %v1677, %v1669
    %v2078 = vpack.c.b16 %v1678, %v1670
    %v2079 = vpack.c.b16 %v1679, %v1671
    %v2080 = vpack.c.b16 %v1680, %v1672
    %v2081 = vpack.c.b16 %v1681, %v1673
    %v2082 = vpack.c.b16 %v1682, %v1674
    %v2083 = vpack.c.b16 %v1683, %v1675
    %v2084 = vpack.c.b16 %v1692, %v1684
    %v2085 = vpack.c.b16 %v1693, %v1685
    %v2086 = vpack.c.b16 %v1694, %v1686
    %v2087 = vpack.c.b16 %v1695, %v1687
    %v2088 = vpack.c.b16 %v1696, %v1688
    %v2089 = vpack.c.b16 %v1697, %v1689
    %v2090 = vpack.c.b16 %v1698, %v1690
    %v2091 = vpack.c.b16 %v1699, %v1691
    %v2092 = vpack.c.b16 %v1708, %v1700
    %v2093 = vpack.c.b16 %v1709, %v1701
    %v2094 = vpack.c.b16 %v1710, %v1702
    %v2095 = vpack.c.b16 %v1711, %v1703
    %v2096 = vpack.c.b16 %v1712, %v1704
    %v2097 = vpack.c.b16 %v1713, %v1705
    %v2098 = vpack.c.b16 %v1714, %v1706
    %v2099 = vpack.c.b16 %v1715, %v1707
    %v2100 = vpack.c.b16 %v1724, %v1716
    %v2101 = vpack.c.b16 %v1725, %v1717
    %v2102 = vpack.c.b16 %v1726, %v1718
    %v2103 = vpack.c.b16 %v1727, %v1719
    %v2104 = vpack.c.b16 %v1728, %v1720
    %v2105 = vpack.c.b16 %v1729, %v1721
    %v2106 = vpack.c.b16 %v1730, %v1722
    %v2107 = vpack.c.b16 %v1731, %v1723
    %v2108 = vpack.c.b16 %v1740, %v1732
    %v2109 = vpack.c.b16 %v1741, %v1733
    %v2110 = vpack.c.b16 %v1742, %v1734
    %v2111 = vpack.c.b16 %v1743, %v1735
    %v2112 = vpack.c.b16 %v1744, %v1736
    %v2113 = vpack.c.b16 %v1745, %v1737
    %v2114 = vpack.c.b16 %v1746, %v1738
    %v2115 = vpack.c.b16 %v1747, %v1739
    %v2116 = vpack.c.b16 %v1756, %v1748
    %v2117 = vpack.c.b16 %v1757, %v1749
    %v2118 = vpack.c.b16 %v1758, %v1750
    %v2119 = vpack.c.b16 %v1759, %v1751
    %v2120 = vpack.c.b16 %v1760, %v1752
    %v2121 = vpack.c.b16 %v1761, %v1753
    %v2122 = vpack.c.b16 %v1762, %v1754
    %v2123 = vpack.c.b16 %v1763, %v1755
    %v2124 = vpack.c.b16 %v1772, %v1764
    %v2125 = vpack.c.b16 %v1773, %v1765
    %v2126 = vpack.c.b16 %v1774, %v1766
    %v2127 = vpack.c.b16 %v1775, %v1767
    %v2128 = vpack.c.b16 %v1776, %v1768
    %v2129 = vpack.c.b16 %v1777, %v1769
    %v2130 = vpack.c.b16 %v1778, %v1770
    %v2131 = vpack.c.b16 %v1779, %v1771
    %v2132 = vpack.c.b16 %v1788, %v1780
    %v2133 = vpack.c.b16 %v1789, %v1781
    %v2134 = vpack.c.b16 %v1790, %v1782
    %v2135 = vpack.c.b16 %v1791, %v1783
    %v2136 = vpack.c.b16 %v1792, %v1784
    %v2137 = vpack.c.b16 %v1793, %v1785
    %v2138 = vpack.c.b16 %v1794, %v1786
    %v2139 = vpack.c.b16 %v1795, %v1787
    %v2140 = vpack.c.b16 %v1804, %v1796
    %v2141 = vpack.c.b16 %v1805, %v1797
    %v2142 = vpack.c.b16 %v1806, %v1798
    %v2143 = vpack.c.b16 %v1807, %v1799
    %v2144 = vpack.c.b16 %v1808, %v1800
    %v2145 = vpack.c.b16 %v1809, %v1801
    %v2146 = vpack.c.b16 %v1810, %v1802
    %v2147 = vpack.c.b16 %v1811, %v1803
    %v2148 = vpack.c.b16 %v1820, %v1812
    %v2149 = vpack.c.b16 %v1821, %v1813
    %v2150 = vpack.c.b16 %v1822, %v1814
    %v2151 = vpack.c.b16 %v1823, %v1815
    %v2152 = vpack.c.b16 %v1824, %v1816
    %v2153 = vpack.c.b16 %v1825, %v1817
    %v2154 = vpack.c.b16 %v1826, %v1818
    %v2155 = vpack.c.b16 %v1827, %v1819
    %v2156 = vpack.c.b16 %v1836, %v1828
    %v2157 = vpack.c.b16 %v1837, %v1829
    %v2158 = vpack.c.b16 %v1838, %v1830
    %v2159 = vpack.c.b16 %v1839, %v1831
    %v2160 = vpack.c.b16 %v1840, %v1832
    %v2161 = vpack.c.b16 %v1841, %v1833
    %v2162 = vpack.c.b16 %v1842, %v1834
    %v2163 = vpack.c.b16 %v1843, %v1835
    %v2164 = vpack.c.b16 %v1852, %v1844
    %v2165 = vpack.c.b16 %v1853, %v1845
    %v2166 = vpack.c.b16 %v1854, %v1846
    %v2167 = vpack.c.b16 %v1855, %v1847
    %v2168 = vpack.c.b16 %v1856, %v1848
    %v2169 = vpack.c.b16 %v1857, %v1849
    %v2170 = vpack.c.b16 %v1858, %v1850
    %v2171 = vpack.c.b16 %v1859, %v1851
    %v2172 = vpack.c.b16 %v1868, %v1860
    %v2173 = vpack.c.b16 %v1869, %v1861
    %v2174 = vpack.c.b16 %v1870, %v1862
    %v2175 = vpack.c.b16 %v1871, %v1863
    %v2176 = vpack.c.b16 %v1872, %v1864
    %v2177 = vpack.c.b16 %v1873, %v1865
    %v2178 = vpack.c.b16 %v1874, %v1866
    %v2179 = vpack.c.b16 %v1875, %v1867
    %v2180 = vpack.c.b16 %v1884, %v1876
    %v2181 = vpack.c.b16 %v1885, %v1877
    %v2182 = vpack.c.b16 %v1886, %v1878
    %v2183 = vpack.c.b16 %v1887, %v1879
    %v2184 = vpack.c.b16 %v1888, %v1880
    %v2185 = vpack.c.b16 %v1889, %v1881
    %v2186 = vpack.c.b16 %v1890, %v1882
    %v2187 = vpack.c.b16 %v1891, %v1883
    %v2188 = vpack.c.b16 %v1900, %v1892
    %v2189 = vpack.c.b16 %v1901, %v1893
    %v2190 = vpack.c.b16 %v1902, %v1894
    %v2191 = vpack.c.b16 %v1903, %v1895
    %v2192 = vpack.c.b16 %v1904, %v1896
    %v2193 = vpack.c.b16 %v1905, %v1897
    %v2194 = vpack.c.b16 %v1906, %v1898
    %v2195 = vpack.c.b16 %v1907, %v1899
    %v2196 = vpack.c.b16 %v1916, %v1908
    %v2197 = vpack.c.b16 %v1917, %v1909
    %v2198 = vpack.c.b16 %v1918, %v1910
    %v2199 = vpack.c.b16 %v1919, %v1911
    %v2200 = vpack.c.b16 %v1920, %v1912
    %v2201 = vpack.c.b16 %v1921, %v1913
    %v2202 = vpack.c.b16 %v1922, %v1914
    %v2203 = vpack.c.b16 %v1923, %v1915
    %v2204 = vpack.c.b16 %v1932, %v1924
    %v2205 = vpack.c.b16 %v1933, %v1925
    %v2206 = vpack.c.b16 %v1934, %v1926
    %v2207 = vpack.c.b16 %v1935, %v1927
    %v2208 = vpack.c.b16 %v1936, %v1928
    %v2209 = vpack.c.b16 %v1937, %v1929
    %v2210 = vpack.c.b16 %v1938, %v1930
    %v2211 = vpack.c.b16 %v1939, %v1931
    %v2212 = vpack.c.b16 %v1948, %v1940
    %v2213 = vpack.c.b16 %v1949, %v1941
    %v2214 = vpack.c.b16 %v1950, %v1942
    %v2215 = vpack.c.b16 %v1951, %v1943
    %v2216 = vpack.c.b16 %v1952, %v1944
    %v2217 = vpack.c.b16 %v1953, %v1945
    %v2218 = vpack.c.b16 %v1954, %v1946
    %v2219 = vpack.c.b16 %v1955, %v1947
    %v2220 = vpack.c.b16 %v1964, %v1956
    %v2221 = vpack.c.b16 %v1965, %v1957
    %v2222 = vpack.c.b16 %v1966, %v1958
    %v2223 = vpack.c.b16 %v1967, %v1959
    %v2224 = vpack.c.b16 %v1968, %v1960
    %v2225 = vpack.c.b16 %v1969, %v1961
    %v2226 = vpack.c.b16 %v1970, %v1962
    %v2227 = vpack.c.b16 %v1971, %v1963
    %2484 = vmatprep.subr.bf16.mxu0 %v2029
    %2485 = vmatpush1.bf16.msra.mxu0 %v2028
    %2486 = vmatprep.subr.bf16.mxu0 %v2021
    %2487 = vmatpush1.bf16.msra.mxu0 %v2020
    %2488 = vmatprep.subr.bf16.mxu0 %v2013
    %2489 = vmatpush1.bf16.msra.mxu0 %v2012
    %2490 = vmatprep.subr.bf16.mxu0 %v2005
    %2491 = vmatpush1.bf16.msra.mxu0 %v2004
    %2492 = vmatprep.subr.bf16.mxu0 %v1997
    %2493 = vmatpush1.bf16.msra.mxu0 %v1996
    %2494 = vmatprep.subr.bf16.mxu0 %v1989
    %2495 = vmatpush1.bf16.msra.mxu0 %v1988
    %2496 = vmatprep.subr.bf16.mxu0 %v1981
    %2497 = vmatpush1.bf16.msra.mxu0 %v1980
    %2498 = vmatprep.subr.bf16.mxu0 %v1973
    %2499 = vmatpush1.bf16.msra.mxu0 %v1972
    %2500 = vmatprep.subr.bf16.mxu0 %v2093
    %2501 = vmatpush2.bf16.msra.mxu0 %v2092
    %2502 = vmatprep.subr.bf16.mxu0 %v2085
    %2503 = vmatpush2.bf16.msra.mxu0 %v2084
    %2504 = vmatprep.subr.bf16.mxu0 %v2077
    %2505 = vmatpush2.bf16.msra.mxu0 %v2076
    %2506 = vmatprep.subr.bf16.mxu0 %v2069
    %2507 = vmatpush2.bf16.msra.mxu0 %v2068
    %2508 = vmatprep.subr.bf16.mxu0 %v2061
    %2509 = vmatpush2.bf16.msra.mxu0 %v2060
    %2510 = vmatprep.subr.bf16.mxu0 %v2053
    %2511 = vmatpush2.bf16.msra.mxu0 %v2052
    %2512 = vmatprep.subr.bf16.mxu0 %v2045
    %2513 = vmatpush2.bf16.msra.mxu0 %v2044
    %2514 = vmatprep.subr.bf16.mxu0 %v2037
    %2515 = vmatpush2.bf16.msra.mxu0 %v2036
    %2516 = vmatprep.mubr.bf16.mxu0 %v903
    %2517 = vmatmul.mubr.bf16.gmra.mxu0 %v902
    %v2518 = vpop.f32.mrf.mxu0
    %v2519 = vadd.f32 %v1167, %v2518
    %v2520 = vpop.f32.mrf.mxu0
    %v2521 = vadd.f32 %v1171, %v2520
    %v2522 = vpop.f32.mrf.mxu0
    %v2523 = vpop.f32.mrf.mxu0
    %2524 = vdwg.mxu0
    %2525 = vmatprep.subr.bf16.mxu0 %v2157
    %2526 = vmatpush1.bf16.msra.mxu0 %v2156
    %2527 = vmatprep.subr.bf16.mxu0 %v2149
    %2528 = vmatpush1.bf16.msra.mxu0 %v2148
    %2529 = vmatprep.subr.bf16.mxu0 %v2141
    %2530 = vmatpush1.bf16.msra.mxu0 %v2140
    %2531 = vmatprep.subr.bf16.mxu0 %v2133
    %2532 = vmatpush1.bf16.msra.mxu0 %v2132
    %2533 = vmatprep.subr.bf16.mxu0 %v2125
    %2534 = vmatpush1.bf16.msra.mxu0 %v2124
    %2535 = vmatprep.subr.bf16.mxu0 %v2117
    %2536 = vmatpush1.bf16.msra.mxu0 %v2116
    %2537 = vmatprep.subr.bf16.mxu0 %v2109
    %2538 = vmatpush1.bf16.msra.mxu0 %v2108
    %2539 = vmatprep.subr.bf16.mxu0 %v2101
    %2540 = vmatpush1.bf16.msra.mxu0 %v2100
    %2541 = vmatprep.subr.bf16.mxu0 %v2221
    %2542 = vmatpush2.bf16.msra.mxu0 %v2220
    %2543 = vmatprep.subr.bf16.mxu0 %v2213
    %2544 = vmatpush2.bf16.msra.mxu0 %v2212
    %2545 = vmatprep.subr.bf16.mxu0 %v2205
    %2546 = vmatpush2.bf16.msra.mxu0 %v2204
    %2547 = vmatprep.subr.bf16.mxu0 %v2197
    %2548 = vmatpush2.bf16.msra.mxu0 %v2196
    %2549 = vmatprep.subr.bf16.mxu0 %v2189
    %2550 = vmatpush2.bf16.msra.mxu0 %v2188
    %2551 = vmatprep.subr.bf16.mxu0 %v2181
    %2552 = vmatpush2.bf16.msra.mxu0 %v2180
    %2553 = vmatprep.subr.bf16.mxu0 %v2173
    %2554 = vmatpush2.bf16.msra.mxu0 %v2172
    %2555 = vmatprep.subr.bf16.mxu0 %v2165
    %2556 = vmatpush2.bf16.msra.mxu0 %v2164
    %2557 = vmatprep.mubr.bf16.mxu0 %v905
    %2558 = vmatmul.mubr.bf16.gmra.mxu0 %v904
    %v2559 = vpop.f32.mrf.mxu0
    %v2560 = vadd.f32 %v2519, %v2559
    %v2561 = vpop.f32.mrf.mxu0
    %v2562 = vadd.f32 %v2521, %v2561
    %v2563 = vpop.f32.mrf.mxu0
    %v2564 = vpop.f32.mrf.mxu0
    %2565 = vdwg.mxu0
    %2566 = vmatprep.subr.bf16.mxu0 %v2031
    %2567 = vmatpush1.bf16.msra.mxu0 %v2030
    %2568 = vmatprep.subr.bf16.mxu0 %v2023
    %2569 = vmatpush1.bf16.msra.mxu0 %v2022
    %2570 = vmatprep.subr.bf16.mxu0 %v2015
    %2571 = vmatpush1.bf16.msra.mxu0 %v2014
    %2572 = vmatprep.subr.bf16.mxu0 %v2007
    %2573 = vmatpush1.bf16.msra.mxu0 %v2006
    %2574 = vmatprep.subr.bf16.mxu0 %v1999
    %2575 = vmatpush1.bf16.msra.mxu0 %v1998
    %2576 = vmatprep.subr.bf16.mxu0 %v1991
    %2577 = vmatpush1.bf16.msra.mxu0 %v1990
    %2578 = vmatprep.subr.bf16.mxu0 %v1983
    %2579 = vmatpush1.bf16.msra.mxu0 %v1982
    %2580 = vmatprep.subr.bf16.mxu0 %v1975
    %2581 = vmatpush1.bf16.msra.mxu0 %v1974
    %2582 = vmatprep.subr.bf16.mxu0 %v2095
    %2583 = vmatpush2.bf16.msra.mxu0 %v2094
    %2584 = vmatprep.subr.bf16.mxu0 %v2087
    %2585 = vmatpush2.bf16.msra.mxu0 %v2086
    %2586 = vmatprep.subr.bf16.mxu0 %v2079
    %2587 = vmatpush2.bf16.msra.mxu0 %v2078
    %2588 = vmatprep.subr.bf16.mxu0 %v2071
    %2589 = vmatpush2.bf16.msra.mxu0 %v2070
    %2590 = vmatprep.subr.bf16.mxu0 %v2063
    %2591 = vmatpush2.bf16.msra.mxu0 %v2062
    %2592 = vmatprep.subr.bf16.mxu0 %v2055
    %2593 = vmatpush2.bf16.msra.mxu0 %v2054
    %2594 = vmatprep.subr.bf16.mxu0 %v2047
    %2595 = vmatpush2.bf16.msra.mxu0 %v2046
    %2596 = vmatprep.subr.bf16.mxu0 %v2039
    %2597 = vmatpush2.bf16.msra.mxu0 %v2038
    %2598 = vmatprep.mubr.bf16.mxu0 %v903
    %2599 = vmatmul.mubr.bf16.gmra.mxu0 %v902
    %v2600 = vpop.f32.mrf.mxu0
    %v2601 = vadd.f32 %v1175, %v2600
    %v2602 = vpop.f32.mrf.mxu0
    %v2603 = vadd.f32 %v1179, %v2602
    %v2604 = vpop.f32.mrf.mxu0
    %v2605 = vpop.f32.mrf.mxu0
    %2606 = vdwg.mxu0
    %2607 = vmatprep.subr.bf16.mxu0 %v2159
    %2608 = vmatpush1.bf16.msra.mxu0 %v2158
    %2609 = vmatprep.subr.bf16.mxu0 %v2151
    %2610 = vmatpush1.bf16.msra.mxu0 %v2150
    %2611 = vmatprep.subr.bf16.mxu0 %v2143
    %2612 = vmatpush1.bf16.msra.mxu0 %v2142
    %2613 = vmatprep.subr.bf16.mxu0 %v2135
    %2614 = vmatpush1.bf16.msra.mxu0 %v2134
    %2615 = vmatprep.subr.bf16.mxu0 %v2127
    %2616 = vmatpush1.bf16.msra.mxu0 %v2126
    %2617 = vmatprep.subr.bf16.mxu0 %v2119
    %2618 = vmatpush1.bf16.msra.mxu0 %v2118
    %2619 = vmatprep.subr.bf16.mxu0 %v2111
    %2620 = vmatpush1.bf16.msra.mxu0 %v2110
    %2621 = vmatprep.subr.bf16.mxu0 %v2103
    %2622 = vmatpush1.bf16.msra.mxu0 %v2102
    %2623 = vmatprep.subr.bf16.mxu0 %v2223
    %2624 = vmatpush2.bf16.msra.mxu0 %v2222
    %2625 = vmatprep.subr.bf16.mxu0 %v2215
    %2626 = vmatpush2.bf16.msra.mxu0 %v2214
    %2627 = vmatprep.subr.bf16.mxu0 %v2207
    %2628 = vmatpush2.bf16.msra.mxu0 %v2206
    %2629 = vmatprep.subr.bf16.mxu0 %v2199
    %2630 = vmatpush2.bf16.msra.mxu0 %v2198
    %2631 = vmatprep.subr.bf16.mxu0 %v2191
    %2632 = vmatpush2.bf16.msra.mxu0 %v2190
    %2633 = vmatprep.subr.bf16.mxu0 %v2183
    %2634 = vmatpush2.bf16.msra.mxu0 %v2182
    %2635 = vmatprep.subr.bf16.mxu0 %v2175
    %2636 = vmatpush2.bf16.msra.mxu0 %v2174
    %2637 = vmatprep.subr.bf16.mxu0 %v2167
    %2638 = vmatpush2.bf16.msra.mxu0 %v2166
    %2639 = vmatprep.mubr.bf16.mxu0 %v905
    %2640 = vmatmul.mubr.bf16.gmra.mxu0 %v904
    %v2641 = vpop.f32.mrf.mxu0
    %v2642 = vadd.f32 %v2601, %v2641
    %v2643 = vpop.f32.mrf.mxu0
    %v2644 = vadd.f32 %v2603, %v2643
    %v2645 = vpop.f32.mrf.mxu0
    %v2646 = vpop.f32.mrf.mxu0
    %2647 = vdwg.mxu0
    %2648 = vmatprep.subr.bf16.mxu0 %v2033
    %2649 = vmatpush1.bf16.msra.mxu0 %v2032
    %2650 = vmatprep.subr.bf16.mxu0 %v2025
    %2651 = vmatpush1.bf16.msra.mxu0 %v2024
    %2652 = vmatprep.subr.bf16.mxu0 %v2017
    %2653 = vmatpush1.bf16.msra.mxu0 %v2016
    %2654 = vmatprep.subr.bf16.mxu0 %v2009
    %2655 = vmatpush1.bf16.msra.mxu0 %v2008
    %2656 = vmatprep.subr.bf16.mxu0 %v2001
    %2657 = vmatpush1.bf16.msra.mxu0 %v2000
    %2658 = vmatprep.subr.bf16.mxu0 %v1993
    %2659 = vmatpush1.bf16.msra.mxu0 %v1992
    %2660 = vmatprep.subr.bf16.mxu0 %v1985
    %2661 = vmatpush1.bf16.msra.mxu0 %v1984
    %2662 = vmatprep.subr.bf16.mxu0 %v1977
    %2663 = vmatpush1.bf16.msra.mxu0 %v1976
    %2664 = vmatprep.subr.bf16.mxu0 %v2097
    %2665 = vmatpush2.bf16.msra.mxu0 %v2096
    %2666 = vmatprep.subr.bf16.mxu0 %v2089
    %2667 = vmatpush2.bf16.msra.mxu0 %v2088
    %2668 = vmatprep.subr.bf16.mxu0 %v2081
    %2669 = vmatpush2.bf16.msra.mxu0 %v2080
    %2670 = vmatprep.subr.bf16.mxu0 %v2073
    %2671 = vmatpush2.bf16.msra.mxu0 %v2072
    %2672 = vmatprep.subr.bf16.mxu0 %v2065
    %2673 = vmatpush2.bf16.msra.mxu0 %v2064
    %2674 = vmatprep.subr.bf16.mxu0 %v2057
    %2675 = vmatpush2.bf16.msra.mxu0 %v2056
    %2676 = vmatprep.subr.bf16.mxu0 %v2049
    %2677 = vmatpush2.bf16.msra.mxu0 %v2048
    %2678 = vmatprep.subr.bf16.mxu0 %v2041
    %2679 = vmatpush2.bf16.msra.mxu0 %v2040
    %2680 = vmatprep.mubr.bf16.mxu0 %v903
    %2681 = vmatmul.mubr.bf16.gmra.mxu0 %v902
    %v2682 = vpop.f32.mrf.mxu0
    %v2683 = vadd.f32 %v1183, %v2682
    %v2684 = vpop.f32.mrf.mxu0
    %v2685 = vadd.f32 %v1187, %v2684
    %v2686 = vpop.f32.mrf.mxu0
    %v2687 = vpop.f32.mrf.mxu0
    %2688 = vdwg.mxu0
    %2689 = vmatprep.subr.bf16.mxu0 %v2161
    %2690 = vmatpush1.bf16.msra.mxu0 %v2160
    %2691 = vmatprep.subr.bf16.mxu0 %v2153
    %2692 = vmatpush1.bf16.msra.mxu0 %v2152
    %2693 = vmatprep.subr.bf16.mxu0 %v2145
    %2694 = vmatpush1.bf16.msra.mxu0 %v2144
    %2695 = vmatprep.subr.bf16.mxu0 %v2137
    %2696 = vmatpush1.bf16.msra.mxu0 %v2136
    %2697 = vmatprep.subr.bf16.mxu0 %v2129
    %2698 = vmatpush1.bf16.msra.mxu0 %v2128
    %2699 = vmatprep.subr.bf16.mxu0 %v2121
    %2700 = vmatpush1.bf16.msra.mxu0 %v2120
    %2701 = vmatprep.subr.bf16.mxu0 %v2113
    %2702 = vmatpush1.bf16.msra.mxu0 %v2112
    %2703 = vmatprep.subr.bf16.mxu0 %v2105
    %2704 = vmatpush1.bf16.msra.mxu0 %v2104
    %2705 = vmatprep.subr.bf16.mxu0 %v2225
    %2706 = vmatpush2.bf16.msra.mxu0 %v2224
    %2707 = vmatprep.subr.bf16.mxu0 %v2217
    %2708 = vmatpush2.bf16.msra.mxu0 %v2216
    %2709 = vmatprep.subr.bf16.mxu0 %v2209
    %2710 = vmatpush2.bf16.msra.mxu0 %v2208
    %2711 = vmatprep.subr.bf16.mxu0 %v2201
    %2712 = vmatpush2.bf16.msra.mxu0 %v2200
    %2713 = vmatprep.subr.bf16.mxu0 %v2193
    %2714 = vmatpush2.bf16.msra.mxu0 %v2192
    %2715 = vmatprep.subr.bf16.mxu0 %v2185
    %2716 = vmatpush2.bf16.msra.mxu0 %v2184
    %2717 = vmatprep.subr.bf16.mxu0 %v2177
    %2718 = vmatpush2.bf16.msra.mxu0 %v2176
    %2719 = vmatprep.subr.bf16.mxu0 %v2169
    %2720 = vmatpush2.bf16.msra.mxu0 %v2168
    %2721 = vmatprep.mubr.bf16.mxu0 %v905
    %2722 = vmatmul.mubr.bf16.gmra.mxu0 %v904
    %v2723 = vpop.f32.mrf.mxu0
    %v2724 = vadd.f32 %v2683, %v2723
    %v2725 = vpop.f32.mrf.mxu0
    %v2726 = vadd.f32 %v2685, %v2725
    %v2727 = vpop.f32.mrf.mxu0
    %v2728 = vpop.f32.mrf.mxu0
    %2729 = vdwg.mxu0
    %2730 = vmatprep.subr.bf16.mxu0 %v2035
    %2731 = vmatpush1.bf16.msra.mxu0 %v2034
    %2732 = vmatprep.subr.bf16.mxu0 %v2027
    %2733 = vmatpush1.bf16.msra.mxu0 %v2026
    %2734 = vmatprep.subr.bf16.mxu0 %v2019
    %2735 = vmatpush1.bf16.msra.mxu0 %v2018
    %2736 = vmatprep.subr.bf16.mxu0 %v2011
    %2737 = vmatpush1.bf16.msra.mxu0 %v2010
    %2738 = vmatprep.subr.bf16.mxu0 %v2003
    %2739 = vmatpush1.bf16.msra.mxu0 %v2002
    %2740 = vmatprep.subr.bf16.mxu0 %v1995
    %2741 = vmatpush1.bf16.msra.mxu0 %v1994
    %2742 = vmatprep.subr.bf16.mxu0 %v1987
    %2743 = vmatpush1.bf16.msra.mxu0 %v1986
    %2744 = vmatprep.subr.bf16.mxu0 %v1979
    %2745 = vmatpush1.bf16.msra.mxu0 %v1978
    %2746 = vmatprep.subr.bf16.mxu0 %v2099
    %2747 = vmatpush2.bf16.msra.mxu0 %v2098
    %2748 = vmatprep.subr.bf16.mxu0 %v2091
    %2749 = vmatpush2.bf16.msra.mxu0 %v2090
    %2750 = vmatprep.subr.bf16.mxu0 %v2083
    %2751 = vmatpush2.bf16.msra.mxu0 %v2082
    %2752 = vmatprep.subr.bf16.mxu0 %v2075
    %2753 = vmatpush2.bf16.msra.mxu0 %v2074
    %2754 = vmatprep.subr.bf16.mxu0 %v2067
    %2755 = vmatpush2.bf16.msra.mxu0 %v2066
    %2756 = vmatprep.subr.bf16.mxu0 %v2059
    %2757 = vmatpush2.bf16.msra.mxu0 %v2058
    %2758 = vmatprep.subr.bf16.mxu0 %v2051
    %2759 = vmatpush2.bf16.msra.mxu0 %v2050
    %2760 = vmatprep.subr.bf16.mxu0 %v2043
    %2761 = vmatpush2.bf16.msra.mxu0 %v2042
    %2762 = vmatprep.mubr.bf16.mxu0 %v903
    %2763 = vmatmul.mubr.bf16.gmra.mxu0 %v902
    %v2764 = vpop.f32.mrf.mxu0
    %v2765 = vadd.f32 %v1191, %v2764
    %v2766 = vpop.f32.mrf.mxu0
    %v2767 = vadd.f32 %v1195, %v2766
    %v2768 = vpop.f32.mrf.mxu0
    %v2769 = vpop.f32.mrf.mxu0
    %2770 = vdwg.mxu0
    %2771 = vmatprep.subr.bf16.mxu0 %v2163
    %2772 = vmatpush1.bf16.msra.mxu0 %v2162
    %2773 = vmatprep.subr.bf16.mxu0 %v2155
    %2774 = vmatpush1.bf16.msra.mxu0 %v2154
    %2775 = vmatprep.subr.bf16.mxu0 %v2147
    %2776 = vmatpush1.bf16.msra.mxu0 %v2146
    %2777 = vmatprep.subr.bf16.mxu0 %v2139
    %2778 = vmatpush1.bf16.msra.mxu0 %v2138
    %2779 = vmatprep.subr.bf16.mxu0 %v2131
    %2780 = vmatpush1.bf16.msra.mxu0 %v2130
    %2781 = vmatprep.subr.bf16.mxu0 %v2123
    %2782 = vmatpush1.bf16.msra.mxu0 %v2122
    %2783 = vmatprep.subr.bf16.mxu0 %v2115
    %2784 = vmatpush1.bf16.msra.mxu0 %v2114
    %2785 = vmatprep.subr.bf16.mxu0 %v2107
    %2786 = vmatpush1.bf16.msra.mxu0 %v2106
    %2787 = vmatprep.subr.bf16.mxu0 %v2227
    %2788 = vmatpush2.bf16.msra.mxu0 %v2226
    %2789 = vmatprep.subr.bf16.mxu0 %v2219
    %2790 = vmatpush2.bf16.msra.mxu0 %v2218
    %2791 = vmatprep.subr.bf16.mxu0 %v2211
    %2792 = vmatpush2.bf16.msra.mxu0 %v2210
    %2793 = vmatprep.subr.bf16.mxu0 %v2203
    %2794 = vmatpush2.bf16.msra.mxu0 %v2202
    %2795 = vmatprep.subr.bf16.mxu0 %v2195
    %2796 = vmatpush2.bf16.msra.mxu0 %v2194
    %2797 = vmatprep.subr.bf16.mxu0 %v2187
    %2798 = vmatpush2.bf16.msra.mxu0 %v2186
    %2799 = vmatprep.subr.bf16.mxu0 %v2179
    %2800 = vmatpush2.bf16.msra.mxu0 %v2178
    %2801 = vmatprep.subr.bf16.mxu0 %v2171
    %2802 = vmatpush2.bf16.msra.mxu0 %v2170
    %2803 = vmatprep.mubr.bf16.mxu0 %v905
    %2804 = vmatmul.mubr.bf16.gmra.mxu0 %v904
    %v2805 = vpop.f32.mrf.mxu0
    %v2806 = vadd.f32 %v2765, %v2805
    %v2807 = vpop.f32.mrf.mxu0
    %v2808 = vadd.f32 %v2767, %v2807
    %v2809 = vpop.f32.mrf.mxu0
    %v2810 = vpop.f32.mrf.mxu0
    %2811 = vdwg.mxu0
    %v2812 = vmax.f32 %v2560, 0.0
    %v2813 = vmax.f32 %v2562, 0.0
    %v2814 = vmax.f32 %v2642, 0.0
    %v2815 = vmax.f32 %v2644, 0.0
    %v2816 = vmax.f32 %v2724, 0.0
    %v2817 = vmax.f32 %v2726, 0.0
    %v2818 = vmax.f32 %v2806, 0.0
    %v2819 = vmax.f32 %v2808, 0.0
    %v2820 = vpack.c.bf16 %v2812, %v2812
    %v2821 = vpack.c.bf16 %v2813, %v2813
    %v2822 = vpack.c.bf16 %v2814, %v2814
    %v2823 = vpack.c.bf16 %v2815, %v2815
    %v2824 = vpack.c.bf16 %v2816, %v2816
    %v2825 = vpack.c.bf16 %v2817, %v2817
    %v2826 = vpack.c.bf16 %v2818, %v2818
    %v2827 = vpack.c.bf16 %v2819, %v2819
    %v2828 = vld [vmem:[#allocation11] sm:$0xff]
    %v2829 = vld [vmem:[#allocation11 + $0x8] sm:$0xff]
    %v2830 = vld [vmem:[#allocation11 + $0x10] sm:$0xff]
    %v2831 = vld [vmem:[#allocation11 + $0x18] sm:$0xff]
    %v2832 = vld [vmem:[#allocation11 + $0x20] sm:$0xff]
    %v2833 = vld [vmem:[#allocation11 + $0x28] sm:$0xff]
    %v2834 = vld [vmem:[#allocation11 + $0x30] sm:$0xff]
    %v2835 = vld [vmem:[#allocation11 + $0x38] sm:$0xff]
    %v2836 = vld [vmem:[#allocation11 + $0x40] sm:$0xff]
    %v2837 = vld [vmem:[#allocation11 + $0x48] sm:$0xff]
    %v2838 = vld [vmem:[#allocation11 + $0x50] sm:$0xff]
    %v2839 = vld [vmem:[#allocation11 + $0x58] sm:$0xff]
    %v2840 = vld [vmem:[#allocation11 + $0x60] sm:$0xff]
    %v2841 = vld [vmem:[#allocation11 + $0x68] sm:$0xff]
    %v2842 = vld [vmem:[#allocation11 + $0x70] sm:$0xff]
    %v2843 = vld [vmem:[#allocation11 + $0x78] sm:$0xff]
    %v2844 = vld [vmem:[#allocation11 + $0x80] sm:$0xff]
    %v2845 = vld [vmem:[#allocation11 + $0x88] sm:$0xff]
    %v2846 = vld [vmem:[#allocation11 + $0x90] sm:$0xff]
    %v2847 = vld [vmem:[#allocation11 + $0x98] sm:$0xff]
    %v2848 = vld [vmem:[#allocation11 + $0xa0] sm:$0xff]
    %v2849 = vld [vmem:[#allocation11 + $0xa8] sm:$0xff]
    %v2850 = vld [vmem:[#allocation11 + $0xb0] sm:$0xff]
    %v2851 = vld [vmem:[#allocation11 + $0xb8] sm:$0xff]
    %v2852 = vld [vmem:[#allocation11 + $0xc0] sm:$0xff]
    %v2853 = vld [vmem:[#allocation11 + $0xc8] sm:$0xff]
    %v2854 = vld [vmem:[#allocation11 + $0xd0] sm:$0xff]
    %v2855 = vld [vmem:[#allocation11 + $0xd8] sm:$0xff]
    %v2856 = vld [vmem:[#allocation11 + $0xe0] sm:$0xff]
    %v2857 = vld [vmem:[#allocation11 + $0xe8] sm:$0xff]
    %v2858 = vld [vmem:[#allocation11 + $0xf0] sm:$0xff]
    %v2859 = vld [vmem:[#allocation11 + $0xf8] sm:$0xff]
    %v2860 = vld [vmem:[#allocation11 + $0x100] sm:$0xff]
    %v2861 = vld [vmem:[#allocation11 + $0x108] sm:$0xff]
    %v2862 = vld [vmem:[#allocation11 + $0x110] sm:$0xff]
    %v2863 = vld [vmem:[#allocation11 + $0x118] sm:$0xff]
    %v2864 = vld [vmem:[#allocation11 + $0x120] sm:$0xff]
    %v2865 = vld [vmem:[#allocation11 + $0x128] sm:$0xff]
    %v2866 = vld [vmem:[#allocation11 + $0x130] sm:$0xff]
    %v2867 = vld [vmem:[#allocation11 + $0x138] sm:$0xff]
    %v2868 = vld [vmem:[#allocation11 + $0x140] sm:$0xff]
    %v2869 = vld [vmem:[#allocation11 + $0x148] sm:$0xff]
    %v2870 = vld [vmem:[#allocation11 + $0x150] sm:$0xff]
    %v2871 = vld [vmem:[#allocation11 + $0x158] sm:$0xff]
    %v2872 = vld [vmem:[#allocation11 + $0x160] sm:$0xff]
    %v2873 = vld [vmem:[#allocation11 + $0x168] sm:$0xff]
    %v2874 = vld [vmem:[#allocation11 + $0x170] sm:$0xff]
    %v2875 = vld [vmem:[#allocation11 + $0x178] sm:$0xff]
    %v2876 = vld [vmem:[#allocation11 + $0x180] sm:$0xff]
    %v2877 = vld [vmem:[#allocation11 + $0x188] sm:$0xff]
    %v2878 = vld [vmem:[#allocation11 + $0x190] sm:$0xff]
    %v2879 = vld [vmem:[#allocation11 + $0x198] sm:$0xff]
    %v2880 = vld [vmem:[#allocation11 + $0x1a0] sm:$0xff]
    %v2881 = vld [vmem:[#allocation11 + $0x1a8] sm:$0xff]
    %v2882 = vld [vmem:[#allocation11 + $0x1b0] sm:$0xff]
    %v2883 = vld [vmem:[#allocation11 + $0x1b8] sm:$0xff]
    %v2884 = vld [vmem:[#allocation11 + $0x1c0] sm:$0xff]
    %v2885 = vld [vmem:[#allocation11 + $0x1c8] sm:$0xff]
    %v2886 = vld [vmem:[#allocation11 + $0x1d0] sm:$0xff]
    %v2887 = vld [vmem:[#allocation11 + $0x1d8] sm:$0xff]
    %v2888 = vld [vmem:[#allocation11 + $0x1e0] sm:$0xff]
    %v2889 = vld [vmem:[#allocation11 + $0x1e8] sm:$0xff]
    %v2890 = vld [vmem:[#allocation11 + $0x1f0] sm:$0xff]
    %v2891 = vld [vmem:[#allocation11 + $0x1f8] sm:$0xff]
    %v2892 = vld [vmem:[#allocation11 + $0x200] sm:$0xff]
    %v2893 = vld [vmem:[#allocation11 + $0x208] sm:$0xff]
    %v2894 = vld [vmem:[#allocation11 + $0x210] sm:$0xff]
    %v2895 = vld [vmem:[#allocation11 + $0x218] sm:$0xff]
    %v2896 = vld [vmem:[#allocation11 + $0x220] sm:$0xff]
    %v2897 = vld [vmem:[#allocation11 + $0x228] sm:$0xff]
    %v2898 = vld [vmem:[#allocation11 + $0x230] sm:$0xff]
    %v2899 = vld [vmem:[#allocation11 + $0x238] sm:$0xff]
    %v2900 = vld [vmem:[#allocation11 + $0x240] sm:$0xff]
    %v2901 = vld [vmem:[#allocation11 + $0x248] sm:$0xff]
    %v2902 = vld [vmem:[#allocation11 + $0x250] sm:$0xff]
    %v2903 = vld [vmem:[#allocation11 + $0x258] sm:$0xff]
    %v2904 = vld [vmem:[#allocation11 + $0x260] sm:$0xff]
    %v2905 = vld [vmem:[#allocation11 + $0x268] sm:$0xff]
    %v2906 = vld [vmem:[#allocation11 + $0x270] sm:$0xff]
    %v2907 = vld [vmem:[#allocation11 + $0x278] sm:$0xff]
    %v2908 = vld [vmem:[#allocation11 + $0x280] sm:$0xff]
    %v2909 = vld [vmem:[#allocation11 + $0x288] sm:$0xff]
    %v2910 = vld [vmem:[#allocation11 + $0x290] sm:$0xff]
    %v2911 = vld [vmem:[#allocation11 + $0x298] sm:$0xff]
    %v2912 = vld [vmem:[#allocation11 + $0x2a0] sm:$0xff]
    %v2913 = vld [vmem:[#allocation11 + $0x2a8] sm:$0xff]
    %v2914 = vld [vmem:[#allocation11 + $0x2b0] sm:$0xff]
    %v2915 = vld [vmem:[#allocation11 + $0x2b8] sm:$0xff]
    %v2916 = vld [vmem:[#allocation11 + $0x2c0] sm:$0xff]
    %v2917 = vld [vmem:[#allocation11 + $0x2c8] sm:$0xff]
    %v2918 = vld [vmem:[#allocation11 + $0x2d0] sm:$0xff]
    %v2919 = vld [vmem:[#allocation11 + $0x2d8] sm:$0xff]
    %v2920 = vld [vmem:[#allocation11 + $0x2e0] sm:$0xff]
    %v2921 = vld [vmem:[#allocation11 + $0x2e8] sm:$0xff]
    %v2922 = vld [vmem:[#allocation11 + $0x2f0] sm:$0xff]
    %v2923 = vld [vmem:[#allocation11 + $0x2f8] sm:$0xff]
    %v2924 = vld [vmem:[#allocation11 + $0x300] sm:$0xff]
    %v2925 = vld [vmem:[#allocation11 + $0x308] sm:$0xff]
    %v2926 = vld [vmem:[#allocation11 + $0x310] sm:$0xff]
    %v2927 = vld [vmem:[#allocation11 + $0x318] sm:$0xff]
    %v2928 = vld [vmem:[#allocation11 + $0x320] sm:$0xff]
    %v2929 = vld [vmem:[#allocation11 + $0x328] sm:$0xff]
    %v2930 = vld [vmem:[#allocation11 + $0x330] sm:$0xff]
    %v2931 = vld [vmem:[#allocation11 + $0x338] sm:$0xff]
    %v2932 = vld [vmem:[#allocation11 + $0x340] sm:$0xff]
    %v2933 = vld [vmem:[#allocation11 + $0x348] sm:$0xff]
    %v2934 = vld [vmem:[#allocation11 + $0x350] sm:$0xff]
    %v2935 = vld [vmem:[#allocation11 + $0x358] sm:$0xff]
    %v2936 = vld [vmem:[#allocation11 + $0x360] sm:$0xff]
    %v2937 = vld [vmem:[#allocation11 + $0x368] sm:$0xff]
    %v2938 = vld [vmem:[#allocation11 + $0x370] sm:$0xff]
    %v2939 = vld [vmem:[#allocation11 + $0x378] sm:$0xff]
    %v2940 = vld [vmem:[#allocation11 + $0x380] sm:$0xff]
    %v2941 = vld [vmem:[#allocation11 + $0x388] sm:$0xff]
    %v2942 = vld [vmem:[#allocation11 + $0x390] sm:$0xff]
    %v2943 = vld [vmem:[#allocation11 + $0x398] sm:$0xff]
    %v2944 = vld [vmem:[#allocation11 + $0x3a0] sm:$0xff]
    %v2945 = vld [vmem:[#allocation11 + $0x3a8] sm:$0xff]
    %v2946 = vld [vmem:[#allocation11 + $0x3b0] sm:$0xff]
    %v2947 = vld [vmem:[#allocation11 + $0x3b8] sm:$0xff]
    %v2948 = vld [vmem:[#allocation11 + $0x3c0] sm:$0xff]
    %v2949 = vld [vmem:[#allocation11 + $0x3c8] sm:$0xff]
    %v2950 = vld [vmem:[#allocation11 + $0x3d0] sm:$0xff]
    %v2951 = vld [vmem:[#allocation11 + $0x3d8] sm:$0xff]
    %v2952 = vld [vmem:[#allocation11 + $0x3e0] sm:$0xff]
    %v2953 = vld [vmem:[#allocation11 + $0x3e8] sm:$0xff]
    %v2954 = vld [vmem:[#allocation11 + $0x3f0] sm:$0xff]
    %v2955 = vld [vmem:[#allocation11 + $0x3f8] sm:$0xff]
    %v2956 = vld [vmem:[#allocation11 + $0x400] sm:$0xff]
    %v2957 = vld [vmem:[#allocation11 + $0x408] sm:$0xff]
    %v2958 = vld [vmem:[#allocation11 + $0x410] sm:$0xff]
    %v2959 = vld [vmem:[#allocation11 + $0x418] sm:$0xff]
    %v2960 = vld [vmem:[#allocation11 + $0x420] sm:$0xff]
    %v2961 = vld [vmem:[#allocation11 + $0x428] sm:$0xff]
    %v2962 = vld [vmem:[#allocation11 + $0x430] sm:$0xff]
    %v2963 = vld [vmem:[#allocation11 + $0x438] sm:$0xff]
    %v2964 = vld [vmem:[#allocation11 + $0x440] sm:$0xff]
    %v2965 = vld [vmem:[#allocation11 + $0x448] sm:$0xff]
    %v2966 = vld [vmem:[#allocation11 + $0x450] sm:$0xff]
    %v2967 = vld [vmem:[#allocation11 + $0x458] sm:$0xff]
    %v2968 = vld [vmem:[#allocation11 + $0x460] sm:$0xff]
    %v2969 = vld [vmem:[#allocation11 + $0x468] sm:$0xff]
    %v2970 = vld [vmem:[#allocation11 + $0x470] sm:$0xff]
    %v2971 = vld [vmem:[#allocation11 + $0x478] sm:$0xff]
    %v2972 = vld [vmem:[#allocation11 + $0x480] sm:$0xff]
    %v2973 = vld [vmem:[#allocation11 + $0x488] sm:$0xff]
    %v2974 = vld [vmem:[#allocation11 + $0x490] sm:$0xff]
    %v2975 = vld [vmem:[#allocation11 + $0x498] sm:$0xff]
    %v2976 = vld [vmem:[#allocation11 + $0x4a0] sm:$0xff]
    %v2977 = vld [vmem:[#allocation11 + $0x4a8] sm:$0xff]
    %v2978 = vld [vmem:[#allocation11 + $0x4b0] sm:$0xff]
    %v2979 = vld [vmem:[#allocation11 + $0x4b8] sm:$0xff]
    %v2980 = vld [vmem:[#allocation11 + $0x4c0] sm:$0xff]
    %v2981 = vld [vmem:[#allocation11 + $0x4c8] sm:$0xff]
    %v2982 = vld [vmem:[#allocation11 + $0x4d0] sm:$0xff]
    %v2983 = vld [vmem:[#allocation11 + $0x4d8] sm:$0xff]
    %v2984 = vld [vmem:[#allocation11 + $0x4e0] sm:$0xff]
    %v2985 = vld [vmem:[#allocation11 + $0x4e8] sm:$0xff]
    %v2986 = vld [vmem:[#allocation11 + $0x4f0] sm:$0xff]
    %v2987 = vld [vmem:[#allocation11 + $0x4f8] sm:$0xff]
    %v2988 = vld [vmem:[#allocation11 + $0x500] sm:$0xff]
    %v2989 = vld [vmem:[#allocation11 + $0x508] sm:$0xff]
    %v2990 = vld [vmem:[#allocation11 + $0x510] sm:$0xff]
    %v2991 = vld [vmem:[#allocation11 + $0x518] sm:$0xff]
    %v2992 = vld [vmem:[#allocation11 + $0x520] sm:$0xff]
    %v2993 = vld [vmem:[#allocation11 + $0x528] sm:$0xff]
    %v2994 = vld [vmem:[#allocation11 + $0x530] sm:$0xff]
    %v2995 = vld [vmem:[#allocation11 + $0x538] sm:$0xff]
    %v2996 = vld [vmem:[#allocation11 + $0x540] sm:$0xff]
    %v2997 = vld [vmem:[#allocation11 + $0x548] sm:$0xff]
    %v2998 = vld [vmem:[#allocation11 + $0x550] sm:$0xff]
    %v2999 = vld [vmem:[#allocation11 + $0x558] sm:$0xff]
    %v3000 = vld [vmem:[#allocation11 + $0x560] sm:$0xff]
    %v3001 = vld [vmem:[#allocation11 + $0x568] sm:$0xff]
    %v3002 = vld [vmem:[#allocation11 + $0x570] sm:$0xff]
    %v3003 = vld [vmem:[#allocation11 + $0x578] sm:$0xff]
    %v3004 = vld [vmem:[#allocation11 + $0x580] sm:$0xff]
    %v3005 = vld [vmem:[#allocation11 + $0x588] sm:$0xff]
    %v3006 = vld [vmem:[#allocation11 + $0x590] sm:$0xff]
    %v3007 = vld [vmem:[#allocation11 + $0x598] sm:$0xff]
    %v3008 = vld [vmem:[#allocation11 + $0x5a0] sm:$0xff]
    %v3009 = vld [vmem:[#allocation11 + $0x5a8] sm:$0xff]
    %v3010 = vld [vmem:[#allocation11 + $0x5b0] sm:$0xff]
    %v3011 = vld [vmem:[#allocation11 + $0x5b8] sm:$0xff]
    %v3012 = vld [vmem:[#allocation11 + $0x5c0] sm:$0xff]
    %v3013 = vld [vmem:[#allocation11 + $0x5c8] sm:$0xff]
    %v3014 = vld [vmem:[#allocation11 + $0x5d0] sm:$0xff]
    %v3015 = vld [vmem:[#allocation11 + $0x5d8] sm:$0xff]
    %v3016 = vld [vmem:[#allocation11 + $0x5e0] sm:$0xff]
    %v3017 = vld [vmem:[#allocation11 + $0x5e8] sm:$0xff]
    %v3018 = vld [vmem:[#allocation11 + $0x5f0] sm:$0xff]
    %v3019 = vld [vmem:[#allocation11 + $0x5f8] sm:$0xff]
    %v3020 = vld [vmem:[#allocation11 + $0x600] sm:$0xff]
    %v3021 = vld [vmem:[#allocation11 + $0x608] sm:$0xff]
    %v3022 = vld [vmem:[#allocation11 + $0x610] sm:$0xff]
    %v3023 = vld [vmem:[#allocation11 + $0x618] sm:$0xff]
    %v3024 = vld [vmem:[#allocation11 + $0x620] sm:$0xff]
    %v3025 = vld [vmem:[#allocation11 + $0x628] sm:$0xff]
    %v3026 = vld [vmem:[#allocation11 + $0x630] sm:$0xff]
    %v3027 = vld [vmem:[#allocation11 + $0x638] sm:$0xff]
    %v3028 = vld [vmem:[#allocation11 + $0x640] sm:$0xff]
    %v3029 = vld [vmem:[#allocation11 + $0x648] sm:$0xff]
    %v3030 = vld [vmem:[#allocation11 + $0x650] sm:$0xff]
    %v3031 = vld [vmem:[#allocation11 + $0x658] sm:$0xff]
    %v3032 = vld [vmem:[#allocation11 + $0x660] sm:$0xff]
    %v3033 = vld [vmem:[#allocation11 + $0x668] sm:$0xff]
    %v3034 = vld [vmem:[#allocation11 + $0x670] sm:$0xff]
    %v3035 = vld [vmem:[#allocation11 + $0x678] sm:$0xff]
    %v3036 = vld [vmem:[#allocation11 + $0x680] sm:$0xff]
    %v3037 = vld [vmem:[#allocation11 + $0x688] sm:$0xff]
    %v3038 = vld [vmem:[#allocation11 + $0x690] sm:$0xff]
    %v3039 = vld [vmem:[#allocation11 + $0x698] sm:$0xff]
    %v3040 = vld [vmem:[#allocation11 + $0x6a0] sm:$0xff]
    %v3041 = vld [vmem:[#allocation11 + $0x6a8] sm:$0xff]
    %v3042 = vld [vmem:[#allocation11 + $0x6b0] sm:$0xff]
    %v3043 = vld [vmem:[#allocation11 + $0x6b8] sm:$0xff]
    %v3044 = vld [vmem:[#allocation11 + $0x6c0] sm:$0xff]
    %v3045 = vld [vmem:[#allocation11 + $0x6c8] sm:$0xff]
    %v3046 = vld [vmem:[#allocation11 + $0x6d0] sm:$0xff]
    %v3047 = vld [vmem:[#allocation11 + $0x6d8] sm:$0xff]
    %v3048 = vld [vmem:[#allocation11 + $0x6e0] sm:$0xff]
    %v3049 = vld [vmem:[#allocation11 + $0x6e8] sm:$0xff]
    %v3050 = vld [vmem:[#allocation11 + $0x6f0] sm:$0xff]
    %v3051 = vld [vmem:[#allocation11 + $0x6f8] sm:$0xff]
    %v3052 = vld [vmem:[#allocation11 + $0x700] sm:$0xff]
    %v3053 = vld [vmem:[#allocation11 + $0x708] sm:$0xff]
    %v3054 = vld [vmem:[#allocation11 + $0x710] sm:$0xff]
    %v3055 = vld [vmem:[#allocation11 + $0x718] sm:$0xff]
    %v3056 = vld [vmem:[#allocation11 + $0x720] sm:$0xff]
    %v3057 = vld [vmem:[#allocation11 + $0x728] sm:$0xff]
    %v3058 = vld [vmem:[#allocation11 + $0x730] sm:$0xff]
    %v3059 = vld [vmem:[#allocation11 + $0x738] sm:$0xff]
    %v3060 = vld [vmem:[#allocation11 + $0x740] sm:$0xff]
    %v3061 = vld [vmem:[#allocation11 + $0x748] sm:$0xff]
    %v3062 = vld [vmem:[#allocation11 + $0x750] sm:$0xff]
    %v3063 = vld [vmem:[#allocation11 + $0x758] sm:$0xff]
    %v3064 = vld [vmem:[#allocation11 + $0x760] sm:$0xff]
    %v3065 = vld [vmem:[#allocation11 + $0x768] sm:$0xff]
    %v3066 = vld [vmem:[#allocation11 + $0x770] sm:$0xff]
    %v3067 = vld [vmem:[#allocation11 + $0x778] sm:$0xff]
    %v3068 = vld [vmem:[#allocation11 + $0x780] sm:$0xff]
    %v3069 = vld [vmem:[#allocation11 + $0x788] sm:$0xff]
    %v3070 = vld [vmem:[#allocation11 + $0x790] sm:$0xff]
    %v3071 = vld [vmem:[#allocation11 + $0x798] sm:$0xff]
    %v3072 = vld [vmem:[#allocation11 + $0x7a0] sm:$0xff]
    %v3073 = vld [vmem:[#allocation11 + $0x7a8] sm:$0xff]
    %v3074 = vld [vmem:[#allocation11 + $0x7b0] sm:$0xff]
    %v3075 = vld [vmem:[#allocation11 + $0x7b8] sm:$0xff]
    %v3076 = vld [vmem:[#allocation11 + $0x7c0] sm:$0xff]
    %v3077 = vld [vmem:[#allocation11 + $0x7c8] sm:$0xff]
    %v3078 = vld [vmem:[#allocation11 + $0x7d0] sm:$0xff]
    %v3079 = vld [vmem:[#allocation11 + $0x7d8] sm:$0xff]
    %v3080 = vld [vmem:[#allocation11 + $0x7e0] sm:$0xff]
    %v3081 = vld [vmem:[#allocation11 + $0x7e8] sm:$0xff]
    %v3082 = vld [vmem:[#allocation11 + $0x7f0] sm:$0xff]
    %v3083 = vld [vmem:[#allocation11 + $0x7f8] sm:$0xff]
    %v3084 = vld [vmem:[%s6] sm:$0xf]
    %v3086 = vlaneseq
    %v3087 = vshrl.u32 %v3086, 7
    %v3088 = vsub.s32 0, %v3087
    %v3089 = vrot.slane %v3084, %v3088
    %v3090 = vlaneseq
    %v3091 = vshrl.u32 %v3090, 7
    %v3092 = vsub.s32 1, %v3091
    %v3093 = vrot.slane %v3084, %v3092
    %v3094 = vlaneseq
    %v3095 = vshrl.u32 %v3094, 7
    %v3096 = vsub.s32 2, %v3095
    %v3097 = vrot.slane %v3084, %v3096
    %v3098 = vlaneseq
    %v3099 = vshrl.u32 %v3098, 7
    %v3100 = vsub.s32 3, %v3099
    %v3101 = vrot.slane %v3084, %v3100
    %v3362 = vunpack.c.l.b16 %v2828
    %v3363 = vunpack.c.h.b16 %v2828
    %v3364 = vunpack.c.l.b16 %v2829
    %v3365 = vunpack.c.h.b16 %v2829
    %v3366 = vunpack.c.l.b16 %v2830
    %v3367 = vunpack.c.h.b16 %v2830
    %v3368 = vunpack.c.l.b16 %v2831
    %v3369 = vunpack.c.h.b16 %v2831
    %v3370 = vunpack.c.l.b16 %v2832
    %v3371 = vunpack.c.h.b16 %v2832
    %v3372 = vunpack.c.l.b16 %v2833
    %v3373 = vunpack.c.h.b16 %v2833
    %v3374 = vunpack.c.l.b16 %v2834
    %v3375 = vunpack.c.h.b16 %v2834
    %v3376 = vunpack.c.l.b16 %v2835
    %v3377 = vunpack.c.h.b16 %v2835
    %v3378 = vunpack.c.l.b16 %v2836
    %v3379 = vunpack.c.h.b16 %v2836
    %v3380 = vunpack.c.l.b16 %v2837
    %v3381 = vunpack.c.h.b16 %v2837
    %v3382 = vunpack.c.l.b16 %v2838
    %v3383 = vunpack.c.h.b16 %v2838
    %v3384 = vunpack.c.l.b16 %v2839
    %v3385 = vunpack.c.h.b16 %v2839
    %v3386 = vunpack.c.l.b16 %v2840
    %v3387 = vunpack.c.h.b16 %v2840
    %v3388 = vunpack.c.l.b16 %v2841
    %v3389 = vunpack.c.h.b16 %v2841
    %v3390 = vunpack.c.l.b16 %v2842
    %v3391 = vunpack.c.h.b16 %v2842
    %v3392 = vunpack.c.l.b16 %v2843
    %v3393 = vunpack.c.h.b16 %v2843
    %v3394 = vunpack.c.l.b16 %v2844
    %v3395 = vunpack.c.h.b16 %v2844
    %v3396 = vunpack.c.l.b16 %v2845
    %v3397 = vunpack.c.h.b16 %v2845
    %v3398 = vunpack.c.l.b16 %v2846
    %v3399 = vunpack.c.h.b16 %v2846
    %v3400 = vunpack.c.l.b16 %v2847
    %v3401 = vunpack.c.h.b16 %v2847
    %v3402 = vunpack.c.l.b16 %v2848
    %v3403 = vunpack.c.h.b16 %v2848
    %v3404 = vunpack.c.l.b16 %v2849
    %v3405 = vunpack.c.h.b16 %v2849
    %v3406 = vunpack.c.l.b16 %v2850
    %v3407 = vunpack.c.h.b16 %v2850
    %v3408 = vunpack.c.l.b16 %v2851
    %v3409 = vunpack.c.h.b16 %v2851
    %v3410 = vunpack.c.l.b16 %v2852
    %v3411 = vunpack.c.h.b16 %v2852
    %v3412 = vunpack.c.l.b16 %v2853
    %v3413 = vunpack.c.h.b16 %v2853
    %v3414 = vunpack.c.l.b16 %v2854
    %v3415 = vunpack.c.h.b16 %v2854
    %v3416 = vunpack.c.l.b16 %v2855
    %v3417 = vunpack.c.h.b16 %v2855
    %v3418 = vunpack.c.l.b16 %v2856
    %v3419 = vunpack.c.h.b16 %v2856
    %v3420 = vunpack.c.l.b16 %v2857
    %v3421 = vunpack.c.h.b16 %v2857
    %v3422 = vunpack.c.l.b16 %v2858
    %v3423 = vunpack.c.h.b16 %v2858
    %v3424 = vunpack.c.l.b16 %v2859
    %v3425 = vunpack.c.h.b16 %v2859
    %v3426 = vunpack.c.l.b16 %v2860
    %v3427 = vunpack.c.h.b16 %v2860
    %v3428 = vunpack.c.l.b16 %v2861
    %v3429 = vunpack.c.h.b16 %v2861
    %v3430 = vunpack.c.l.b16 %v2862
    %v3431 = vunpack.c.h.b16 %v2862
    %v3432 = vunpack.c.l.b16 %v2863
    %v3433 = vunpack.c.h.b16 %v2863
    %v3434 = vunpack.c.l.b16 %v2864
    %v3435 = vunpack.c.h.b16 %v2864
    %v3436 = vunpack.c.l.b16 %v2865
    %v3437 = vunpack.c.h.b16 %v2865
    %v3438 = vunpack.c.l.b16 %v2866
    %v3439 = vunpack.c.h.b16 %v2866
    %v3440 = vunpack.c.l.b16 %v2867
    %v3441 = vunpack.c.h.b16 %v2867
    %v3442 = vunpack.c.l.b16 %v2868
    %v3443 = vunpack.c.h.b16 %v2868
    %v3444 = vunpack.c.l.b16 %v2869
    %v3445 = vunpack.c.h.b16 %v2869
    %v3446 = vunpack.c.l.b16 %v2870
    %v3447 = vunpack.c.h.b16 %v2870
    %v3448 = vunpack.c.l.b16 %v2871
    %v3449 = vunpack.c.h.b16 %v2871
    %v3450 = vunpack.c.l.b16 %v2872
    %v3451 = vunpack.c.h.b16 %v2872
    %v3452 = vunpack.c.l.b16 %v2873
    %v3453 = vunpack.c.h.b16 %v2873
    %v3454 = vunpack.c.l.b16 %v2874
    %v3455 = vunpack.c.h.b16 %v2874
    %v3456 = vunpack.c.l.b16 %v2875
    %v3457 = vunpack.c.h.b16 %v2875
    %v3458 = vunpack.c.l.b16 %v2876
    %v3459 = vunpack.c.h.b16 %v2876
    %v3460 = vunpack.c.l.b16 %v2877
    %v3461 = vunpack.c.h.b16 %v2877
    %v3462 = vunpack.c.l.b16 %v2878
    %v3463 = vunpack.c.h.b16 %v2878
    %v3464 = vunpack.c.l.b16 %v2879
    %v3465 = vunpack.c.h.b16 %v2879
    %v3466 = vunpack.c.l.b16 %v2880
    %v3467 = vunpack.c.h.b16 %v2880
    %v3468 = vunpack.c.l.b16 %v2881
    %v3469 = vunpack.c.h.b16 %v2881
    %v3470 = vunpack.c.l.b16 %v2882
    %v3471 = vunpack.c.h.b16 %v2882
    %v3472 = vunpack.c.l.b16 %v2883
    %v3473 = vunpack.c.h.b16 %v2883
    %v3474 = vunpack.c.l.b16 %v2884
    %v3475 = vunpack.c.h.b16 %v2884
    %v3476 = vunpack.c.l.b16 %v2885
    %v3477 = vunpack.c.h.b16 %v2885
    %v3478 = vunpack.c.l.b16 %v2886
    %v3479 = vunpack.c.h.b16 %v2886
    %v3480 = vunpack.c.l.b16 %v2887
    %v3481 = vunpack.c.h.b16 %v2887
    %v3482 = vunpack.c.l.b16 %v2888
    %v3483 = vunpack.c.h.b16 %v2888
    %v3484 = vunpack.c.l.b16 %v2889
    %v3485 = vunpack.c.h.b16 %v2889
    %v3486 = vunpack.c.l.b16 %v2890
    %v3487 = vunpack.c.h.b16 %v2890
    %v3488 = vunpack.c.l.b16 %v2891
    %v3489 = vunpack.c.h.b16 %v2891
    %v3490 = vunpack.c.l.b16 %v2892
    %v3491 = vunpack.c.h.b16 %v2892
    %v3492 = vunpack.c.l.b16 %v2893
    %v3493 = vunpack.c.h.b16 %v2893
    %v3494 = vunpack.c.l.b16 %v2894
    %v3495 = vunpack.c.h.b16 %v2894
    %v3496 = vunpack.c.l.b16 %v2895
    %v3497 = vunpack.c.h.b16 %v2895
    %v3498 = vunpack.c.l.b16 %v2896
    %v3499 = vunpack.c.h.b16 %v2896
    %v3500 = vunpack.c.l.b16 %v2897
    %v3501 = vunpack.c.h.b16 %v2897
    %v3502 = vunpack.c.l.b16 %v2898
    %v3503 = vunpack.c.h.b16 %v2898
    %v3504 = vunpack.c.l.b16 %v2899
    %v3505 = vunpack.c.h.b16 %v2899
    %v3506 = vunpack.c.l.b16 %v2900
    %v3507 = vunpack.c.h.b16 %v2900
    %v3508 = vunpack.c.l.b16 %v2901
    %v3509 = vunpack.c.h.b16 %v2901
    %v3510 = vunpack.c.l.b16 %v2902
    %v3511 = vunpack.c.h.b16 %v2902
    %v3512 = vunpack.c.l.b16 %v2903
    %v3513 = vunpack.c.h.b16 %v2903
    %v3514 = vunpack.c.l.b16 %v2904
    %v3515 = vunpack.c.h.b16 %v2904
    %v3516 = vunpack.c.l.b16 %v2905
    %v3517 = vunpack.c.h.b16 %v2905
    %v3518 = vunpack.c.l.b16 %v2906
    %v3519 = vunpack.c.h.b16 %v2906
    %v3520 = vunpack.c.l.b16 %v2907
    %v3521 = vunpack.c.h.b16 %v2907
    %v3522 = vunpack.c.l.b16 %v2908
    %v3523 = vunpack.c.h.b16 %v2908
    %v3524 = vunpack.c.l.b16 %v2909
    %v3525 = vunpack.c.h.b16 %v2909
    %v3526 = vunpack.c.l.b16 %v2910
    %v3527 = vunpack.c.h.b16 %v2910
    %v3528 = vunpack.c.l.b16 %v2911
    %v3529 = vunpack.c.h.b16 %v2911
    %v3530 = vunpack.c.l.b16 %v2912
    %v3531 = vunpack.c.h.b16 %v2912
    %v3532 = vunpack.c.l.b16 %v2913
    %v3533 = vunpack.c.h.b16 %v2913
    %v3534 = vunpack.c.l.b16 %v2914
    %v3535 = vunpack.c.h.b16 %v2914
    %v3536 = vunpack.c.l.b16 %v2915
    %v3537 = vunpack.c.h.b16 %v2915
    %v3538 = vunpack.c.l.b16 %v2916
    %v3539 = vunpack.c.h.b16 %v2916
    %v3540 = vunpack.c.l.b16 %v2917
    %v3541 = vunpack.c.h.b16 %v2917
    %v3542 = vunpack.c.l.b16 %v2918
    %v3543 = vunpack.c.h.b16 %v2918
    %v3544 = vunpack.c.l.b16 %v2919
    %v3545 = vunpack.c.h.b16 %v2919
    %v3546 = vunpack.c.l.b16 %v2920
    %v3547 = vunpack.c.h.b16 %v2920
    %v3548 = vunpack.c.l.b16 %v2921
    %v3549 = vunpack.c.h.b16 %v2921
    %v3550 = vunpack.c.l.b16 %v2922
    %v3551 = vunpack.c.h.b16 %v2922
    %v3552 = vunpack.c.l.b16 %v2923
    %v3553 = vunpack.c.h.b16 %v2923
    %v3554 = vunpack.c.l.b16 %v2924
    %v3555 = vunpack.c.h.b16 %v2924
    %v3556 = vunpack.c.l.b16 %v2925
    %v3557 = vunpack.c.h.b16 %v2925
    %v3558 = vunpack.c.l.b16 %v2926
    %v3559 = vunpack.c.h.b16 %v2926
    %v3560 = vunpack.c.l.b16 %v2927
    %v3561 = vunpack.c.h.b16 %v2927
    %v3562 = vunpack.c.l.b16 %v2928
    %v3563 = vunpack.c.h.b16 %v2928
    %v3564 = vunpack.c.l.b16 %v2929
    %v3565 = vunpack.c.h.b16 %v2929
    %v3566 = vunpack.c.l.b16 %v2930
    %v3567 = vunpack.c.h.b16 %v2930
    %v3568 = vunpack.c.l.b16 %v2931
    %v3569 = vunpack.c.h.b16 %v2931
    %v3570 = vunpack.c.l.b16 %v2932
    %v3571 = vunpack.c.h.b16 %v2932
    %v3572 = vunpack.c.l.b16 %v2933
    %v3573 = vunpack.c.h.b16 %v2933
    %v3574 = vunpack.c.l.b16 %v2934
    %v3575 = vunpack.c.h.b16 %v2934
    %v3576 = vunpack.c.l.b16 %v2935
    %v3577 = vunpack.c.h.b16 %v2935
    %v3578 = vunpack.c.l.b16 %v2936
    %v3579 = vunpack.c.h.b16 %v2936
    %v3580 = vunpack.c.l.b16 %v2937
    %v3581 = vunpack.c.h.b16 %v2937
    %v3582 = vunpack.c.l.b16 %v2938
    %v3583 = vunpack.c.h.b16 %v2938
    %v3584 = vunpack.c.l.b16 %v2939
    %v3585 = vunpack.c.h.b16 %v2939
    %v3586 = vunpack.c.l.b16 %v2940
    %v3587 = vunpack.c.h.b16 %v2940
    %v3588 = vunpack.c.l.b16 %v2941
    %v3589 = vunpack.c.h.b16 %v2941
    %v3590 = vunpack.c.l.b16 %v2942
    %v3591 = vunpack.c.h.b16 %v2942
    %v3592 = vunpack.c.l.b16 %v2943
    %v3593 = vunpack.c.h.b16 %v2943
    %v3594 = vunpack.c.l.b16 %v2944
    %v3595 = vunpack.c.h.b16 %v2944
    %v3596 = vunpack.c.l.b16 %v2945
    %v3597 = vunpack.c.h.b16 %v2945
    %v3598 = vunpack.c.l.b16 %v2946
    %v3599 = vunpack.c.h.b16 %v2946
    %v3600 = vunpack.c.l.b16 %v2947
    %v3601 = vunpack.c.h.b16 %v2947
    %v3602 = vunpack.c.l.b16 %v2948
    %v3603 = vunpack.c.h.b16 %v2948
    %v3604 = vunpack.c.l.b16 %v2949
    %v3605 = vunpack.c.h.b16 %v2949
    %v3606 = vunpack.c.l.b16 %v2950
    %v3607 = vunpack.c.h.b16 %v2950
    %v3608 = vunpack.c.l.b16 %v2951
    %v3609 = vunpack.c.h.b16 %v2951
    %v3610 = vunpack.c.l.b16 %v2952
    %v3611 = vunpack.c.h.b16 %v2952
    %v3612 = vunpack.c.l.b16 %v2953
    %v3613 = vunpack.c.h.b16 %v2953
    %v3614 = vunpack.c.l.b16 %v2954
    %v3615 = vunpack.c.h.b16 %v2954
    %v3616 = vunpack.c.l.b16 %v2955
    %v3617 = vunpack.c.h.b16 %v2955
    %v3618 = vunpack.c.l.b16 %v2956
    %v3619 = vunpack.c.h.b16 %v2956
    %v3620 = vunpack.c.l.b16 %v2957
    %v3621 = vunpack.c.h.b16 %v2957
    %v3622 = vunpack.c.l.b16 %v2958
    %v3623 = vunpack.c.h.b16 %v2958
    %v3624 = vunpack.c.l.b16 %v2959
    %v3625 = vunpack.c.h.b16 %v2959
    %v3626 = vunpack.c.l.b16 %v2960
    %v3627 = vunpack.c.h.b16 %v2960
    %v3628 = vunpack.c.l.b16 %v2961
    %v3629 = vunpack.c.h.b16 %v2961
    %v3630 = vunpack.c.l.b16 %v2962
    %v3631 = vunpack.c.h.b16 %v2962
    %v3632 = vunpack.c.l.b16 %v2963
    %v3633 = vunpack.c.h.b16 %v2963
    %v3634 = vunpack.c.l.b16 %v2964
    %v3635 = vunpack.c.h.b16 %v2964
    %v3636 = vunpack.c.l.b16 %v2965
    %v3637 = vunpack.c.h.b16 %v2965
    %v3638 = vunpack.c.l.b16 %v2966
    %v3639 = vunpack.c.h.b16 %v2966
    %v3640 = vunpack.c.l.b16 %v2967
    %v3641 = vunpack.c.h.b16 %v2967
    %v3642 = vunpack.c.l.b16 %v2968
    %v3643 = vunpack.c.h.b16 %v2968
    %v3644 = vunpack.c.l.b16 %v2969
    %v3645 = vunpack.c.h.b16 %v2969
    %v3646 = vunpack.c.l.b16 %v2970
    %v3647 = vunpack.c.h.b16 %v2970
    %v3648 = vunpack.c.l.b16 %v2971
    %v3649 = vunpack.c.h.b16 %v2971
    %v3650 = vunpack.c.l.b16 %v2972
    %v3651 = vunpack.c.h.b16 %v2972
    %v3652 = vunpack.c.l.b16 %v2973
    %v3653 = vunpack.c.h.b16 %v2973
    %v3654 = vunpack.c.l.b16 %v2974
    %v3655 = vunpack.c.h.b16 %v2974
    %v3656 = vunpack.c.l.b16 %v2975
    %v3657 = vunpack.c.h.b16 %v2975
    %v3658 = vunpack.c.l.b16 %v2976
    %v3659 = vunpack.c.h.b16 %v2976
    %v3660 = vunpack.c.l.b16 %v2977
    %v3661 = vunpack.c.h.b16 %v2977
    %v3662 = vunpack.c.l.b16 %v2978
    %v3663 = vunpack.c.h.b16 %v2978
    %v3664 = vunpack.c.l.b16 %v2979
    %v3665 = vunpack.c.h.b16 %v2979
    %v3666 = vunpack.c.l.b16 %v2980
    %v3667 = vunpack.c.h.b16 %v2980
    %v3668 = vunpack.c.l.b16 %v2981
    %v3669 = vunpack.c.h.b16 %v2981
    %v3670 = vunpack.c.l.b16 %v2982
    %v3671 = vunpack.c.h.b16 %v2982
    %v3672 = vunpack.c.l.b16 %v2983
    %v3673 = vunpack.c.h.b16 %v2983
    %v3674 = vunpack.c.l.b16 %v2984
    %v3675 = vunpack.c.h.b16 %v2984
    %v3676 = vunpack.c.l.b16 %v2985
    %v3677 = vunpack.c.h.b16 %v2985
    %v3678 = vunpack.c.l.b16 %v2986
    %v3679 = vunpack.c.h.b16 %v2986
    %v3680 = vunpack.c.l.b16 %v2987
    %v3681 = vunpack.c.h.b16 %v2987
    %v3682 = vunpack.c.l.b16 %v2988
    %v3683 = vunpack.c.h.b16 %v2988
    %v3684 = vunpack.c.l.b16 %v2989
    %v3685 = vunpack.c.h.b16 %v2989
    %v3686 = vunpack.c.l.b16 %v2990
    %v3687 = vunpack.c.h.b16 %v2990
    %v3688 = vunpack.c.l.b16 %v2991
    %v3689 = vunpack.c.h.b16 %v2991
    %v3690 = vunpack.c.l.b16 %v2992
    %v3691 = vunpack.c.h.b16 %v2992
    %v3692 = vunpack.c.l.b16 %v2993
    %v3693 = vunpack.c.h.b16 %v2993
    %v3694 = vunpack.c.l.b16 %v2994
    %v3695 = vunpack.c.h.b16 %v2994
    %v3696 = vunpack.c.l.b16 %v2995
    %v3697 = vunpack.c.h.b16 %v2995
    %v3698 = vunpack.c.l.b16 %v2996
    %v3699 = vunpack.c.h.b16 %v2996
    %v3700 = vunpack.c.l.b16 %v2997
    %v3701 = vunpack.c.h.b16 %v2997
    %v3702 = vunpack.c.l.b16 %v2998
    %v3703 = vunpack.c.h.b16 %v2998
    %v3704 = vunpack.c.l.b16 %v2999
    %v3705 = vunpack.c.h.b16 %v2999
    %v3706 = vunpack.c.l.b16 %v3000
    %v3707 = vunpack.c.h.b16 %v3000
    %v3708 = vunpack.c.l.b16 %v3001
    %v3709 = vunpack.c.h.b16 %v3001
    %v3710 = vunpack.c.l.b16 %v3002
    %v3711 = vunpack.c.h.b16 %v3002
    %v3712 = vunpack.c.l.b16 %v3003
    %v3713 = vunpack.c.h.b16 %v3003
    %v3714 = vunpack.c.l.b16 %v3004
    %v3715 = vunpack.c.h.b16 %v3004
    %v3716 = vunpack.c.l.b16 %v3005
    %v3717 = vunpack.c.h.b16 %v3005
    %v3718 = vunpack.c.l.b16 %v3006
    %v3719 = vunpack.c.h.b16 %v3006
    %v3720 = vunpack.c.l.b16 %v3007
    %v3721 = vunpack.c.h.b16 %v3007
    %v3722 = vunpack.c.l.b16 %v3008
    %v3723 = vunpack.c.h.b16 %v3008
    %v3724 = vunpack.c.l.b16 %v3009
    %v3725 = vunpack.c.h.b16 %v3009
    %v3726 = vunpack.c.l.b16 %v3010
    %v3727 = vunpack.c.h.b16 %v3010
    %v3728 = vunpack.c.l.b16 %v3011
    %v3729 = vunpack.c.h.b16 %v3011
    %v3730 = vunpack.c.l.b16 %v3012
    %v3731 = vunpack.c.h.b16 %v3012
    %v3732 = vunpack.c.l.b16 %v3013
    %v3733 = vunpack.c.h.b16 %v3013
    %v3734 = vunpack.c.l.b16 %v3014
    %v3735 = vunpack.c.h.b16 %v3014
    %v3736 = vunpack.c.l.b16 %v3015
    %v3737 = vunpack.c.h.b16 %v3015
    %v3738 = vunpack.c.l.b16 %v3016
    %v3739 = vunpack.c.h.b16 %v3016
    %v3740 = vunpack.c.l.b16 %v3017
    %v3741 = vunpack.c.h.b16 %v3017
    %v3742 = vunpack.c.l.b16 %v3018
    %v3743 = vunpack.c.h.b16 %v3018
    %v3744 = vunpack.c.l.b16 %v3019
    %v3745 = vunpack.c.h.b16 %v3019
    %v3746 = vunpack.c.l.b16 %v3020
    %v3747 = vunpack.c.h.b16 %v3020
    %v3748 = vunpack.c.l.b16 %v3021
    %v3749 = vunpack.c.h.b16 %v3021
    %v3750 = vunpack.c.l.b16 %v3022
    %v3751 = vunpack.c.h.b16 %v3022
    %v3752 = vunpack.c.l.b16 %v3023
    %v3753 = vunpack.c.h.b16 %v3023
    %v3754 = vunpack.c.l.b16 %v3024
    %v3755 = vunpack.c.h.b16 %v3024
    %v3756 = vunpack.c.l.b16 %v3025
    %v3757 = vunpack.c.h.b16 %v3025
    %v3758 = vunpack.c.l.b16 %v3026
    %v3759 = vunpack.c.h.b16 %v3026
    %v3760 = vunpack.c.l.b16 %v3027
    %v3761 = vunpack.c.h.b16 %v3027
    %v3762 = vunpack.c.l.b16 %v3028
    %v3763 = vunpack.c.h.b16 %v3028
    %v3764 = vunpack.c.l.b16 %v3029
    %v3765 = vunpack.c.h.b16 %v3029
    %v3766 = vunpack.c.l.b16 %v3030
    %v3767 = vunpack.c.h.b16 %v3030
    %v3768 = vunpack.c.l.b16 %v3031
    %v3769 = vunpack.c.h.b16 %v3031
    %v3770 = vunpack.c.l.b16 %v3032
    %v3771 = vunpack.c.h.b16 %v3032
    %v3772 = vunpack.c.l.b16 %v3033
    %v3773 = vunpack.c.h.b16 %v3033
    %v3774 = vunpack.c.l.b16 %v3034
    %v3775 = vunpack.c.h.b16 %v3034
    %v3776 = vunpack.c.l.b16 %v3035
    %v3777 = vunpack.c.h.b16 %v3035
    %v3778 = vunpack.c.l.b16 %v3036
    %v3779 = vunpack.c.h.b16 %v3036
    %v3780 = vunpack.c.l.b16 %v3037
    %v3781 = vunpack.c.h.b16 %v3037
    %v3782 = vunpack.c.l.b16 %v3038
    %v3783 = vunpack.c.h.b16 %v3038
    %v3784 = vunpack.c.l.b16 %v3039
    %v3785 = vunpack.c.h.b16 %v3039
    %v3786 = vunpack.c.l.b16 %v3040
    %v3787 = vunpack.c.h.b16 %v3040
    %v3788 = vunpack.c.l.b16 %v3041
    %v3789 = vunpack.c.h.b16 %v3041
    %v3790 = vunpack.c.l.b16 %v3042
    %v3791 = vunpack.c.h.b16 %v3042
    %v3792 = vunpack.c.l.b16 %v3043
    %v3793 = vunpack.c.h.b16 %v3043
    %v3794 = vunpack.c.l.b16 %v3044
    %v3795 = vunpack.c.h.b16 %v3044
    %v3796 = vunpack.c.l.b16 %v3045
    %v3797 = vunpack.c.h.b16 %v3045
    %v3798 = vunpack.c.l.b16 %v3046
    %v3799 = vunpack.c.h.b16 %v3046
    %v3800 = vunpack.c.l.b16 %v3047
    %v3801 = vunpack.c.h.b16 %v3047
    %v3802 = vunpack.c.l.b16 %v3048
    %v3803 = vunpack.c.h.b16 %v3048
    %v3804 = vunpack.c.l.b16 %v3049
    %v3805 = vunpack.c.h.b16 %v3049
    %v3806 = vunpack.c.l.b16 %v3050
    %v3807 = vunpack.c.h.b16 %v3050
    %v3808 = vunpack.c.l.b16 %v3051
    %v3809 = vunpack.c.h.b16 %v3051
    %v3810 = vunpack.c.l.b16 %v3052
    %v3811 = vunpack.c.h.b16 %v3052
    %v3812 = vunpack.c.l.b16 %v3053
    %v3813 = vunpack.c.h.b16 %v3053
    %v3814 = vunpack.c.l.b16 %v3054
    %v3815 = vunpack.c.h.b16 %v3054
    %v3816 = vunpack.c.l.b16 %v3055
    %v3817 = vunpack.c.h.b16 %v3055
    %v3818 = vunpack.c.l.b16 %v3056
    %v3819 = vunpack.c.h.b16 %v3056
    %v3820 = vunpack.c.l.b16 %v3057
    %v3821 = vunpack.c.h.b16 %v3057
    %v3822 = vunpack.c.l.b16 %v3058
    %v3823 = vunpack.c.h.b16 %v3058
    %v3824 = vunpack.c.l.b16 %v3059
    %v3825 = vunpack.c.h.b16 %v3059
    %v3826 = vunpack.c.l.b16 %v3060
    %v3827 = vunpack.c.h.b16 %v3060
    %v3828 = vunpack.c.l.b16 %v3061
    %v3829 = vunpack.c.h.b16 %v3061
    %v3830 = vunpack.c.l.b16 %v3062
    %v3831 = vunpack.c.h.b16 %v3062
    %v3832 = vunpack.c.l.b16 %v3063
    %v3833 = vunpack.c.h.b16 %v3063
    %v3834 = vunpack.c.l.b16 %v3064
    %v3835 = vunpack.c.h.b16 %v3064
    %v3836 = vunpack.c.l.b16 %v3065
    %v3837 = vunpack.c.h.b16 %v3065
    %v3838 = vunpack.c.l.b16 %v3066
    %v3839 = vunpack.c.h.b16 %v3066
    %v3840 = vunpack.c.l.b16 %v3067
    %v3841 = vunpack.c.h.b16 %v3067
    %v3842 = vunpack.c.l.b16 %v3068
    %v3843 = vunpack.c.h.b16 %v3068
    %v3844 = vunpack.c.l.b16 %v3069
    %v3845 = vunpack.c.h.b16 %v3069
    %v3846 = vunpack.c.l.b16 %v3070
    %v3847 = vunpack.c.h.b16 %v3070
    %v3848 = vunpack.c.l.b16 %v3071
    %v3849 = vunpack.c.h.b16 %v3071
    %v3850 = vunpack.c.l.b16 %v3072
    %v3851 = vunpack.c.h.b16 %v3072
    %v3852 = vunpack.c.l.b16 %v3073
    %v3853 = vunpack.c.h.b16 %v3073
    %v3854 = vunpack.c.l.b16 %v3074
    %v3855 = vunpack.c.h.b16 %v3074
    %v3856 = vunpack.c.l.b16 %v3075
    %v3857 = vunpack.c.h.b16 %v3075
    %v3858 = vunpack.c.l.b16 %v3076
    %v3859 = vunpack.c.h.b16 %v3076
    %v3860 = vunpack.c.l.b16 %v3077
    %v3861 = vunpack.c.h.b16 %v3077
    %v3862 = vunpack.c.l.b16 %v3078
    %v3863 = vunpack.c.h.b16 %v3078
    %v3864 = vunpack.c.l.b16 %v3079
    %v3865 = vunpack.c.h.b16 %v3079
    %v3866 = vunpack.c.l.b16 %v3080
    %v3867 = vunpack.c.h.b16 %v3080
    %v3868 = vunpack.c.l.b16 %v3081
    %v3869 = vunpack.c.h.b16 %v3081
    %v3870 = vunpack.c.l.b16 %v3082
    %v3871 = vunpack.c.h.b16 %v3082
    %v3872 = vunpack.c.l.b16 %v3083
    %v3873 = vunpack.c.h.b16 %v3083
    %v3874 = vpack.c.b16 %v3366, %v3362
    %v3875 = vpack.c.b16 %v3367, %v3363
    %v3876 = vpack.c.b16 %v3368, %v3364
    %v3877 = vpack.c.b16 %v3369, %v3365
    %v3878 = vpack.c.b16 %v3374, %v3370
    %v3879 = vpack.c.b16 %v3375, %v3371
    %v3880 = vpack.c.b16 %v3376, %v3372
    %v3881 = vpack.c.b16 %v3377, %v3373
    %v3882 = vpack.c.b16 %v3382, %v3378
    %v3883 = vpack.c.b16 %v3383, %v3379
    %v3884 = vpack.c.b16 %v3384, %v3380
    %v3885 = vpack.c.b16 %v3385, %v3381
    %v3886 = vpack.c.b16 %v3390, %v3386
    %v3887 = vpack.c.b16 %v3391, %v3387
    %v3888 = vpack.c.b16 %v3392, %v3388
    %v3889 = vpack.c.b16 %v3393, %v3389
    %v3890 = vpack.c.b16 %v3398, %v3394
    %v3891 = vpack.c.b16 %v3399, %v3395
    %v3892 = vpack.c.b16 %v3400, %v3396
    %v3893 = vpack.c.b16 %v3401, %v3397
    %v3894 = vpack.c.b16 %v3406, %v3402
    %v3895 = vpack.c.b16 %v3407, %v3403
    %v3896 = vpack.c.b16 %v3408, %v3404
    %v3897 = vpack.c.b16 %v3409, %v3405
    %v3898 = vpack.c.b16 %v3414, %v3410
    %v3899 = vpack.c.b16 %v3415, %v3411
    %v3900 = vpack.c.b16 %v3416, %v3412
    %v3901 = vpack.c.b16 %v3417, %v3413
    %v3902 = vpack.c.b16 %v3422, %v3418
    %v3903 = vpack.c.b16 %v3423, %v3419
    %v3904 = vpack.c.b16 %v3424, %v3420
    %v3905 = vpack.c.b16 %v3425, %v3421
    %v3906 = vpack.c.b16 %v3430, %v3426
    %v3907 = vpack.c.b16 %v3431, %v3427
    %v3908 = vpack.c.b16 %v3432, %v3428
    %v3909 = vpack.c.b16 %v3433, %v3429
    %v3910 = vpack.c.b16 %v3438, %v3434
    %v3911 = vpack.c.b16 %v3439, %v3435
    %v3912 = vpack.c.b16 %v3440, %v3436
    %v3913 = vpack.c.b16 %v3441, %v3437
    %v3914 = vpack.c.b16 %v3446, %v3442
    %v3915 = vpack.c.b16 %v3447, %v3443
    %v3916 = vpack.c.b16 %v3448, %v3444
    %v3917 = vpack.c.b16 %v3449, %v3445
    %v3918 = vpack.c.b16 %v3454, %v3450
    %v3919 = vpack.c.b16 %v3455, %v3451
    %v3920 = vpack.c.b16 %v3456, %v3452
    %v3921 = vpack.c.b16 %v3457, %v3453
    %v3922 = vpack.c.b16 %v3462, %v3458
    %v3923 = vpack.c.b16 %v3463, %v3459
    %v3924 = vpack.c.b16 %v3464, %v3460
    %v3925 = vpack.c.b16 %v3465, %v3461
    %v3926 = vpack.c.b16 %v3470, %v3466
    %v3927 = vpack.c.b16 %v3471, %v3467
    %v3928 = vpack.c.b16 %v3472, %v3468
    %v3929 = vpack.c.b16 %v3473, %v3469
    %v3930 = vpack.c.b16 %v3478, %v3474
    %v3931 = vpack.c.b16 %v3479, %v3475
    %v3932 = vpack.c.b16 %v3480, %v3476
    %v3933 = vpack.c.b16 %v3481, %v3477
    %v3934 = vpack.c.b16 %v3486, %v3482
    %v3935 = vpack.c.b16 %v3487, %v3483
    %v3936 = vpack.c.b16 %v3488, %v3484
    %v3937 = vpack.c.b16 %v3489, %v3485
    %v3938 = vpack.c.b16 %v3494, %v3490
    %v3939 = vpack.c.b16 %v3495, %v3491
    %v3940 = vpack.c.b16 %v3496, %v3492
    %v3941 = vpack.c.b16 %v3497, %v3493
    %v3942 = vpack.c.b16 %v3502, %v3498
    %v3943 = vpack.c.b16 %v3503, %v3499
    %v3944 = vpack.c.b16 %v3504, %v3500
    %v3945 = vpack.c.b16 %v3505, %v3501
    %v3946 = vpack.c.b16 %v3510, %v3506
    %v3947 = vpack.c.b16 %v3511, %v3507
    %v3948 = vpack.c.b16 %v3512, %v3508
    %v3949 = vpack.c.b16 %v3513, %v3509
    %v3950 = vpack.c.b16 %v3518, %v3514
    %v3951 = vpack.c.b16 %v3519, %v3515
    %v3952 = vpack.c.b16 %v3520, %v3516
    %v3953 = vpack.c.b16 %v3521, %v3517
    %v3954 = vpack.c.b16 %v3526, %v3522
    %v3955 = vpack.c.b16 %v3527, %v3523
    %v3956 = vpack.c.b16 %v3528, %v3524
    %v3957 = vpack.c.b16 %v3529, %v3525
    %v3958 = vpack.c.b16 %v3534, %v3530
    %v3959 = vpack.c.b16 %v3535, %v3531
    %v3960 = vpack.c.b16 %v3536, %v3532
    %v3961 = vpack.c.b16 %v3537, %v3533
    %v3962 = vpack.c.b16 %v3542, %v3538
    %v3963 = vpack.c.b16 %v3543, %v3539
    %v3964 = vpack.c.b16 %v3544, %v3540
    %v3965 = vpack.c.b16 %v3545, %v3541
    %v3966 = vpack.c.b16 %v3550, %v3546
    %v3967 = vpack.c.b16 %v3551, %v3547
    %v3968 = vpack.c.b16 %v3552, %v3548
    %v3969 = vpack.c.b16 %v3553, %v3549
    %v3970 = vpack.c.b16 %v3558, %v3554
    %v3971 = vpack.c.b16 %v3559, %v3555
    %v3972 = vpack.c.b16 %v3560, %v3556
    %v3973 = vpack.c.b16 %v3561, %v3557
    %v3974 = vpack.c.b16 %v3566, %v3562
    %v3975 = vpack.c.b16 %v3567, %v3563
    %v3976 = vpack.c.b16 %v3568, %v3564
    %v3977 = vpack.c.b16 %v3569, %v3565
    %v3978 = vpack.c.b16 %v3574, %v3570
    %v3979 = vpack.c.b16 %v3575, %v3571
    %v3980 = vpack.c.b16 %v3576, %v3572
    %v3981 = vpack.c.b16 %v3577, %v3573
    %v3982 = vpack.c.b16 %v3582, %v3578
    %v3983 = vpack.c.b16 %v3583, %v3579
    %v3984 = vpack.c.b16 %v3584, %v3580
    %v3985 = vpack.c.b16 %v3585, %v3581
    %v3986 = vpack.c.b16 %v3590, %v3586
    %v3987 = vpack.c.b16 %v3591, %v3587
    %v3988 = vpack.c.b16 %v3592, %v3588
    %v3989 = vpack.c.b16 %v3593, %v3589
    %v3990 = vpack.c.b16 %v3598, %v3594
    %v3991 = vpack.c.b16 %v3599, %v3595
    %v3992 = vpack.c.b16 %v3600, %v3596
    %v3993 = vpack.c.b16 %v3601, %v3597
    %v3994 = vpack.c.b16 %v3606, %v3602
    %v3995 = vpack.c.b16 %v3607, %v3603
    %v3996 = vpack.c.b16 %v3608, %v3604
    %v3997 = vpack.c.b16 %v3609, %v3605
    %v3998 = vpack.c.b16 %v3614, %v3610
    %v3999 = vpack.c.b16 %v3615, %v3611
    %v4000 = vpack.c.b16 %v3616, %v3612
    %v4001 = vpack.c.b16 %v3617, %v3613
    %v4002 = vpack.c.b16 %v3622, %v3618
    %v4003 = vpack.c.b16 %v3623, %v3619
    %v4004 = vpack.c.b16 %v3624, %v3620
    %v4005 = vpack.c.b16 %v3625, %v3621
    %v4006 = vpack.c.b16 %v3630, %v3626
    %v4007 = vpack.c.b16 %v3631, %v3627
    %v4008 = vpack.c.b16 %v3632, %v3628
    %v4009 = vpack.c.b16 %v3633, %v3629
    %v4010 = vpack.c.b16 %v3638, %v3634
    %v4011 = vpack.c.b16 %v3639, %v3635
    %v4012 = vpack.c.b16 %v3640, %v3636
    %v4013 = vpack.c.b16 %v3641, %v3637
    %v4014 = vpack.c.b16 %v3646, %v3642
    %v4015 = vpack.c.b16 %v3647, %v3643
    %v4016 = vpack.c.b16 %v3648, %v3644
    %v4017 = vpack.c.b16 %v3649, %v3645
    %v4018 = vpack.c.b16 %v3654, %v3650
    %v4019 = vpack.c.b16 %v3655, %v3651
    %v4020 = vpack.c.b16 %v3656, %v3652
    %v4021 = vpack.c.b16 %v3657, %v3653
    %v4022 = vpack.c.b16 %v3662, %v3658
    %v4023 = vpack.c.b16 %v3663, %v3659
    %v4024 = vpack.c.b16 %v3664, %v3660
    %v4025 = vpack.c.b16 %v3665, %v3661
    %v4026 = vpack.c.b16 %v3670, %v3666
    %v4027 = vpack.c.b16 %v3671, %v3667
    %v4028 = vpack.c.b16 %v3672, %v3668
    %v4029 = vpack.c.b16 %v3673, %v3669
    %v4030 = vpack.c.b16 %v3678, %v3674
    %v4031 = vpack.c.b16 %v3679, %v3675
    %v4032 = vpack.c.b16 %v3680, %v3676
    %v4033 = vpack.c.b16 %v3681, %v3677
    %v4034 = vpack.c.b16 %v3686, %v3682
    %v4035 = vpack.c.b16 %v3687, %v3683
    %v4036 = vpack.c.b16 %v3688, %v3684
    %v4037 = vpack.c.b16 %v3689, %v3685
    %v4038 = vpack.c.b16 %v3694, %v3690
    %v4039 = vpack.c.b16 %v3695, %v3691
    %v4040 = vpack.c.b16 %v3696, %v3692
    %v4041 = vpack.c.b16 %v3697, %v3693
    %v4042 = vpack.c.b16 %v3702, %v3698
    %v4043 = vpack.c.b16 %v3703, %v3699
    %v4044 = vpack.c.b16 %v3704, %v3700
    %v4045 = vpack.c.b16 %v3705, %v3701
    %v4046 = vpack.c.b16 %v3710, %v3706
    %v4047 = vpack.c.b16 %v3711, %v3707
    %v4048 = vpack.c.b16 %v3712, %v3708
    %v4049 = vpack.c.b16 %v3713, %v3709
    %v4050 = vpack.c.b16 %v3718, %v3714
    %v4051 = vpack.c.b16 %v3719, %v3715
    %v4052 = vpack.c.b16 %v3720, %v3716
    %v4053 = vpack.c.b16 %v3721, %v3717
    %v4054 = vpack.c.b16 %v3726, %v3722
    %v4055 = vpack.c.b16 %v3727, %v3723
    %v4056 = vpack.c.b16 %v3728, %v3724
    %v4057 = vpack.c.b16 %v3729, %v3725
    %v4058 = vpack.c.b16 %v3734, %v3730
    %v4059 = vpack.c.b16 %v3735, %v3731
    %v4060 = vpack.c.b16 %v3736, %v3732
    %v4061 = vpack.c.b16 %v3737, %v3733
    %v4062 = vpack.c.b16 %v3742, %v3738
    %v4063 = vpack.c.b16 %v3743, %v3739
    %v4064 = vpack.c.b16 %v3744, %v3740
    %v4065 = vpack.c.b16 %v3745, %v3741
    %v4066 = vpack.c.b16 %v3750, %v3746
    %v4067 = vpack.c.b16 %v3751, %v3747
    %v4068 = vpack.c.b16 %v3752, %v3748
    %v4069 = vpack.c.b16 %v3753, %v3749
    %v4070 = vpack.c.b16 %v3758, %v3754
    %v4071 = vpack.c.b16 %v3759, %v3755
    %v4072 = vpack.c.b16 %v3760, %v3756
    %v4073 = vpack.c.b16 %v3761, %v3757
    %v4074 = vpack.c.b16 %v3766, %v3762
    %v4075 = vpack.c.b16 %v3767, %v3763
    %v4076 = vpack.c.b16 %v3768, %v3764
    %v4077 = vpack.c.b16 %v3769, %v3765
    %v4078 = vpack.c.b16 %v3774, %v3770
    %v4079 = vpack.c.b16 %v3775, %v3771
    %v4080 = vpack.c.b16 %v3776, %v3772
    %v4081 = vpack.c.b16 %v3777, %v3773
    %v4082 = vpack.c.b16 %v3782, %v3778
    %v4083 = vpack.c.b16 %v3783, %v3779
    %v4084 = vpack.c.b16 %v3784, %v3780
    %v4085 = vpack.c.b16 %v3785, %v3781
    %v4086 = vpack.c.b16 %v3790, %v3786
    %v4087 = vpack.c.b16 %v3791, %v3787
    %v4088 = vpack.c.b16 %v3792, %v3788
    %v4089 = vpack.c.b16 %v3793, %v3789
    %v4090 = vpack.c.b16 %v3798, %v3794
    %v4091 = vpack.c.b16 %v3799, %v3795
    %v4092 = vpack.c.b16 %v3800, %v3796
    %v4093 = vpack.c.b16 %v3801, %v3797
    %v4094 = vpack.c.b16 %v3806, %v3802
    %v4095 = vpack.c.b16 %v3807, %v3803
    %v4096 = vpack.c.b16 %v3808, %v3804
    %v4097 = vpack.c.b16 %v3809, %v3805
    %v4098 = vpack.c.b16 %v3814, %v3810
    %v4099 = vpack.c.b16 %v3815, %v3811
    %v4100 = vpack.c.b16 %v3816, %v3812
    %v4101 = vpack.c.b16 %v3817, %v3813
    %v4102 = vpack.c.b16 %v3822, %v3818
    %v4103 = vpack.c.b16 %v3823, %v3819
    %v4104 = vpack.c.b16 %v3824, %v3820
    %v4105 = vpack.c.b16 %v3825, %v3821
    %v4106 = vpack.c.b16 %v3830, %v3826
    %v4107 = vpack.c.b16 %v3831, %v3827
    %v4108 = vpack.c.b16 %v3832, %v3828
    %v4109 = vpack.c.b16 %v3833, %v3829
    %v4110 = vpack.c.b16 %v3838, %v3834
    %v4111 = vpack.c.b16 %v3839, %v3835
    %v4112 = vpack.c.b16 %v3840, %v3836
    %v4113 = vpack.c.b16 %v3841, %v3837
    %v4114 = vpack.c.b16 %v3846, %v3842
    %v4115 = vpack.c.b16 %v3847, %v3843
    %v4116 = vpack.c.b16 %v3848, %v3844
    %v4117 = vpack.c.b16 %v3849, %v3845
    %v4118 = vpack.c.b16 %v3854, %v3850
    %v4119 = vpack.c.b16 %v3855, %v3851
    %v4120 = vpack.c.b16 %v3856, %v3852
    %v4121 = vpack.c.b16 %v3857, %v3853
    %v4122 = vpack.c.b16 %v3862, %v3858
    %v4123 = vpack.c.b16 %v3863, %v3859
    %v4124 = vpack.c.b16 %v3864, %v3860
    %v4125 = vpack.c.b16 %v3865, %v3861
    %v4126 = vpack.c.b16 %v3870, %v3866
    %v4127 = vpack.c.b16 %v3871, %v3867
    %v4128 = vpack.c.b16 %v3872, %v3868
    %v4129 = vpack.c.b16 %v3873, %v3869
    %4386 = vmatprep.subr.bf16.mxu0 %v3903
    %4387 = vmatpush1.bf16.msra.mxu0 %v3902
    %4388 = vmatprep.subr.bf16.mxu0 %v3899
    %4389 = vmatpush1.bf16.msra.mxu0 %v3898
    %4390 = vmatprep.subr.bf16.mxu0 %v3895
    %4391 = vmatpush1.bf16.msra.mxu0 %v3894
    %4392 = vmatprep.subr.bf16.mxu0 %v3891
    %4393 = vmatpush1.bf16.msra.mxu0 %v3890
    %4394 = vmatprep.subr.bf16.mxu0 %v3887
    %4395 = vmatpush1.bf16.msra.mxu0 %v3886
    %4396 = vmatprep.subr.bf16.mxu0 %v3883
    %4397 = vmatpush1.bf16.msra.mxu0 %v3882
    %4398 = vmatprep.subr.bf16.mxu0 %v3879
    %4399 = vmatpush1.bf16.msra.mxu0 %v3878
    %4400 = vmatprep.subr.bf16.mxu0 %v3875
    %4401 = vmatpush1.bf16.msra.mxu0 %v3874
    %4402 = vmatprep.subr.bf16.mxu0 %v3935
    %4403 = vmatpush2.bf16.msra.mxu0 %v3934
    %4404 = vmatprep.subr.bf16.mxu0 %v3931
    %4405 = vmatpush2.bf16.msra.mxu0 %v3930
    %4406 = vmatprep.subr.bf16.mxu0 %v3927
    %4407 = vmatpush2.bf16.msra.mxu0 %v3926
    %4408 = vmatprep.subr.bf16.mxu0 %v3923
    %4409 = vmatpush2.bf16.msra.mxu0 %v3922
    %4410 = vmatprep.subr.bf16.mxu0 %v3919
    %4411 = vmatpush2.bf16.msra.mxu0 %v3918
    %4412 = vmatprep.subr.bf16.mxu0 %v3915
    %4413 = vmatpush2.bf16.msra.mxu0 %v3914
    %4414 = vmatprep.subr.bf16.mxu0 %v3911
    %4415 = vmatpush2.bf16.msra.mxu0 %v3910
    %4416 = vmatprep.subr.bf16.mxu0 %v3907
    %4417 = vmatpush2.bf16.msra.mxu0 %v3906
    %4418 = vmatprep.mubr.bf16.mxu0 %v2821
    %4419 = vmatmul.mubr.bf16.gmra.mxu0 %v2820
    %v4420 = vpop.f32.mrf.mxu0
    %v4421 = vadd.f32 %v3089, %v4420
    %v4422 = vpop.f32.mrf.mxu0
    %v4423 = vadd.f32 %v3093, %v4422
    %v4424 = vpop.f32.mrf.mxu0
    %v4425 = vpop.f32.mrf.mxu0
    %4426 = vdwg.mxu0
    %4427 = vmatprep.subr.bf16.mxu0 %v3967
    %4428 = vmatpush1.bf16.msra.mxu0 %v3966
    %4429 = vmatprep.subr.bf16.mxu0 %v3963
    %4430 = vmatpush1.bf16.msra.mxu0 %v3962
    %4431 = vmatprep.subr.bf16.mxu0 %v3959
    %4432 = vmatpush1.bf16.msra.mxu0 %v3958
    %4433 = vmatprep.subr.bf16.mxu0 %v3955
    %4434 = vmatpush1.bf16.msra.mxu0 %v3954
    %4435 = vmatprep.subr.bf16.mxu0 %v3951
    %4436 = vmatpush1.bf16.msra.mxu0 %v3950
    %4437 = vmatprep.subr.bf16.mxu0 %v3947
    %4438 = vmatpush1.bf16.msra.mxu0 %v3946
    %4439 = vmatprep.subr.bf16.mxu0 %v3943
    %4440 = vmatpush1.bf16.msra.mxu0 %v3942
    %4441 = vmatprep.subr.bf16.mxu0 %v3939
    %4442 = vmatpush1.bf16.msra.mxu0 %v3938
    %4443 = vmatprep.subr.bf16.mxu0 %v3999
    %4444 = vmatpush2.bf16.msra.mxu0 %v3998
    %4445 = vmatprep.subr.bf16.mxu0 %v3995
    %4446 = vmatpush2.bf16.msra.mxu0 %v3994
    %4447 = vmatprep.subr.bf16.mxu0 %v3991
    %4448 = vmatpush2.bf16.msra.mxu0 %v3990
    %4449 = vmatprep.subr.bf16.mxu0 %v3987
    %4450 = vmatpush2.bf16.msra.mxu0 %v3986
    %4451 = vmatprep.subr.bf16.mxu0 %v3983
    %4452 = vmatpush2.bf16.msra.mxu0 %v3982
    %4453 = vmatprep.subr.bf16.mxu0 %v3979
    %4454 = vmatpush2.bf16.msra.mxu0 %v3978
    %4455 = vmatprep.subr.bf16.mxu0 %v3975
    %4456 = vmatpush2.bf16.msra.mxu0 %v3974
    %4457 = vmatprep.subr.bf16.mxu0 %v3971
    %4458 = vmatpush2.bf16.msra.mxu0 %v3970
    %4459 = vmatprep.mubr.bf16.mxu0 %v2823
    %4460 = vmatmul.mubr.bf16.gmra.mxu0 %v2822
    %v4461 = vpop.f32.mrf.mxu0
    %v4462 = vadd.f32 %v4421, %v4461
    %v4463 = vpop.f32.mrf.mxu0
    %v4464 = vadd.f32 %v4423, %v4463
    %v4465 = vpop.f32.mrf.mxu0
    %v4466 = vpop.f32.mrf.mxu0
    %4467 = vdwg.mxu0
    %4468 = vmatprep.subr.bf16.mxu0 %v4031
    %4469 = vmatpush1.bf16.msra.mxu0 %v4030
    %4470 = vmatprep.subr.bf16.mxu0 %v4027
    %4471 = vmatpush1.bf16.msra.mxu0 %v4026
    %4472 = vmatprep.subr.bf16.mxu0 %v4023
    %4473 = vmatpush1.bf16.msra.mxu0 %v4022
    %4474 = vmatprep.subr.bf16.mxu0 %v4019
    %4475 = vmatpush1.bf16.msra.mxu0 %v4018
    %4476 = vmatprep.subr.bf16.mxu0 %v4015
    %4477 = vmatpush1.bf16.msra.mxu0 %v4014
    %4478 = vmatprep.subr.bf16.mxu0 %v4011
    %4479 = vmatpush1.bf16.msra.mxu0 %v4010
    %4480 = vmatprep.subr.bf16.mxu0 %v4007
    %4481 = vmatpush1.bf16.msra.mxu0 %v4006
    %4482 = vmatprep.subr.bf16.mxu0 %v4003
    %4483 = vmatpush1.bf16.msra.mxu0 %v4002
    %4484 = vmatprep.subr.bf16.mxu0 %v4063
    %4485 = vmatpush2.bf16.msra.mxu0 %v4062
    %4486 = vmatprep.subr.bf16.mxu0 %v4059
    %4487 = vmatpush2.bf16.msra.mxu0 %v4058
    %4488 = vmatprep.subr.bf16.mxu0 %v4055
    %4489 = vmatpush2.bf16.msra.mxu0 %v4054
    %4490 = vmatprep.subr.bf16.mxu0 %v4051
    %4491 = vmatpush2.bf16.msra.mxu0 %v4050
    %4492 = vmatprep.subr.bf16.mxu0 %v4047
    %4493 = vmatpush2.bf16.msra.mxu0 %v4046
    %4494 = vmatprep.subr.bf16.mxu0 %v4043
    %4495 = vmatpush2.bf16.msra.mxu0 %v4042
    %4496 = vmatprep.subr.bf16.mxu0 %v4039
    %4497 = vmatpush2.bf16.msra.mxu0 %v4038
    %4498 = vmatprep.subr.bf16.mxu0 %v4035
    %4499 = vmatpush2.bf16.msra.mxu0 %v4034
    %4500 = vmatprep.mubr.bf16.mxu0 %v2825
    %4501 = vmatmul.mubr.bf16.gmra.mxu0 %v2824
    %v4502 = vpop.f32.mrf.mxu0
    %v4503 = vadd.f32 %v4462, %v4502
    %v4504 = vpop.f32.mrf.mxu0
    %v4505 = vadd.f32 %v4464, %v4504
    %v4506 = vpop.f32.mrf.mxu0
    %v4507 = vpop.f32.mrf.mxu0
    %4508 = vdwg.mxu0
    %4509 = vmatprep.subr.bf16.mxu0 %v4095
    %4510 = vmatpush1.bf16.msra.mxu0 %v4094
    %4511 = vmatprep.subr.bf16.mxu0 %v4091
    %4512 = vmatpush1.bf16.msra.mxu0 %v4090
    %4513 = vmatprep.subr.bf16.mxu0 %v4087
    %4514 = vmatpush1.bf16.msra.mxu0 %v4086
    %4515 = vmatprep.subr.bf16.mxu0 %v4083
    %4516 = vmatpush1.bf16.msra.mxu0 %v4082
    %4517 = vmatprep.subr.bf16.mxu0 %v4079
    %4518 = vmatpush1.bf16.msra.mxu0 %v4078
    %4519 = vmatprep.subr.bf16.mxu0 %v4075
    %4520 = vmatpush1.bf16.msra.mxu0 %v4074
    %4521 = vmatprep.subr.bf16.mxu0 %v4071
    %4522 = vmatpush1.bf16.msra.mxu0 %v4070
    %4523 = vmatprep.subr.bf16.mxu0 %v4067
    %4524 = vmatpush1.bf16.msra.mxu0 %v4066
    %4525 = vmatprep.subr.bf16.mxu0 %v4127
    %4526 = vmatpush2.bf16.msra.mxu0 %v4126
    %4527 = vmatprep.subr.bf16.mxu0 %v4123
    %4528 = vmatpush2.bf16.msra.mxu0 %v4122
    %4529 = vmatprep.subr.bf16.mxu0 %v4119
    %4530 = vmatpush2.bf16.msra.mxu0 %v4118
    %4531 = vmatprep.subr.bf16.mxu0 %v4115
    %4532 = vmatpush2.bf16.msra.mxu0 %v4114
    %4533 = vmatprep.subr.bf16.mxu0 %v4111
    %4534 = vmatpush2.bf16.msra.mxu0 %v4110
    %4535 = vmatprep.subr.bf16.mxu0 %v4107
    %4536 = vmatpush2.bf16.msra.mxu0 %v4106
    %4537 = vmatprep.subr.bf16.mxu0 %v4103
    %4538 = vmatpush2.bf16.msra.mxu0 %v4102
    %4539 = vmatprep.subr.bf16.mxu0 %v4099
    %4540 = vmatpush2.bf16.msra.mxu0 %v4098
    %4541 = vmatprep.mubr.bf16.mxu0 %v2827
    %4542 = vmatmul.mubr.bf16.gmra.mxu0 %v2826
    %v4543 = vpop.f32.mrf.mxu0
    %v4544 = vadd.f32 %v4503, %v4543
    %v4545 = vpop.f32.mrf.mxu0
    %v4546 = vadd.f32 %v4505, %v4545
    %v4547 = vpop.f32.mrf.mxu0
    %v4548 = vpop.f32.mrf.mxu0
    %4549 = vdwg.mxu0
    %4550 = vmatprep.subr.bf16.mxu0 %v3905
    %4551 = vmatpush1.bf16.msra.mxu0 %v3904
    %4552 = vmatprep.subr.bf16.mxu0 %v3901
    %4553 = vmatpush1.bf16.msra.mxu0 %v3900
    %4554 = vmatprep.subr.bf16.mxu0 %v3897
    %4555 = vmatpush1.bf16.msra.mxu0 %v3896
    %4556 = vmatprep.subr.bf16.mxu0 %v3893
    %4557 = vmatpush1.bf16.msra.mxu0 %v3892
    %4558 = vmatprep.subr.bf16.mxu0 %v3889
    %4559 = vmatpush1.bf16.msra.mxu0 %v3888
    %4560 = vmatprep.subr.bf16.mxu0 %v3885
    %4561 = vmatpush1.bf16.msra.mxu0 %v3884
    %4562 = vmatprep.subr.bf16.mxu0 %v3881
    %4563 = vmatpush1.bf16.msra.mxu0 %v3880
    %4564 = vmatprep.subr.bf16.mxu0 %v3877
    %4565 = vmatpush1.bf16.msra.mxu0 %v3876
    %4566 = vmatprep.subr.bf16.mxu0 %v3937
    %4567 = vmatpush2.bf16.msra.mxu0 %v3936
    %4568 = vmatprep.subr.bf16.mxu0 %v3933
    %4569 = vmatpush2.bf16.msra.mxu0 %v3932
    %4570 = vmatprep.subr.bf16.mxu0 %v3929
    %4571 = vmatpush2.bf16.msra.mxu0 %v3928
    %4572 = vmatprep.subr.bf16.mxu0 %v3925
    %4573 = vmatpush2.bf16.msra.mxu0 %v3924
    %4574 = vmatprep.subr.bf16.mxu0 %v3921
    %4575 = vmatpush2.bf16.msra.mxu0 %v3920
    %4576 = vmatprep.subr.bf16.mxu0 %v3917
    %4577 = vmatpush2.bf16.msra.mxu0 %v3916
    %4578 = vmatprep.subr.bf16.mxu0 %v3913
    %4579 = vmatpush2.bf16.msra.mxu0 %v3912
    %4580 = vmatprep.subr.bf16.mxu0 %v3909
    %4581 = vmatpush2.bf16.msra.mxu0 %v3908
    %4582 = vmatprep.mubr.bf16.mxu0 %v2821
    %4583 = vmatmul.mubr.bf16.gmra.mxu0 %v2820
    %v4584 = vpop.f32.mrf.mxu0
    %v4585 = vadd.f32 %v3097, %v4584
    %v4586 = vpop.f32.mrf.mxu0
    %v4587 = vadd.f32 %v3101, %v4586
    %v4588 = vpop.f32.mrf.mxu0
    %v4589 = vpop.f32.mrf.mxu0
    %4590 = vdwg.mxu0
    %4591 = vmatprep.subr.bf16.mxu0 %v3969
    %4592 = vmatpush1.bf16.msra.mxu0 %v3968
    %4593 = vmatprep.subr.bf16.mxu0 %v3965
    %4594 = vmatpush1.bf16.msra.mxu0 %v3964
    %4595 = vmatprep.subr.bf16.mxu0 %v3961
    %4596 = vmatpush1.bf16.msra.mxu0 %v3960
    %4597 = vmatprep.subr.bf16.mxu0 %v3957
    %4598 = vmatpush1.bf16.msra.mxu0 %v3956
    %4599 = vmatprep.subr.bf16.mxu0 %v3953
    %4600 = vmatpush1.bf16.msra.mxu0 %v3952
    %4601 = vmatprep.subr.bf16.mxu0 %v3949
    %4602 = vmatpush1.bf16.msra.mxu0 %v3948
    %4603 = vmatprep.subr.bf16.mxu0 %v3945
    %4604 = vmatpush1.bf16.msra.mxu0 %v3944
    %4605 = vmatprep.subr.bf16.mxu0 %v3941
    %4606 = vmatpush1.bf16.msra.mxu0 %v3940
    %4607 = vmatprep.subr.bf16.mxu0 %v4001
    %4608 = vmatpush2.bf16.msra.mxu0 %v4000
    %4609 = vmatprep.subr.bf16.mxu0 %v3997
    %4610 = vmatpush2.bf16.msra.mxu0 %v3996
    %4611 = vmatprep.subr.bf16.mxu0 %v3993
    %4612 = vmatpush2.bf16.msra.mxu0 %v3992
    %4613 = vmatprep.subr.bf16.mxu0 %v3989
    %4614 = vmatpush2.bf16.msra.mxu0 %v3988
    %4615 = vmatprep.subr.bf16.mxu0 %v3985
    %4616 = vmatpush2.bf16.msra.mxu0 %v3984
    %4617 = vmatprep.subr.bf16.mxu0 %v3981
    %4618 = vmatpush2.bf16.msra.mxu0 %v3980
    %4619 = vmatprep.subr.bf16.mxu0 %v3977
    %4620 = vmatpush2.bf16.msra.mxu0 %v3976
    %4621 = vmatprep.subr.bf16.mxu0 %v3973
    %4622 = vmatpush2.bf16.msra.mxu0 %v3972
    %4623 = vmatprep.mubr.bf16.mxu0 %v2823
    %4624 = vmatmul.mubr.bf16.gmra.mxu0 %v2822
    %v4625 = vpop.f32.mrf.mxu0
    %v4626 = vadd.f32 %v4585, %v4625
    %v4627 = vpop.f32.mrf.mxu0
    %v4628 = vadd.f32 %v4587, %v4627
    %v4629 = vpop.f32.mrf.mxu0
    %v4630 = vpop.f32.mrf.mxu0
    %4631 = vdwg.mxu0
    %4632 = vmatprep.subr.bf16.mxu0 %v4033
    %4633 = vmatpush1.bf16.msra.mxu0 %v4032
    %4634 = vmatprep.subr.bf16.mxu0 %v4029
    %4635 = vmatpush1.bf16.msra.mxu0 %v4028
    %4636 = vmatprep.subr.bf16.mxu0 %v4025
    %4637 = vmatpush1.bf16.msra.mxu0 %v4024
    %4638 = vmatprep.subr.bf16.mxu0 %v4021
    %4639 = vmatpush1.bf16.msra.mxu0 %v4020
    %4640 = vmatprep.subr.bf16.mxu0 %v4017
    %4641 = vmatpush1.bf16.msra.mxu0 %v4016
    %4642 = vmatprep.subr.bf16.mxu0 %v4013
    %4643 = vmatpush1.bf16.msra.mxu0 %v4012
    %4644 = vmatprep.subr.bf16.mxu0 %v4009
    %4645 = vmatpush1.bf16.msra.mxu0 %v4008
    %4646 = vmatprep.subr.bf16.mxu0 %v4005
    %4647 = vmatpush1.bf16.msra.mxu0 %v4004
    %4648 = vmatprep.subr.bf16.mxu0 %v4065
    %4649 = vmatpush2.bf16.msra.mxu0 %v4064
    %4650 = vmatprep.subr.bf16.mxu0 %v4061
    %4651 = vmatpush2.bf16.msra.mxu0 %v4060
    %4652 = vmatprep.subr.bf16.mxu0 %v4057
    %4653 = vmatpush2.bf16.msra.mxu0 %v4056
    %4654 = vmatprep.subr.bf16.mxu0 %v4053
    %4655 = vmatpush2.bf16.msra.mxu0 %v4052
    %4656 = vmatprep.subr.bf16.mxu0 %v4049
    %4657 = vmatpush2.bf16.msra.mxu0 %v4048
    %4658 = vmatprep.subr.bf16.mxu0 %v4045
    %4659 = vmatpush2.bf16.msra.mxu0 %v4044
    %4660 = vmatprep.subr.bf16.mxu0 %v4041
    %4661 = vmatpush2.bf16.msra.mxu0 %v4040
    %4662 = vmatprep.subr.bf16.mxu0 %v4037
    %4663 = vmatpush2.bf16.msra.mxu0 %v4036
    %4664 = vmatprep.mubr.bf16.mxu0 %v2825
    %4665 = vmatmul.mubr.bf16.gmra.mxu0 %v2824
    %v4666 = vpop.f32.mrf.mxu0
    %v4667 = vadd.f32 %v4626, %v4666
    %v4668 = vpop.f32.mrf.mxu0
    %v4669 = vadd.f32 %v4628, %v4668
    %v4670 = vpop.f32.mrf.mxu0
    %v4671 = vpop.f32.mrf.mxu0
    %4672 = vdwg.mxu0
    %4673 = vmatprep.subr.bf16.mxu0 %v4097
    %4674 = vmatpush1.bf16.msra.mxu0 %v4096
    %4675 = vmatprep.subr.bf16.mxu0 %v4093
    %4676 = vmatpush1.bf16.msra.mxu0 %v4092
    %4677 = vmatprep.subr.bf16.mxu0 %v4089
    %4678 = vmatpush1.bf16.msra.mxu0 %v4088
    %4679 = vmatprep.subr.bf16.mxu0 %v4085
    %4680 = vmatpush1.bf16.msra.mxu0 %v4084
    %4681 = vmatprep.subr.bf16.mxu0 %v4081
    %4682 = vmatpush1.bf16.msra.mxu0 %v4080
    %4683 = vmatprep.subr.bf16.mxu0 %v4077
    %4684 = vmatpush1.bf16.msra.mxu0 %v4076
    %4685 = vmatprep.subr.bf16.mxu0 %v4073
    %4686 = vmatpush1.bf16.msra.mxu0 %v4072
    %4687 = vmatprep.subr.bf16.mxu0 %v4069
    %4688 = vmatpush1.bf16.msra.mxu0 %v4068
    %4689 = vmatprep.subr.bf16.mxu0 %v4129
    %4690 = vmatpush2.bf16.msra.mxu0 %v4128
    %4691 = vmatprep.subr.bf16.mxu0 %v4125
    %4692 = vmatpush2.bf16.msra.mxu0 %v4124
    %4693 = vmatprep.subr.bf16.mxu0 %v4121
    %4694 = vmatpush2.bf16.msra.mxu0 %v4120
    %4695 = vmatprep.subr.bf16.mxu0 %v4117
    %4696 = vmatpush2.bf16.msra.mxu0 %v4116
    %4697 = vmatprep.subr.bf16.mxu0 %v4113
    %4698 = vmatpush2.bf16.msra.mxu0 %v4112
    %4699 = vmatprep.subr.bf16.mxu0 %v4109
    %4700 = vmatpush2.bf16.msra.mxu0 %v4108
    %4701 = vmatprep.subr.bf16.mxu0 %v4105
    %4702 = vmatpush2.bf16.msra.mxu0 %v4104
    %4703 = vmatprep.subr.bf16.mxu0 %v4101
    %4704 = vmatpush2.bf16.msra.mxu0 %v4100
    %4705 = vmatprep.mubr.bf16.mxu0 %v2827
    %4706 = vmatmul.mubr.bf16.gmra.mxu0 %v2826
    %v4707 = vpop.f32.mrf.mxu0
    %v4708 = vadd.f32 %v4667, %v4707
    %v4709 = vpop.f32.mrf.mxu0
    %v4710 = vadd.f32 %v4669, %v4709
    %v4711 = vpop.f32.mrf.mxu0
    %v4712 = vpop.f32.mrf.mxu0
    %4713 = vdwg.mxu0
    %v4714 = vmax.f32 %v4544, 0.0
    %v4715 = vmax.f32 %v4546, 0.0
    %v4716 = vmax.f32 %v4708, 0.0
    %v4717 = vmax.f32 %v4710, 0.0
    %v4718 = vpack.c.bf16 %v4714, %v4714
    %v4719 = vpack.c.bf16 %v4715, %v4715
    %v4720 = vpack.c.bf16 %v4716, %v4716
    %v4721 = vpack.c.bf16 %v4717, %v4717
    %v4722 = vld [vmem:[#allocation13] sm:$0xf]
    %v4723 = vld [vmem:[#allocation13 + $0x4] sm:$0xf]
    %v4724 = vld [vmem:[#allocation13 + $0x8] sm:$0xf]
    %v4725 = vld [vmem:[#allocation13 + $0xc] sm:$0xf]
    %v4726 = vld [vmem:[#allocation13 + $0x10] sm:$0xf]
    %v4727 = vld [vmem:[#allocation13 + $0x14] sm:$0xf]
    %v4728 = vld [vmem:[#allocation13 + $0x18] sm:$0xf]
    %v4729 = vld [vmem:[#allocation13 + $0x1c] sm:$0xf]
    %v4730 = vld [vmem:[#allocation13 + $0x20] sm:$0xf]
    %v4731 = vld [vmem:[#allocation13 + $0x24] sm:$0xf]
    %v4732 = vld [vmem:[#allocation13 + $0x28] sm:$0xf]
    %v4733 = vld [vmem:[#allocation13 + $0x2c] sm:$0xf]
    %v4734 = vld [vmem:[#allocation13 + $0x30] sm:$0xf]
    %v4735 = vld [vmem:[#allocation13 + $0x34] sm:$0xf]
    %v4736 = vld [vmem:[#allocation13 + $0x38] sm:$0xf]
    %v4737 = vld [vmem:[#allocation13 + $0x3c] sm:$0xf]
    %v4738 = vld [vmem:[#allocation13 + $0x40] sm:$0xf]
    %v4739 = vld [vmem:[#allocation13 + $0x44] sm:$0xf]
    %v4740 = vld [vmem:[#allocation13 + $0x48] sm:$0xf]
    %v4741 = vld [vmem:[#allocation13 + $0x4c] sm:$0xf]
    %v4742 = vld [vmem:[#allocation13 + $0x50] sm:$0xf]
    %v4743 = vld [vmem:[#allocation13 + $0x54] sm:$0xf]
    %v4744 = vld [vmem:[#allocation13 + $0x58] sm:$0xf]
    %v4745 = vld [vmem:[#allocation13 + $0x5c] sm:$0xf]
    %v4746 = vld [vmem:[#allocation13 + $0x60] sm:$0xf]
    %v4747 = vld [vmem:[#allocation13 + $0x64] sm:$0xf]
    %v4748 = vld [vmem:[#allocation13 + $0x68] sm:$0xf]
    %v4749 = vld [vmem:[#allocation13 + $0x6c] sm:$0xf]
    %v4750 = vld [vmem:[#allocation13 + $0x70] sm:$0xf]
    %v4751 = vld [vmem:[#allocation13 + $0x74] sm:$0xf]
    %v4752 = vld [vmem:[#allocation13 + $0x78] sm:$0xf]
    %v4753 = vld [vmem:[#allocation13 + $0x7c] sm:$0xf]
    %v4754 = vld [vmem:[#allocation13 + $0x80] sm:$0xf]
    %v4755 = vld [vmem:[#allocation13 + $0x84] sm:$0xf]
    %v4756 = vld [vmem:[#allocation13 + $0x88] sm:$0xf]
    %v4757 = vld [vmem:[#allocation13 + $0x8c] sm:$0xf]
    %v4758 = vld [vmem:[#allocation13 + $0x90] sm:$0xf]
    %v4759 = vld [vmem:[#allocation13 + $0x94] sm:$0xf]
    %v4760 = vld [vmem:[#allocation13 + $0x98] sm:$0xf]
    %v4761 = vld [vmem:[#allocation13 + $0x9c] sm:$0xf]
    %v4762 = vld [vmem:[#allocation13 + $0xa0] sm:$0xf]
    %v4763 = vld [vmem:[#allocation13 + $0xa4] sm:$0xf]
    %v4764 = vld [vmem:[#allocation13 + $0xa8] sm:$0xf]
    %v4765 = vld [vmem:[#allocation13 + $0xac] sm:$0xf]
    %v4766 = vld [vmem:[#allocation13 + $0xb0] sm:$0xf]
    %v4767 = vld [vmem:[#allocation13 + $0xb4] sm:$0xf]
    %v4768 = vld [vmem:[#allocation13 + $0xb8] sm:$0xf]
    %v4769 = vld [vmem:[#allocation13 + $0xbc] sm:$0xf]
    %v4770 = vld [vmem:[#allocation13 + $0xc0] sm:$0xf]
    %v4771 = vld [vmem:[#allocation13 + $0xc4] sm:$0xf]
    %v4772 = vld [vmem:[#allocation13 + $0xc8] sm:$0xf]
    %v4773 = vld [vmem:[#allocation13 + $0xcc] sm:$0xf]
    %v4774 = vld [vmem:[#allocation13 + $0xd0] sm:$0xf]
    %v4775 = vld [vmem:[#allocation13 + $0xd4] sm:$0xf]
    %v4776 = vld [vmem:[#allocation13 + $0xd8] sm:$0xf]
    %v4777 = vld [vmem:[#allocation13 + $0xdc] sm:$0xf]
    %v4778 = vld [vmem:[#allocation13 + $0xe0] sm:$0xf]
    %v4779 = vld [vmem:[#allocation13 + $0xe4] sm:$0xf]
    %v4780 = vld [vmem:[#allocation13 + $0xe8] sm:$0xf]
    %v4781 = vld [vmem:[#allocation13 + $0xec] sm:$0xf]
    %v4782 = vld [vmem:[#allocation13 + $0xf0] sm:$0xf]
    %v4783 = vld [vmem:[#allocation13 + $0xf4] sm:$0xf]
    %v4784 = vld [vmem:[#allocation13 + $0xf8] sm:$0xf]
    %v4785 = vld [vmem:[#allocation13 + $0xfc] sm:$0xf]
    %v4786 = vld [vmem:[%s8] sm:$0x1]
    %v4788 = vlaneseq
    %v4789 = vshrl.u32 %v4788, 7
    %v4790 = vsub.s32 0, %v4789
    %v4791 = vrot.slane %v4786, %v4790
    %v4857 = vunpack.c.l.b16 %v4722
    %v4858 = vunpack.c.l.b16 %v4723
    %v4859 = vunpack.c.l.b16 %v4724
    %v4860 = vunpack.c.l.b16 %v4725
    %v4861 = vunpack.c.l.b16 %v4726
    %v4862 = vunpack.c.l.b16 %v4727
    %v4863 = vunpack.c.l.b16 %v4728
    %v4864 = vunpack.c.l.b16 %v4729
    %v4865 = vunpack.c.l.b16 %v4730
    %v4866 = vunpack.c.l.b16 %v4731
    %v4867 = vunpack.c.l.b16 %v4732
    %v4868 = vunpack.c.l.b16 %v4733
    %v4869 = vunpack.c.l.b16 %v4734
    %v4870 = vunpack.c.l.b16 %v4735
    %v4871 = vunpack.c.l.b16 %v4736
    %v4872 = vunpack.c.l.b16 %v4737
    %v4873 = vunpack.c.l.b16 %v4738
    %v4874 = vunpack.c.l.b16 %v4739
    %v4875 = vunpack.c.l.b16 %v4740
    %v4876 = vunpack.c.l.b16 %v4741
    %v4877 = vunpack.c.l.b16 %v4742
    %v4878 = vunpack.c.l.b16 %v4743
    %v4879 = vunpack.c.l.b16 %v4744
    %v4880 = vunpack.c.l.b16 %v4745
    %v4881 = vunpack.c.l.b16 %v4746
    %v4882 = vunpack.c.l.b16 %v4747
    %v4883 = vunpack.c.l.b16 %v4748
    %v4884 = vunpack.c.l.b16 %v4749
    %v4885 = vunpack.c.l.b16 %v4750
    %v4886 = vunpack.c.l.b16 %v4751
    %v4887 = vunpack.c.l.b16 %v4752
    %v4888 = vunpack.c.l.b16 %v4753
    %v4889 = vunpack.c.l.b16 %v4754
    %v4890 = vunpack.c.l.b16 %v4755
    %v4891 = vunpack.c.l.b16 %v4756
    %v4892 = vunpack.c.l.b16 %v4757
    %v4893 = vunpack.c.l.b16 %v4758
    %v4894 = vunpack.c.l.b16 %v4759
    %v4895 = vunpack.c.l.b16 %v4760
    %v4896 = vunpack.c.l.b16 %v4761
    %v4897 = vunpack.c.l.b16 %v4762
    %v4898 = vunpack.c.l.b16 %v4763
    %v4899 = vunpack.c.l.b16 %v4764
    %v4900 = vunpack.c.l.b16 %v4765
    %v4901 = vunpack.c.l.b16 %v4766
    %v4902 = vunpack.c.l.b16 %v4767
    %v4903 = vunpack.c.l.b16 %v4768
    %v4904 = vunpack.c.l.b16 %v4769
    %v4905 = vunpack.c.l.b16 %v4770
    %v4906 = vunpack.c.l.b16 %v4771
    %v4907 = vunpack.c.l.b16 %v4772
    %v4908 = vunpack.c.l.b16 %v4773
    %v4909 = vunpack.c.l.b16 %v4774
    %v4910 = vunpack.c.l.b16 %v4775
    %v4911 = vunpack.c.l.b16 %v4776
    %v4912 = vunpack.c.l.b16 %v4777
    %v4913 = vunpack.c.l.b16 %v4778
    %v4914 = vunpack.c.l.b16 %v4779
    %v4915 = vunpack.c.l.b16 %v4780
    %v4916 = vunpack.c.l.b16 %v4781
    %v4917 = vunpack.c.l.b16 %v4782
    %v4918 = vunpack.c.l.b16 %v4783
    %v4919 = vunpack.c.l.b16 %v4784
    %v4920 = vunpack.c.l.b16 %v4785
    %v4921 = vpack.c.b16 %v4858, %v4857
    %v4922 = vpack.c.b16 %v4860, %v4859
    %v4923 = vpack.c.b16 %v4862, %v4861
    %v4924 = vpack.c.b16 %v4864, %v4863
    %v4925 = vpack.c.b16 %v4866, %v4865
    %v4926 = vpack.c.b16 %v4868, %v4867
    %v4927 = vpack.c.b16 %v4870, %v4869
    %v4928 = vpack.c.b16 %v4872, %v4871
    %v4929 = vpack.c.b16 %v4874, %v4873
    %v4930 = vpack.c.b16 %v4876, %v4875
    %v4931 = vpack.c.b16 %v4878, %v4877
    %v4932 = vpack.c.b16 %v4880, %v4879
    %v4933 = vpack.c.b16 %v4882, %v4881
    %v4934 = vpack.c.b16 %v4884, %v4883
    %v4935 = vpack.c.b16 %v4886, %v4885
    %v4936 = vpack.c.b16 %v4888, %v4887
    %v4937 = vpack.c.b16 %v4890, %v4889
    %v4938 = vpack.c.b16 %v4892, %v4891
    %v4939 = vpack.c.b16 %v4894, %v4893
    %v4940 = vpack.c.b16 %v4896, %v4895
    %v4941 = vpack.c.b16 %v4898, %v4897
    %v4942 = vpack.c.b16 %v4900, %v4899
    %v4943 = vpack.c.b16 %v4902, %v4901
    %v4944 = vpack.c.b16 %v4904, %v4903
    %v4945 = vpack.c.b16 %v4906, %v4905
    %v4946 = vpack.c.b16 %v4908, %v4907
    %v4947 = vpack.c.b16 %v4910, %v4909
    %v4948 = vpack.c.b16 %v4912, %v4911
    %v4949 = vpack.c.b16 %v4914, %v4913
    %v4950 = vpack.c.b16 %v4916, %v4915
    %v4951 = vpack.c.b16 %v4918, %v4917
    %v4952 = vpack.c.b16 %v4920, %v4919
    %4985 = vmatprep.subr.bf16.mxu0 0
    %4986 = vmatpush1.bf16.msra.mxu0 %v4928
    %4987 = vmatprep.subr.bf16.mxu0 0
    %4988 = vmatpush1.bf16.msra.mxu0 %v4927
    %4989 = vmatprep.subr.bf16.mxu0 0
    %4990 = vmatpush1.bf16.msra.mxu0 %v4926
    %4991 = vmatprep.subr.bf16.mxu0 0
    %4992 = vmatpush1.bf16.msra.mxu0 %v4925
    %4993 = vmatprep.subr.bf16.mxu0 0
    %4994 = vmatpush1.bf16.msra.mxu0 %v4924
    %4995 = vmatprep.subr.bf16.mxu0 0
    %4996 = vmatpush1.bf16.msra.mxu0 %v4923
    %4997 = vmatprep.subr.bf16.mxu0 0
    %4998 = vmatpush1.bf16.msra.mxu0 %v4922
    %4999 = vmatprep.subr.bf16.mxu0 0
    %5000 = vmatpush1.bf16.msra.mxu0 %v4921
    %5001 = vmatprep.subr.bf16.mxu0 0
    %5002 = vmatpush2.bf16.msra.mxu0 %v4936
    %5003 = vmatprep.subr.bf16.mxu0 0
    %5004 = vmatpush2.bf16.msra.mxu0 %v4935
    %5005 = vmatprep.subr.bf16.mxu0 0
    %5006 = vmatpush2.bf16.msra.mxu0 %v4934
    %5007 = vmatprep.subr.bf16.mxu0 0
    %5008 = vmatpush2.bf16.msra.mxu0 %v4933
    %5009 = vmatprep.subr.bf16.mxu0 0
    %5010 = vmatpush2.bf16.msra.mxu0 %v4932
    %5011 = vmatprep.subr.bf16.mxu0 0
    %5012 = vmatpush2.bf16.msra.mxu0 %v4931
    %5013 = vmatprep.subr.bf16.mxu0 0
    %5014 = vmatpush2.bf16.msra.mxu0 %v4930
    %5015 = vmatprep.subr.bf16.mxu0 0
    %5016 = vmatpush2.bf16.msra.mxu0 %v4929
    %5017 = vmatprep.mubr.bf16.mxu0 %v4719
    %5018 = vmatmul.mubr.bf16.gmra.mxu0 %v4718
    %v5019 = vpop.f32.mrf.mxu0
    %v5020 = vadd.f32 %v4791, %v5019
    %v5021 = vpop.f32.mrf.mxu0
    %v5022 = vpop.f32.mrf.mxu0
    %v5023 = vpop.f32.mrf.mxu0
    %5024 = vdwg.mxu0
    %5025 = vmatprep.subr.bf16.mxu0 0
    %5026 = vmatpush1.bf16.msra.mxu0 %v4944
    %5027 = vmatprep.subr.bf16.mxu0 0
    %5028 = vmatpush1.bf16.msra.mxu0 %v4943
    %5029 = vmatprep.subr.bf16.mxu0 0
    %5030 = vmatpush1.bf16.msra.mxu0 %v4942
    %5031 = vmatprep.subr.bf16.mxu0 0
    %5032 = vmatpush1.bf16.msra.mxu0 %v4941
    %5033 = vmatprep.subr.bf16.mxu0 0
    %5034 = vmatpush1.bf16.msra.mxu0 %v4940
    %5035 = vmatprep.subr.bf16.mxu0 0
    %5036 = vmatpush1.bf16.msra.mxu0 %v4939
    %5037 = vmatprep.subr.bf16.mxu0 0
    %5038 = vmatpush1.bf16.msra.mxu0 %v4938
    %5039 = vmatprep.subr.bf16.mxu0 0
    %5040 = vmatpush1.bf16.msra.mxu0 %v4937
    %5041 = vmatprep.subr.bf16.mxu0 0
    %5042 = vmatpush2.bf16.msra.mxu0 %v4952
    %5043 = vmatprep.subr.bf16.mxu0 0
    %5044 = vmatpush2.bf16.msra.mxu0 %v4951
    %5045 = vmatprep.subr.bf16.mxu0 0
    %5046 = vmatpush2.bf16.msra.mxu0 %v4950
    %5047 = vmatprep.subr.bf16.mxu0 0
    %5048 = vmatpush2.bf16.msra.mxu0 %v4949
    %5049 = vmatprep.subr.bf16.mxu0 0
    %5050 = vmatpush2.bf16.msra.mxu0 %v4948
    %5051 = vmatprep.subr.bf16.mxu0 0
    %5052 = vmatpush2.bf16.msra.mxu0 %v4947
    %5053 = vmatprep.subr.bf16.mxu0 0
    %5054 = vmatpush2.bf16.msra.mxu0 %v4946
    %5055 = vmatprep.subr.bf16.mxu0 0
    %5056 = vmatpush2.bf16.msra.mxu0 %v4945
    %5057 = vmatprep.mubr.bf16.mxu0 %v4721
    %5058 = vmatmul.mubr.bf16.gmra.mxu0 %v4720
    %v5059 = vpop.f32.mrf.mxu0
    %v5060 = vadd.f32 %v5020, %v5059
    %v5061 = vpop.f32.mrf.mxu0
    %v5062 = vpop.f32.mrf.mxu0
    %v5063 = vpop.f32.mrf.mxu0
    %5064 = vdwg.mxu0
    %5065 = vst [vmem:[#allocation14] sm:$0xff] %v5060
    // Predicated region
    $region66: #{tpu_custom_call.1} parent=1 // pred_check
      _
    $region67: #{tpu_custom_call.1} parent=1 // pred_check_branch
      %5067 = sbr.rel (0) target = $region69
    $region68: #{tpu_custom_call.1} parent=1 // pred_region
      %s5069 = ssub.s32 128, 128
      %5070 = vsyncadd [#allocation4], %s5069
      %s5072 = sshll.u32 [#allocation14], 4
      %s5073 = int_to_ptr.vmem [resolvable:$true] %s5072
      %5075 = dma.vmem_to_hbm [thread:$0]  %s5073, 128, %s9, [#allocation4]
    $region69: #{tpu_custom_call.1} parent=1 // pred_fallthru
      _
    // Predicated region
    $region70: #{tpu_custom_call.1} parent=1 // pred_check
      _
    $region71: #{tpu_custom_call.1} parent=1 // pred_check_branch
      %5077 = sbr.rel (0) target = $region73
    $region72: #{tpu_custom_call.1} parent=1 // pred_region
      %5078 = dma.done [#allocation4], 128
    $region73: #{tpu_custom_call.1} parent=1 // pred_fallthru
      _
    %5079 = vsyncpa [#allocation3], 1
    %5080 = vsyncpa [#allocation6], 1
    %5081 = vsyncpa [#allocation9], 1
    %5082 = vsyncpa [#allocation12], 1
    %5083 = vsyncpa [#allocation4], 1

</llo_original>
